<compile_context>
chip_gen: v7x
topology: tpu7x:2x2x1
jax: 0.10.0
libtpu: 0.0.40
codegen_flags: <defaults>
</compile_context>

<pallas_src>
import jax
import jax.numpy as jnp
from jax import lax
from jax.experimental import pallas as pl
from jax.experimental.pallas import tpu as pltpu

# ---- model hyper-parameters (module defaults) -------------------------------
VOCAB = 64
D_MODEL = 128
NHEAD = 4
HEAD_DIM = D_MODEL // NHEAD
NUM_LAYERS = 2
DFF = 256
MAX_LEN = 256
LN_EPS = 1e-5
LOGIT_PAD = 128            # pad VOCAB=64 -> 128 lanes for an unmasked store

B = 2
S = 8
BS = B * S

# ---- packed-slab geometry ----------------------------------------------------
QKV_W = 3 * D_MODEL                                  # 384
WO_W = D_MODEL                                       # 128
W1_W = DFF                                           # 256
LAYER_COLS = QKV_W + WO_W + W1_W                     # 768 cols of WA per layer
WA_COLS = NUM_LAYERS * LAYER_COLS + LOGIT_PAD        # 1664
BIAS_W = 3 * D_MODEL                                 # 384 lanes per bias row
BIAS_ROWS_PER_LAYER = 8                              # bqkv,bo,ln1w,ln1b,b1,b2,ln2w,ln2b
BIAS_ROWS = NUM_LAYERS * BIAS_ROWS_PER_LAYER + 1     # + b_fc
BIAS_ROWS_PAD = 24                                   # sublane-friendly


def _layernorm(x, w, b):
    mu = jnp.mean(x, axis=-1, keepdims=True)
    xc = x - mu
    var = jnp.mean(xc * xc, axis=-1, keepdims=True)
    return xc * lax.rsqrt(var + LN_EPS) * w + b


def lm_kernel(x_ref, wa_ref, wb_ref, bias_ref, out_ref):
    """Fused: NUM_LAYERS post-norm encoder layers (MHA + ReLU-FFN) + final FC.

    x_ref   : (BS, D_MODEL)        f32 activations
    wa_ref  : (D_MODEL, WA_COLS)   bf16  [wqkv|wo|w1] per layer + padded w_fc
    wb_ref  : (NUM_LAYERS*DFF, D)  bf16  stacked w2 matrices
    bias_ref: (BIAS_ROWS_PAD, 384) f32   one bias / LN vector per row
    out_ref : (BS, LOGIT_PAD)      f32   padded logits
    Dropout layers run in eval mode (identity); no attention mask (reference
    calls the encoder without one).
    """
    x = x_ref[...]                                            # (BS, D) f32

    for l in range(NUM_LAYERS):
        ca = l * LAYER_COLS
        br = l * BIAS_ROWS_PER_LAYER

        # --- multi-head self attention ---------------------------------------
        # 1/sqrt(head_dim) is already folded into the Q columns / Q bias.
        qkv = jnp.dot(x.astype(jnp.bfloat16), wa_ref[:, ca:ca + QKV_W],
                      preferred_element_type=jnp.float32)
        qkv = qkv + bias_ref[br:br + 1, :]                    # (BS, 3D)

        q = qkv[:, 0:D_MODEL].reshape(B, S, D_MODEL)
        k = qkv[:, D_MODEL:2 * D_MODEL].reshape(B, S, D_MODEL)
        v = qkv[:, 2 * D_MODEL:3 * D_MODEL].reshape(B, S, D_MODEL)

        # Per-head scores, softmax, value mix; output projected through the
        # matching sublane-aligned row block of wo and accumulated in f32
        # (replaces the 32-lane concatenate + single wo matmul).
        attn = None
        for h in range(NHEAD):
            lo = h * HEAD_DIM
            qh = q[:, :, lo:lo + HEAD_DIM]                    # (B, S, hd)
            kh = k[:, :, lo:lo + HEAD_DIM]
            vh = v[:, :, lo:lo + HEAD_DIM]
            s = jnp.einsum('bqd,bkd->bqk', qh, kh,
                           preferred_element_type=jnp.float32)  # (B, S, S)
            s = s - jnp.max(s, axis=-1, keepdims=True)
            p = jnp.exp(s)
            p = p * pl.reciprocal(jnp.sum(p, axis=-1, keepdims=True),
                                  approx=True)
            ho = jnp.einsum('bqk,bkd->bqd', p, vh,
                            preferred_element_type=jnp.float32)
            ho = ho.reshape(BS, HEAD_DIM)
            part = jnp.dot(
                ho.astype(jnp.bfloat16),
                wa_ref[lo:lo + HEAD_DIM, ca + QKV_W:ca + QKV_W + WO_W],
                preferred_element_type=jnp.float32)
            attn = part if attn is None else attn + part
        attn = attn + bias_ref[br + 1:br + 2, 0:D_MODEL]      # bo

        # --- residual + norm1 (post-norm) ------------------------------------
        h1 = _layernorm(x + attn,
                        bias_ref[br + 2:br + 3, 0:D_MODEL],   # ln1 weight
                        bias_ref[br + 3:br + 4, 0:D_MODEL])   # ln1 bias

        # --- feed-forward (ReLU) ---------------------------------------------
        ff = jnp.dot(h1.astype(jnp.bfloat16),
                     wa_ref[:, ca + QKV_W + WO_W:ca + LAYER_COLS],
                     preferred_element_type=jnp.float32)
        ff = jnp.maximum(ff + bias_ref[br + 4:br + 5, 0:DFF], 0.0)
        ff = jnp.dot(ff.astype(jnp.bfloat16),
                     wb_ref[l * DFF:(l + 1) * DFF, :],
                     preferred_element_type=jnp.float32)
        ff = ff + bias_ref[br + 5:br + 6, 0:D_MODEL]

        # --- residual + norm2 --------------------------------------------------
        x = _layernorm(h1 + ff,
                       bias_ref[br + 6:br + 7, 0:D_MODEL],    # ln2 weight
                       bias_ref[br + 7:br + 8, 0:D_MODEL])    # ln2 bias

    # --- final FC, 128-lane padded so the output store is lane-dense ---------
    fc_col = NUM_LAYERS * LAYER_COLS
    fc_row = NUM_LAYERS * BIAS_ROWS_PER_LAYER
    out_ref[...] = (jnp.dot(x.astype(jnp.bfloat16),
                            wa_ref[:, fc_col:fc_col + LOGIT_PAD],
                            preferred_element_type=jnp.float32)
                    + bias_ref[fc_row:fc_row + 1, 0:D_MODEL])


def lm_pallas(x2d, wa, wb, bias):
    """Single fused, grid-less pallas_call: (BS, D) -> padded logits (BS, 128)."""
    vmem = pl.BlockSpec(memory_space=pltpu.MemorySpace.VMEM)
    return pl.pallas_call(
        lm_kernel,
        out_shape=jax.ShapeDtypeStruct((BS, LOGIT_PAD), jnp.float32),
        in_specs=[vmem, vmem, vmem, vmem],
        out_specs=vmem,
    )(x2d, wa, wb, bias)


def init_params(key):
    keys = iter(jax.random.split(key, 2 + NUM_LAYERS * 8 + 2))
    sc = 0.02

    tok_emb = jax.random.normal(next(keys), (VOCAB, D_MODEL), jnp.float32) * sc
    pos_emb = jax.random.normal(next(keys), (MAX_LEN, D_MODEL), jnp.float32) * sc

    layers = []
    for _ in range(NUM_LAYERS):
        wqkv = jax.random.normal(next(keys), (D_MODEL, 3 * D_MODEL), jnp.float32) * sc
        bqkv = jax.random.normal(next(keys), (1, 3 * D_MODEL), jnp.float32) * sc
        wo = jax.random.normal(next(keys), (D_MODEL, D_MODEL), jnp.float32) * sc
        bo = jax.random.normal(next(keys), (1, D_MODEL), jnp.float32) * sc
        ln1w = jnp.ones((1, D_MODEL), jnp.float32)
        ln1b = jnp.zeros((1, D_MODEL), jnp.float32)
        w1 = jax.random.normal(next(keys), (D_MODEL, DFF), jnp.float32) * sc
        b1 = jax.random.normal(next(keys), (1, DFF), jnp.float32) * sc
        w2 = jax.random.normal(next(keys), (DFF, D_MODEL), jnp.float32) * sc
        b2 = jax.random.normal(next(keys), (1, D_MODEL), jnp.float32) * sc
        ln2w = jnp.ones((1, D_MODEL), jnp.float32)
        ln2b = jnp.zeros((1, D_MODEL), jnp.float32)
        layers.append((wqkv, bqkv, wo, bo, ln1w, ln1b,
                       w1, b1, w2, b2, ln2w, ln2b))

    w_fc = jax.random.normal(next(keys), (D_MODEL, VOCAB), jnp.float32) * sc
    b_fc = jax.random.normal(next(keys), (1, VOCAB), jnp.float32) * sc
    return tok_emb, pos_emb, layers, w_fc, b_fc


def pack_params(layers, w_fc, b_fc):
    """One-time host-side packing: 3 contiguous slabs (done OUTSIDE the jitted
    forward).  Matmul weights -> bf16; biases/LN -> f32 (rows, 384) slab."""
    scale = 1.0 / (HEAD_DIM ** 0.5)

    def pad_row(v):                                   # (1, n) -> (1, BIAS_W)
        return jnp.pad(v, ((0, 0), (0, BIAS_W - v.shape[1])))

    wa_cols, wb_rows, bias_rows = [], [], []
    for (wqkv, bqkv, wo, bo, ln1w, ln1b, w1, b1, w2, b2, ln2w, ln2b) in layers:
        # fold attention scale into Q columns of wqkv and the Q bias
        wqkv = wqkv.at[:, :D_MODEL].multiply(scale)
        bqkv = bqkv.at[:, :D_MODEL].multiply(scale)
        wa_cols += [wqkv, wo, w1]
        wb_rows.append(w2)
        bias_rows += [pad_row(bqkv), pad_row(bo), pad_row(ln1w), pad_row(ln1b),
                      pad_row(b1), pad_row(b2), pad_row(ln2w), pad_row(ln2b)]

    w_fc_pad = jnp.pad(w_fc, ((0, 0), (0, LOGIT_PAD - VOCAB)))
    wa_cols.append(w_fc_pad)
    bias_rows.append(pad_row(b_fc))

    wa = jnp.concatenate(wa_cols, axis=1).astype(jnp.bfloat16)     # (128, 1664)
    wb = jnp.concatenate(wb_rows, axis=0).astype(jnp.bfloat16)     # (512, 128)
    bias = jnp.concatenate(bias_rows, axis=0)                      # (17, 384) f32
    bias = jnp.pad(bias, ((0, BIAS_ROWS_PAD - bias.shape[0]), (0, 0)))
    return wa, wb, bias


@jax.jit
def forward(tokens, tok_emb, pos_emb, wa, wb, bias):
    # embedding + positional embedding (gather = glue, stays in plain JAX)
    positions = jnp.arange(tokens.shape[1])
    x = tok_emb[tokens] + pos_emb[positions][None, :, :]      # (B, S, D)
    x2d = x.reshape(BS, D_MODEL)
    logits_pad = lm_pallas(x2d, wa, wb, bias)                 # (B*S, 128)
    return logits_pad[:, :VOCAB].reshape(B, S, VOCAB)


if __name__ == "__main__":
    key = jax.random.PRNGKey(0)
    pkey, dkey = jax.random.split(key)
    tok_emb, pos_emb, layers, w_fc, b_fc = init_params(pkey)

    # one-time weight packing / bf16 cast (hoisted out of the per-step path)
    wa, wb, bias = pack_params(layers, w_fc, b_fc)

    tokens = jax.random.randint(dkey, (B, S), 0, VOCAB, dtype=jnp.int32)

    logits = forward(tokens, tok_emb, pos_emb, wa, wb, bias)
    jax.block_until_ready(logits)
    assert logits.shape == (B, S, VOCAB) and logits.dtype == jnp.float32
    assert bool(jnp.all(jnp.isfinite(logits)))
    print("KERNEL_OK")
</pallas_src>

<mosaic_0001>
module attributes {stable_mosaic.version = 11 : i64} {
  func.func @lm_kernel(%arg0: memref<16x128xf32, #tpu.memory_space<vmem>>, %arg1: memref<128x1664xbf16, #tpu.memory_space<vmem>>, %arg2: memref<512x128xbf16, #tpu.memory_space<vmem>>, %arg3: memref<24x384xf32, #tpu.memory_space<vmem>>, %arg4: memref<16x128xf32, #tpu.memory_space<vmem>>) attributes {dimension_semantics = [], scalar_prefetch = 0 : i64, scratch_operands = 0 : i64, tpu.core_type = #tpu.core_type<tc>} {
    %c0 = arith.constant 0 : index
    %c0_0 = arith.constant 0 : index
    %0 = vector.load %arg0[%c0, %c0_0] : memref<16x128xf32, #tpu.memory_space<vmem>>, vector<16x128xf32>
    %1 = arith.truncf %0 : vector<16x128xf32> to vector<16x128xbf16>
    %c0_1 = arith.constant 0 : index
    %c0_2 = arith.constant 0 : index
    %2 = vector.load %arg1[%c0_1, %c0_2] : memref<128x1664xbf16, #tpu.memory_space<vmem>>, vector<128x384xbf16>
    %cst = arith.constant dense<0.000000e+00> : vector<16x384xf32>
    %3 = tpu.matmul %1, %2, %cst {dimension_numbers = #tpu.dot_dimension_numbers<[1], [0], [0], [1], [0, 0, 1, 1], [], []>} : vector<16x128xbf16>, vector<128x384xbf16>, vector<16x384xf32> -> vector<16x384xf32>
    %c0_3 = arith.constant 0 : index
    %c0_4 = arith.constant 0 : index
    %4 = vector.load %arg3[%c0_3, %c0_4] : memref<24x384xf32, #tpu.memory_space<vmem>>, vector<1x384xf32>
    %5 = vector.broadcast %4 : vector<1x384xf32> to vector<16x384xf32>
    %6 = arith.addf %3, %5 : vector<16x384xf32>
    %7 = vector.extract_strided_slice %6 {offsets = [0, 0], sizes = [16, 128], strides = [1, 1]} : vector<16x384xf32> to vector<16x128xf32>
    %8 = vector.shape_cast %7 : vector<16x128xf32> to vector<2x8x128xf32>
    %9 = vector.extract_strided_slice %6 {offsets = [0, 128], sizes = [16, 128], strides = [1, 1]} : vector<16x384xf32> to vector<16x128xf32>
    %10 = vector.shape_cast %9 : vector<16x128xf32> to vector<2x8x128xf32>
    %11 = vector.extract_strided_slice %6 {offsets = [0, 256], sizes = [16, 128], strides = [1, 1]} : vector<16x384xf32> to vector<16x128xf32>
    %12 = vector.shape_cast %11 : vector<16x128xf32> to vector<2x8x128xf32>
    %13 = vector.extract_strided_slice %8 {offsets = [0, 0, 0], sizes = [2, 8, 32], strides = [1, 1, 1]} : vector<2x8x128xf32> to vector<2x8x32xf32>
    %14 = vector.extract_strided_slice %10 {offsets = [0, 0, 0], sizes = [2, 8, 32], strides = [1, 1, 1]} : vector<2x8x128xf32> to vector<2x8x32xf32>
    %15 = vector.extract_strided_slice %12 {offsets = [0, 0, 0], sizes = [2, 8, 32], strides = [1, 1, 1]} : vector<2x8x128xf32> to vector<2x8x32xf32>
    "tpu.trace_start"() <{level = 10 : i32, message = "bqd,bkd->bqk"}> : () -> ()
    %cst_5 = arith.constant dense<0.000000e+00> : vector<2x8x8xf32>
    %16 = tpu.matmul %13, %14, %cst_5 {dimension_numbers = #tpu.dot_dimension_numbers<[2], [2], [1], [1], [0, 0, 0, 1, 1, 1], [0], [0]>} : vector<2x8x32xf32>, vector<2x8x32xf32>, vector<2x8x8xf32> -> vector<2x8x8xf32>
    "tpu.trace_stop"() : () -> ()
    %cst_6 = arith.constant dense<0xFF800000> : vector<2x8xf32>
    %17 = vector.multi_reduction <maximumf>, %16, %cst_6 [2] : vector<2x8x8xf32> to vector<2x8xf32>
    %18 = vector.shape_cast %17 : vector<2x8xf32> to vector<2x8x1xf32>
    %19 = vector.broadcast %18 : vector<2x8x1xf32> to vector<2x8x8xf32>
    %20 = arith.subf %16, %19 : vector<2x8x8xf32>
    %21 = math.exp %20 : vector<2x8x8xf32>
    %cst_7 = arith.constant dense<0.000000e+00> : vector<2x8xf32>
    %22 = vector.multi_reduction <add>, %21, %cst_7 [2] : vector<2x8x8xf32> to vector<2x8xf32>
    %23 = vector.shape_cast %22 : vector<2x8xf32> to vector<2x8x1xf32>
    %24 = tpu.reciprocal %23 {approx = true} : vector<2x8x1xf32> -> vector<2x8x1xf32>
    %25 = vector.broadcast %24 : vector<2x8x1xf32> to vector<2x8x8xf32>
    %26 = arith.mulf %21, %25 : vector<2x8x8xf32>
    "tpu.trace_start"() <{level = 10 : i32, message = "bqk,bkd->bqd"}> : () -> ()
    %cst_8 = arith.constant dense<0.000000e+00> : vector<2x8x32xf32>
    %27 = tpu.matmul %26, %15, %cst_8 {dimension_numbers = #tpu.dot_dimension_numbers<[2], [1], [1], [2], [0, 0, 0, 1, 1, 2], [0], [0]>} : vector<2x8x8xf32>, vector<2x8x32xf32>, vector<2x8x32xf32> -> vector<2x8x32xf32>
    "tpu.trace_stop"() : () -> ()
    %28 = vector.shape_cast %27 : vector<2x8x32xf32> to vector<16x32xf32>
    %29 = arith.truncf %28 : vector<16x32xf32> to vector<16x32xbf16>
    %c0_9 = arith.constant 0 : index
    %c384 = arith.constant 384 : index
    %30 = vector.load %arg1[%c0_9, %c384] : memref<128x1664xbf16, #tpu.memory_space<vmem>>, vector<32x128xbf16>
    %cst_10 = arith.constant dense<0.000000e+00> : vector<16x128xf32>
    %31 = tpu.matmul %29, %30, %cst_10 {dimension_numbers = #tpu.dot_dimension_numbers<[1], [0], [0], [1], [0, 0, 1, 1], [], []>} : vector<16x32xbf16>, vector<32x128xbf16>, vector<16x128xf32> -> vector<16x128xf32>
    %32 = vector.extract_strided_slice %8 {offsets = [0, 0, 32], sizes = [2, 8, 32], strides = [1, 1, 1]} : vector<2x8x128xf32> to vector<2x8x32xf32>
    %33 = vector.extract_strided_slice %10 {offsets = [0, 0, 32], sizes = [2, 8, 32], strides = [1, 1, 1]} : vector<2x8x128xf32> to vector<2x8x32xf32>
    %34 = vector.extract_strided_slice %12 {offsets = [0, 0, 32], sizes = [2, 8, 32], strides = [1, 1, 1]} : vector<2x8x128xf32> to vector<2x8x32xf32>
    "tpu.trace_start"() <{level = 10 : i32, message = "bqd,bkd->bqk"}> : () -> ()
    %cst_11 = arith.constant dense<0.000000e+00> : vector<2x8x8xf32>
    %35 = tpu.matmul %32, %33, %cst_11 {dimension_numbers = #tpu.dot_dimension_numbers<[2], [2], [1], [1], [0, 0, 0, 1, 1, 1], [0], [0]>} : vector<2x8x32xf32>, vector<2x8x32xf32>, vector<2x8x8xf32> -> vector<2x8x8xf32>
    "tpu.trace_stop"() : () -> ()
    %cst_12 = arith.constant dense<0xFF800000> : vector<2x8xf32>
    %36 = vector.multi_reduction <maximumf>, %35, %cst_12 [2] : vector<2x8x8xf32> to vector<2x8xf32>
    %37 = vector.shape_cast %36 : vector<2x8xf32> to vector<2x8x1xf32>
    %38 = vector.broadcast %37 : vector<2x8x1xf32> to vector<2x8x8xf32>
    %39 = arith.subf %35, %38 : vector<2x8x8xf32>
    %40 = math.exp %39 : vector<2x8x8xf32>
    %cst_13 = arith.constant dense<0.000000e+00> : vector<2x8xf32>
    %41 = vector.multi_reduction <add>, %40, %cst_13 [2] : vector<2x8x8xf32> to vector<2x8xf32>
    %42 = vector.shape_cast %41 : vector<2x8xf32> to vector<2x8x1xf32>
    %43 = tpu.reciprocal %42 {approx = true} : vector<2x8x1xf32> -> vector<2x8x1xf32>
    %44 = vector.broadcast %43 : vector<2x8x1xf32> to vector<2x8x8xf32>
    %45 = arith.mulf %40, %44 : vector<2x8x8xf32>
    "tpu.trace_start"() <{level = 10 : i32, message = "bqk,bkd->bqd"}> : () -> ()
    %cst_14 = arith.constant dense<0.000000e+00> : vector<2x8x32xf32>
    %46 = tpu.matmul %45, %34, %cst_14 {dimension_numbers = #tpu.dot_dimension_numbers<[2], [1], [1], [2], [0, 0, 0, 1, 1, 2], [0], [0]>} : vector<2x8x8xf32>, vector<2x8x32xf32>, vector<2x8x32xf32> -> vector<2x8x32xf32>
    "tpu.trace_stop"() : () -> ()
    %47 = vector.shape_cast %46 : vector<2x8x32xf32> to vector<16x32xf32>
    %48 = arith.truncf %47 : vector<16x32xf32> to vector<16x32xbf16>
    %c32 = arith.constant 32 : index
    %c384_15 = arith.constant 384 : index
    %49 = vector.load %arg1[%c32, %c384_15] : memref<128x1664xbf16, #tpu.memory_space<vmem>>, vector<32x128xbf16>
    %cst_16 = arith.constant dense<0.000000e+00> : vector<16x128xf32>
    %50 = tpu.matmul %48, %49, %cst_16 {dimension_numbers = #tpu.dot_dimension_numbers<[1], [0], [0], [1], [0, 0, 1, 1], [], []>} : vector<16x32xbf16>, vector<32x128xbf16>, vector<16x128xf32> -> vector<16x128xf32>
    %51 = arith.addf %31, %50 : vector<16x128xf32>
    %52 = vector.extract_strided_slice %8 {offsets = [0, 0, 64], sizes = [2, 8, 32], strides = [1, 1, 1]} : vector<2x8x128xf32> to vector<2x8x32xf32>
    %53 = vector.extract_strided_slice %10 {offsets = [0, 0, 64], sizes = [2, 8, 32], strides = [1, 1, 1]} : vector<2x8x128xf32> to vector<2x8x32xf32>
    %54 = vector.extract_strided_slice %12 {offsets = [0, 0, 64], sizes = [2, 8, 32], strides = [1, 1, 1]} : vector<2x8x128xf32> to vector<2x8x32xf32>
    "tpu.trace_start"() <{level = 10 : i32, message = "bqd,bkd->bqk"}> : () -> ()
    %cst_17 = arith.constant dense<0.000000e+00> : vector<2x8x8xf32>
    %55 = tpu.matmul %52, %53, %cst_17 {dimension_numbers = #tpu.dot_dimension_numbers<[2], [2], [1], [1], [0, 0, 0, 1, 1, 1], [0], [0]>} : vector<2x8x32xf32>, vector<2x8x32xf32>, vector<2x8x8xf32> -> vector<2x8x8xf32>
    "tpu.trace_stop"() : () -> ()
    %cst_18 = arith.constant dense<0xFF800000> : vector<2x8xf32>
    %56 = vector.multi_reduction <maximumf>, %55, %cst_18 [2] : vector<2x8x8xf32> to vector<2x8xf32>
    %57 = vector.shape_cast %56 : vector<2x8xf32> to vector<2x8x1xf32>
    %58 = vector.broadcast %57 : vector<2x8x1xf32> to vector<2x8x8xf32>
    %59 = arith.subf %55, %58 : vector<2x8x8xf32>
    %60 = math.exp %59 : vector<2x8x8xf32>
    %cst_19 = arith.constant dense<0.000000e+00> : vector<2x8xf32>
    %61 = vector.multi_reduction <add>, %60, %cst_19 [2] : vector<2x8x8xf32> to vector<2x8xf32>
    %62 = vector.shape_cast %61 : vector<2x8xf32> to vector<2x8x1xf32>
    %63 = tpu.reciprocal %62 {approx = true} : vector<2x8x1xf32> -> vector<2x8x1xf32>
    %64 = vector.broadcast %63 : vector<2x8x1xf32> to vector<2x8x8xf32>
    %65 = arith.mulf %60, %64 : vector<2x8x8xf32>
    "tpu.trace_start"() <{level = 10 : i32, message = "bqk,bkd->bqd"}> : () -> ()
    %cst_20 = arith.constant dense<0.000000e+00> : vector<2x8x32xf32>
    %66 = tpu.matmul %65, %54, %cst_20 {dimension_numbers = #tpu.dot_dimension_numbers<[2], [1], [1], [2], [0, 0, 0, 1, 1, 2], [0], [0]>} : vector<2x8x8xf32>, vector<2x8x32xf32>, vector<2x8x32xf32> -> vector<2x8x32xf32>
    "tpu.trace_stop"() : () -> ()
    %67 = vector.shape_cast %66 : vector<2x8x32xf32> to vector<16x32xf32>
    %68 = arith.truncf %67 : vector<16x32xf32> to vector<16x32xbf16>
    %c64 = arith.constant 64 : index
    %c384_21 = arith.constant 384 : index
    %69 = vector.load %arg1[%c64, %c384_21] : memref<128x1664xbf16, #tpu.memory_space<vmem>>, vector<32x128xbf16>
    %cst_22 = arith.constant dense<0.000000e+00> : vector<16x128xf32>
    %70 = tpu.matmul %68, %69, %cst_22 {dimension_numbers = #tpu.dot_dimension_numbers<[1], [0], [0], [1], [0, 0, 1, 1], [], []>} : vector<16x32xbf16>, vector<32x128xbf16>, vector<16x128xf32> -> vector<16x128xf32>
    %71 = arith.addf %51, %70 : vector<16x128xf32>
    %72 = vector.extract_strided_slice %8 {offsets = [0, 0, 96], sizes = [2, 8, 32], strides = [1, 1, 1]} : vector<2x8x128xf32> to vector<2x8x32xf32>
    %73 = vector.extract_strided_slice %10 {offsets = [0, 0, 96], sizes = [2, 8, 32], strides = [1, 1, 1]} : vector<2x8x128xf32> to vector<2x8x32xf32>
    %74 = vector.extract_strided_slice %12 {offsets = [0, 0, 96], sizes = [2, 8, 32], strides = [1, 1, 1]} : vector<2x8x128xf32> to vector<2x8x32xf32>
    "tpu.trace_start"() <{level = 10 : i32, message = "bqd,bkd->bqk"}> : () -> ()
    %cst_23 = arith.constant dense<0.000000e+00> : vector<2x8x8xf32>
    %75 = tpu.matmul %72, %73, %cst_23 {dimension_numbers = #tpu.dot_dimension_numbers<[2], [2], [1], [1], [0, 0, 0, 1, 1, 1], [0], [0]>} : vector<2x8x32xf32>, vector<2x8x32xf32>, vector<2x8x8xf32> -> vector<2x8x8xf32>
    "tpu.trace_stop"() : () -> ()
    %cst_24 = arith.constant dense<0xFF800000> : vector<2x8xf32>
    %76 = vector.multi_reduction <maximumf>, %75, %cst_24 [2] : vector<2x8x8xf32> to vector<2x8xf32>
    %77 = vector.shape_cast %76 : vector<2x8xf32> to vector<2x8x1xf32>
    %78 = vector.broadcast %77 : vector<2x8x1xf32> to vector<2x8x8xf32>
    %79 = arith.subf %75, %78 : vector<2x8x8xf32>
    %80 = math.exp %79 : vector<2x8x8xf32>
    %cst_25 = arith.constant dense<0.000000e+00> : vector<2x8xf32>
    %81 = vector.multi_reduction <add>, %80, %cst_25 [2] : vector<2x8x8xf32> to vector<2x8xf32>
    %82 = vector.shape_cast %81 : vector<2x8xf32> to vector<2x8x1xf32>
    %83 = tpu.reciprocal %82 {approx = true} : vector<2x8x1xf32> -> vector<2x8x1xf32>
    %84 = vector.broadcast %83 : vector<2x8x1xf32> to vector<2x8x8xf32>
    %85 = arith.mulf %80, %84 : vector<2x8x8xf32>
    "tpu.trace_start"() <{level = 10 : i32, message = "bqk,bkd->bqd"}> : () -> ()
    %cst_26 = arith.constant dense<0.000000e+00> : vector<2x8x32xf32>
    %86 = tpu.matmul %85, %74, %cst_26 {dimension_numbers = #tpu.dot_dimension_numbers<[2], [1], [1], [2], [0, 0, 0, 1, 1, 2], [0], [0]>} : vector<2x8x8xf32>, vector<2x8x32xf32>, vector<2x8x32xf32> -> vector<2x8x32xf32>
    "tpu.trace_stop"() : () -> ()
    %87 = vector.shape_cast %86 : vector<2x8x32xf32> to vector<16x32xf32>
    %88 = arith.truncf %87 : vector<16x32xf32> to vector<16x32xbf16>
    %c96 = arith.constant 96 : index
    %c384_27 = arith.constant 384 : index
    %89 = vector.load %arg1[%c96, %c384_27] : memref<128x1664xbf16, #tpu.memory_space<vmem>>, vector<32x128xbf16>
    %cst_28 = arith.constant dense<0.000000e+00> : vector<16x128xf32>
    %90 = tpu.matmul %88, %89, %cst_28 {dimension_numbers = #tpu.dot_dimension_numbers<[1], [0], [0], [1], [0, 0, 1, 1], [], []>} : vector<16x32xbf16>, vector<32x128xbf16>, vector<16x128xf32> -> vector<16x128xf32>
    %91 = arith.addf %71, %90 : vector<16x128xf32>
    %c1 = arith.constant 1 : index
    %c0_29 = arith.constant 0 : index
    %92 = vector.load %arg3[%c1, %c0_29] : memref<24x384xf32, #tpu.memory_space<vmem>>, vector<1x128xf32>
    %93 = vector.broadcast %92 : vector<1x128xf32> to vector<16x128xf32>
    %94 = arith.addf %91, %93 : vector<16x128xf32>
    %95 = arith.addf %0, %94 : vector<16x128xf32>
    %c2 = arith.constant 2 : index
    %c0_30 = arith.constant 0 : index
    %96 = vector.load %arg3[%c2, %c0_30] : memref<24x384xf32, #tpu.memory_space<vmem>>, vector<1x128xf32>
    %c3 = arith.constant 3 : index
    %c0_31 = arith.constant 0 : index
    %97 = vector.load %arg3[%c3, %c0_31] : memref<24x384xf32, #tpu.memory_space<vmem>>, vector<1x128xf32>
    %cst_32 = arith.constant dense<0.000000e+00> : vector<16xf32>
    %98 = vector.multi_reduction <add>, %95, %cst_32 [1] : vector<16x128xf32> to vector<16xf32>
    %99 = vector.shape_cast %98 : vector<16xf32> to vector<16x1xf32>
    %cst_33 = arith.constant 1.280000e+02 : f32
    %100 = vector.broadcast %cst_33 : f32 to vector<16x1xf32>
    %101 = arith.divf %99, %100 : vector<16x1xf32>
    %102 = vector.broadcast %101 : vector<16x1xf32> to vector<16x128xf32>
    %103 = arith.subf %95, %102 : vector<16x128xf32>
    %104 = arith.mulf %103, %103 : vector<16x128xf32>
    %cst_34 = arith.constant dense<0.000000e+00> : vector<16xf32>
    %105 = vector.multi_reduction <add>, %104, %cst_34 [1] : vector<16x128xf32> to vector<16xf32>
    %106 = vector.shape_cast %105 : vector<16xf32> to vector<16x1xf32>
    %cst_35 = arith.constant 1.280000e+02 : f32
    %107 = vector.broadcast %cst_35 : f32 to vector<16x1xf32>
    %108 = arith.divf %106, %107 : vector<16x1xf32>
    %cst_36 = arith.constant 9.99999974E-6 : f32
    %109 = vector.broadcast %cst_36 : f32 to vector<16x1xf32>
    %110 = arith.addf %108, %109 : vector<16x1xf32>
    %111 = math.rsqrt %110 : vector<16x1xf32>
    %112 = vector.broadcast %111 : vector<16x1xf32> to vector<16x128xf32>
    %113 = arith.mulf %103, %112 : vector<16x128xf32>
    %114 = vector.broadcast %96 : vector<1x128xf32> to vector<16x128xf32>
    %115 = arith.mulf %113, %114 : vector<16x128xf32>
    %116 = vector.broadcast %97 : vector<1x128xf32> to vector<16x128xf32>
    %117 = arith.addf %115, %116 : vector<16x128xf32>
    %118 = arith.truncf %117 : vector<16x128xf32> to vector<16x128xbf16>
    %c0_37 = arith.constant 0 : index
    %c512 = arith.constant 512 : index
    %119 = vector.load %arg1[%c0_37, %c512] : memref<128x1664xbf16, #tpu.memory_space<vmem>>, vector<128x256xbf16>
    %cst_38 = arith.constant dense<0.000000e+00> : vector<16x256xf32>
    %120 = tpu.matmul %118, %119, %cst_38 {dimension_numbers = #tpu.dot_dimension_numbers<[1], [0], [0], [1], [0, 0, 1, 1], [], []>} : vector<16x128xbf16>, vector<128x256xbf16>, vector<16x256xf32> -> vector<16x256xf32>
    %c4 = arith.constant 4 : index
    %c0_39 = arith.constant 0 : index
    %121 = vector.load %arg3[%c4, %c0_39] : memref<24x384xf32, #tpu.memory_space<vmem>>, vector<1x256xf32>
    %122 = vector.broadcast %121 : vector<1x256xf32> to vector<16x256xf32>
    %123 = arith.addf %120, %122 : vector<16x256xf32>
    %cst_40 = arith.constant 0.000000e+00 : f32
    %124 = vector.broadcast %cst_40 : f32 to vector<16x256xf32>
    %125 = arith.maximumf %123, %124 : vector<16x256xf32>
    %126 = arith.truncf %125 : vector<16x256xf32> to vector<16x256xbf16>
    %c0_41 = arith.constant 0 : index
    %c0_42 = arith.constant 0 : index
    %127 = vector.load %arg2[%c0_41, %c0_42] : memref<512x128xbf16, #tpu.memory_space<vmem>>, vector<256x128xbf16>
    %cst_43 = arith.constant dense<0.000000e+00> : vector<16x128xf32>
    %128 = tpu.matmul %126, %127, %cst_43 {dimension_numbers = #tpu.dot_dimension_numbers<[1], [0], [0], [1], [0, 0, 1, 1], [], []>} : vector<16x256xbf16>, vector<256x128xbf16>, vector<16x128xf32> -> vector<16x128xf32>
    %c5 = arith.constant 5 : index
    %c0_44 = arith.constant 0 : index
    %129 = vector.load %arg3[%c5, %c0_44] : memref<24x384xf32, #tpu.memory_space<vmem>>, vector<1x128xf32>
    %130 = vector.broadcast %129 : vector<1x128xf32> to vector<16x128xf32>
    %131 = arith.addf %128, %130 : vector<16x128xf32>
    %132 = arith.addf %117, %131 : vector<16x128xf32>
    %c6 = arith.constant 6 : index
    %c0_45 = arith.constant 0 : index
    %133 = vector.load %arg3[%c6, %c0_45] : memref<24x384xf32, #tpu.memory_space<vmem>>, vector<1x128xf32>
    %c7 = arith.constant 7 : index
    %c0_46 = arith.constant 0 : index
    %134 = vector.load %arg3[%c7, %c0_46] : memref<24x384xf32, #tpu.memory_space<vmem>>, vector<1x128xf32>
    %cst_47 = arith.constant dense<0.000000e+00> : vector<16xf32>
    %135 = vector.multi_reduction <add>, %132, %cst_47 [1] : vector<16x128xf32> to vector<16xf32>
    %136 = vector.shape_cast %135 : vector<16xf32> to vector<16x1xf32>
    %cst_48 = arith.constant 1.280000e+02 : f32
    %137 = vector.broadcast %cst_48 : f32 to vector<16x1xf32>
    %138 = arith.divf %136, %137 : vector<16x1xf32>
    %139 = vector.broadcast %138 : vector<16x1xf32> to vector<16x128xf32>
    %140 = arith.subf %132, %139 : vector<16x128xf32>
    %141 = arith.mulf %140, %140 : vector<16x128xf32>
    %cst_49 = arith.constant dense<0.000000e+00> : vector<16xf32>
    %142 = vector.multi_reduction <add>, %141, %cst_49 [1] : vector<16x128xf32> to vector<16xf32>
    %143 = vector.shape_cast %142 : vector<16xf32> to vector<16x1xf32>
    %cst_50 = arith.constant 1.280000e+02 : f32
    %144 = vector.broadcast %cst_50 : f32 to vector<16x1xf32>
    %145 = arith.divf %143, %144 : vector<16x1xf32>
    %cst_51 = arith.constant 9.99999974E-6 : f32
    %146 = vector.broadcast %cst_51 : f32 to vector<16x1xf32>
    %147 = arith.addf %145, %146 : vector<16x1xf32>
    %148 = math.rsqrt %147 : vector<16x1xf32>
    %149 = vector.broadcast %148 : vector<16x1xf32> to vector<16x128xf32>
    %150 = arith.mulf %140, %149 : vector<16x128xf32>
    %151 = vector.broadcast %133 : vector<1x128xf32> to vector<16x128xf32>
    %152 = arith.mulf %150, %151 : vector<16x128xf32>
    %153 = vector.broadcast %134 : vector<1x128xf32> to vector<16x128xf32>
    %154 = arith.addf %152, %153 : vector<16x128xf32>
    %155 = arith.truncf %154 : vector<16x128xf32> to vector<16x128xbf16>
    %c0_52 = arith.constant 0 : index
    %c768 = arith.constant 768 : index
    %156 = vector.load %arg1[%c0_52, %c768] : memref<128x1664xbf16, #tpu.memory_space<vmem>>, vector<128x384xbf16>
    %cst_53 = arith.constant dense<0.000000e+00> : vector<16x384xf32>
    %157 = tpu.matmul %155, %156, %cst_53 {dimension_numbers = #tpu.dot_dimension_numbers<[1], [0], [0], [1], [0, 0, 1, 1], [], []>} : vector<16x128xbf16>, vector<128x384xbf16>, vector<16x384xf32> -> vector<16x384xf32>
    %c8 = arith.constant 8 : index
    %c0_54 = arith.constant 0 : index
    %158 = vector.load %arg3[%c8, %c0_54] : memref<24x384xf32, #tpu.memory_space<vmem>>, vector<1x384xf32>
    %159 = vector.broadcast %158 : vector<1x384xf32> to vector<16x384xf32>
    %160 = arith.addf %157, %159 : vector<16x384xf32>
    %161 = vector.extract_strided_slice %160 {offsets = [0, 0], sizes = [16, 128], strides = [1, 1]} : vector<16x384xf32> to vector<16x128xf32>
    %162 = vector.shape_cast %161 : vector<16x128xf32> to vector<2x8x128xf32>
    %163 = vector.extract_strided_slice %160 {offsets = [0, 128], sizes = [16, 128], strides = [1, 1]} : vector<16x384xf32> to vector<16x128xf32>
    %164 = vector.shape_cast %163 : vector<16x128xf32> to vector<2x8x128xf32>
    %165 = vector.extract_strided_slice %160 {offsets = [0, 256], sizes = [16, 128], strides = [1, 1]} : vector<16x384xf32> to vector<16x128xf32>
    %166 = vector.shape_cast %165 : vector<16x128xf32> to vector<2x8x128xf32>
    %167 = vector.extract_strided_slice %162 {offsets = [0, 0, 0], sizes = [2, 8, 32], strides = [1, 1, 1]} : vector<2x8x128xf32> to vector<2x8x32xf32>
    %168 = vector.extract_strided_slice %164 {offsets = [0, 0, 0], sizes = [2, 8, 32], strides = [1, 1, 1]} : vector<2x8x128xf32> to vector<2x8x32xf32>
    %169 = vector.extract_strided_slice %166 {offsets = [0, 0, 0], sizes = [2, 8, 32], strides = [1, 1, 1]} : vector<2x8x128xf32> to vector<2x8x32xf32>
    "tpu.trace_start"() <{level = 10 : i32, message = "bqd,bkd->bqk"}> : () -> ()
    %cst_55 = arith.constant dense<0.000000e+00> : vector<2x8x8xf32>
    %170 = tpu.matmul %167, %168, %cst_55 {dimension_numbers = #tpu.dot_dimension_numbers<[2], [2], [1], [1], [0, 0, 0, 1, 1, 1], [0], [0]>} : vector<2x8x32xf32>, vector<2x8x32xf32>, vector<2x8x8xf32> -> vector<2x8x8xf32>
    "tpu.trace_stop"() : () -> ()
    %cst_56 = arith.constant dense<0xFF800000> : vector<2x8xf32>
    %171 = vector.multi_reduction <maximumf>, %170, %cst_56 [2] : vector<2x8x8xf32> to vector<2x8xf32>
    %172 = vector.shape_cast %171 : vector<2x8xf32> to vector<2x8x1xf32>
    %173 = vector.broadcast %172 : vector<2x8x1xf32> to vector<2x8x8xf32>
    %174 = arith.subf %170, %173 : vector<2x8x8xf32>
    %175 = math.exp %174 : vector<2x8x8xf32>
    %cst_57 = arith.constant dense<0.000000e+00> : vector<2x8xf32>
    %176 = vector.multi_reduction <add>, %175, %cst_57 [2] : vector<2x8x8xf32> to vector<2x8xf32>
    %177 = vector.shape_cast %176 : vector<2x8xf32> to vector<2x8x1xf32>
    %178 = tpu.reciprocal %177 {approx = true} : vector<2x8x1xf32> -> vector<2x8x1xf32>
    %179 = vector.broadcast %178 : vector<2x8x1xf32> to vector<2x8x8xf32>
    %180 = arith.mulf %175, %179 : vector<2x8x8xf32>
    "tpu.trace_start"() <{level = 10 : i32, message = "bqk,bkd->bqd"}> : () -> ()
    %cst_58 = arith.constant dense<0.000000e+00> : vector<2x8x32xf32>
    %181 = tpu.matmul %180, %169, %cst_58 {dimension_numbers = #tpu.dot_dimension_numbers<[2], [1], [1], [2], [0, 0, 0, 1, 1, 2], [0], [0]>} : vector<2x8x8xf32>, vector<2x8x32xf32>, vector<2x8x32xf32> -> vector<2x8x32xf32>
    "tpu.trace_stop"() : () -> ()
    %182 = vector.shape_cast %181 : vector<2x8x32xf32> to vector<16x32xf32>
    %183 = arith.truncf %182 : vector<16x32xf32> to vector<16x32xbf16>
    %c0_59 = arith.constant 0 : index
    %c1152 = arith.constant 1152 : index
    %184 = vector.load %arg1[%c0_59, %c1152] : memref<128x1664xbf16, #tpu.memory_space<vmem>>, vector<32x128xbf16>
    %cst_60 = arith.constant dense<0.000000e+00> : vector<16x128xf32>
    %185 = tpu.matmul %183, %184, %cst_60 {dimension_numbers = #tpu.dot_dimension_numbers<[1], [0], [0], [1], [0, 0, 1, 1], [], []>} : vector<16x32xbf16>, vector<32x128xbf16>, vector<16x128xf32> -> vector<16x128xf32>
    %186 = vector.extract_strided_slice %162 {offsets = [0, 0, 32], sizes = [2, 8, 32], strides = [1, 1, 1]} : vector<2x8x128xf32> to vector<2x8x32xf32>
    %187 = vector.extract_strided_slice %164 {offsets = [0, 0, 32], sizes = [2, 8, 32], strides = [1, 1, 1]} : vector<2x8x128xf32> to vector<2x8x32xf32>
    %188 = vector.extract_strided_slice %166 {offsets = [0, 0, 32], sizes = [2, 8, 32], strides = [1, 1, 1]} : vector<2x8x128xf32> to vector<2x8x32xf32>
    "tpu.trace_start"() <{level = 10 : i32, message = "bqd,bkd->bqk"}> : () -> ()
    %cst_61 = arith.constant dense<0.000000e+00> : vector<2x8x8xf32>
    %189 = tpu.matmul %186, %187, %cst_61 {dimension_numbers = #tpu.dot_dimension_numbers<[2], [2], [1], [1], [0, 0, 0, 1, 1, 1], [0], [0]>} : vector<2x8x32xf32>, vector<2x8x32xf32>, vector<2x8x8xf32> -> vector<2x8x8xf32>
    "tpu.trace_stop"() : () -> ()
    %cst_62 = arith.constant dense<0xFF800000> : vector<2x8xf32>
    %190 = vector.multi_reduction <maximumf>, %189, %cst_62 [2] : vector<2x8x8xf32> to vector<2x8xf32>
    %191 = vector.shape_cast %190 : vector<2x8xf32> to vector<2x8x1xf32>
    %192 = vector.broadcast %191 : vector<2x8x1xf32> to vector<2x8x8xf32>
    %193 = arith.subf %189, %192 : vector<2x8x8xf32>
    %194 = math.exp %193 : vector<2x8x8xf32>
    %cst_63 = arith.constant dense<0.000000e+00> : vector<2x8xf32>
    %195 = vector.multi_reduction <add>, %194, %cst_63 [2] : vector<2x8x8xf32> to vector<2x8xf32>
    %196 = vector.shape_cast %195 : vector<2x8xf32> to vector<2x8x1xf32>
    %197 = tpu.reciprocal %196 {approx = true} : vector<2x8x1xf32> -> vector<2x8x1xf32>
    %198 = vector.broadcast %197 : vector<2x8x1xf32> to vector<2x8x8xf32>
    %199 = arith.mulf %194, %198 : vector<2x8x8xf32>
    "tpu.trace_start"() <{level = 10 : i32, message = "bqk,bkd->bqd"}> : () -> ()
    %cst_64 = arith.constant dense<0.000000e+00> : vector<2x8x32xf32>
    %200 = tpu.matmul %199, %188, %cst_64 {dimension_numbers = #tpu.dot_dimension_numbers<[2], [1], [1], [2], [0, 0, 0, 1, 1, 2], [0], [0]>} : vector<2x8x8xf32>, vector<2x8x32xf32>, vector<2x8x32xf32> -> vector<2x8x32xf32>
    "tpu.trace_stop"() : () -> ()
    %201 = vector.shape_cast %200 : vector<2x8x32xf32> to vector<16x32xf32>
    %202 = arith.truncf %201 : vector<16x32xf32> to vector<16x32xbf16>
    %c32_65 = arith.constant 32 : index
    %c1152_66 = arith.constant 1152 : index
    %203 = vector.load %arg1[%c32_65, %c1152_66] : memref<128x1664xbf16, #tpu.memory_space<vmem>>, vector<32x128xbf16>
    %cst_67 = arith.constant dense<0.000000e+00> : vector<16x128xf32>
    %204 = tpu.matmul %202, %203, %cst_67 {dimension_numbers = #tpu.dot_dimension_numbers<[1], [0], [0], [1], [0, 0, 1, 1], [], []>} : vector<16x32xbf16>, vector<32x128xbf16>, vector<16x128xf32> -> vector<16x128xf32>
    %205 = arith.addf %185, %204 : vector<16x128xf32>
    %206 = vector.extract_strided_slice %162 {offsets = [0, 0, 64], sizes = [2, 8, 32], strides = [1, 1, 1]} : vector<2x8x128xf32> to vector<2x8x32xf32>
    %207 = vector.extract_strided_slice %164 {offsets = [0, 0, 64], sizes = [2, 8, 32], strides = [1, 1, 1]} : vector<2x8x128xf32> to vector<2x8x32xf32>
    %208 = vector.extract_strided_slice %166 {offsets = [0, 0, 64], sizes = [2, 8, 32], strides = [1, 1, 1]} : vector<2x8x128xf32> to vector<2x8x32xf32>
    "tpu.trace_start"() <{level = 10 : i32, message = "bqd,bkd->bqk"}> : () -> ()
    %cst_68 = arith.constant dense<0.000000e+00> : vector<2x8x8xf32>
    %209 = tpu.matmul %206, %207, %cst_68 {dimension_numbers = #tpu.dot_dimension_numbers<[2], [2], [1], [1], [0, 0, 0, 1, 1, 1], [0], [0]>} : vector<2x8x32xf32>, vector<2x8x32xf32>, vector<2x8x8xf32> -> vector<2x8x8xf32>
    "tpu.trace_stop"() : () -> ()
    %cst_69 = arith.constant dense<0xFF800000> : vector<2x8xf32>
    %210 = vector.multi_reduction <maximumf>, %209, %cst_69 [2] : vector<2x8x8xf32> to vector<2x8xf32>
    %211 = vector.shape_cast %210 : vector<2x8xf32> to vector<2x8x1xf32>
    %212 = vector.broadcast %211 : vector<2x8x1xf32> to vector<2x8x8xf32>
    %213 = arith.subf %209, %212 : vector<2x8x8xf32>
    %214 = math.exp %213 : vector<2x8x8xf32>
    %cst_70 = arith.constant dense<0.000000e+00> : vector<2x8xf32>
    %215 = vector.multi_reduction <add>, %214, %cst_70 [2] : vector<2x8x8xf32> to vector<2x8xf32>
    %216 = vector.shape_cast %215 : vector<2x8xf32> to vector<2x8x1xf32>
    %217 = tpu.reciprocal %216 {approx = true} : vector<2x8x1xf32> -> vector<2x8x1xf32>
    %218 = vector.broadcast %217 : vector<2x8x1xf32> to vector<2x8x8xf32>
    %219 = arith.mulf %214, %218 : vector<2x8x8xf32>
    "tpu.trace_start"() <{level = 10 : i32, message = "bqk,bkd->bqd"}> : () -> ()
    %cst_71 = arith.constant dense<0.000000e+00> : vector<2x8x32xf32>
    %220 = tpu.matmul %219, %208, %cst_71 {dimension_numbers = #tpu.dot_dimension_numbers<[2], [1], [1], [2], [0, 0, 0, 1, 1, 2], [0], [0]>} : vector<2x8x8xf32>, vector<2x8x32xf32>, vector<2x8x32xf32> -> vector<2x8x32xf32>
    "tpu.trace_stop"() : () -> ()
    %221 = vector.shape_cast %220 : vector<2x8x32xf32> to vector<16x32xf32>
    %222 = arith.truncf %221 : vector<16x32xf32> to vector<16x32xbf16>
    %c64_72 = arith.constant 64 : index
    %c1152_73 = arith.constant 1152 : index
    %223 = vector.load %arg1[%c64_72, %c1152_73] : memref<128x1664xbf16, #tpu.memory_space<vmem>>, vector<32x128xbf16>
    %cst_74 = arith.constant dense<0.000000e+00> : vector<16x128xf32>
    %224 = tpu.matmul %222, %223, %cst_74 {dimension_numbers = #tpu.dot_dimension_numbers<[1], [0], [0], [1], [0, 0, 1, 1], [], []>} : vector<16x32xbf16>, vector<32x128xbf16>, vector<16x128xf32> -> vector<16x128xf32>
    %225 = arith.addf %205, %224 : vector<16x128xf32>
    %226 = vector.extract_strided_slice %162 {offsets = [0, 0, 96], sizes = [2, 8, 32], strides = [1, 1, 1]} : vector<2x8x128xf32> to vector<2x8x32xf32>
    %227 = vector.extract_strided_slice %164 {offsets = [0, 0, 96], sizes = [2, 8, 32], strides = [1, 1, 1]} : vector<2x8x128xf32> to vector<2x8x32xf32>
    %228 = vector.extract_strided_slice %166 {offsets = [0, 0, 96], sizes = [2, 8, 32], strides = [1, 1, 1]} : vector<2x8x128xf32> to vector<2x8x32xf32>
    "tpu.trace_start"() <{level = 10 : i32, message = "bqd,bkd->bqk"}> : () -> ()
    %cst_75 = arith.constant dense<0.000000e+00> : vector<2x8x8xf32>
    %229 = tpu.matmul %226, %227, %cst_75 {dimension_numbers = #tpu.dot_dimension_numbers<[2], [2], [1], [1], [0, 0, 0, 1, 1, 1], [0], [0]>} : vector<2x8x32xf32>, vector<2x8x32xf32>, vector<2x8x8xf32> -> vector<2x8x8xf32>
    "tpu.trace_stop"() : () -> ()
    %cst_76 = arith.constant dense<0xFF800000> : vector<2x8xf32>
    %230 = vector.multi_reduction <maximumf>, %229, %cst_76 [2] : vector<2x8x8xf32> to vector<2x8xf32>
    %231 = vector.shape_cast %230 : vector<2x8xf32> to vector<2x8x1xf32>
    %232 = vector.broadcast %231 : vector<2x8x1xf32> to vector<2x8x8xf32>
    %233 = arith.subf %229, %232 : vector<2x8x8xf32>
    %234 = math.exp %233 : vector<2x8x8xf32>
    %cst_77 = arith.constant dense<0.000000e+00> : vector<2x8xf32>
    %235 = vector.multi_reduction <add>, %234, %cst_77 [2] : vector<2x8x8xf32> to vector<2x8xf32>
    %236 = vector.shape_cast %235 : vector<2x8xf32> to vector<2x8x1xf32>
    %237 = tpu.reciprocal %236 {approx = true} : vector<2x8x1xf32> -> vector<2x8x1xf32>
    %238 = vector.broadcast %237 : vector<2x8x1xf32> to vector<2x8x8xf32>
    %239 = arith.mulf %234, %238 : vector<2x8x8xf32>
    "tpu.trace_start"() <{level = 10 : i32, message = "bqk,bkd->bqd"}> : () -> ()
    %cst_78 = arith.constant dense<0.000000e+00> : vector<2x8x32xf32>
    %240 = tpu.matmul %239, %228, %cst_78 {dimension_numbers = #tpu.dot_dimension_numbers<[2], [1], [1], [2], [0, 0, 0, 1, 1, 2], [0], [0]>} : vector<2x8x8xf32>, vector<2x8x32xf32>, vector<2x8x32xf32> -> vector<2x8x32xf32>
    "tpu.trace_stop"() : () -> ()
    %241 = vector.shape_cast %240 : vector<2x8x32xf32> to vector<16x32xf32>
    %242 = arith.truncf %241 : vector<16x32xf32> to vector<16x32xbf16>
    %c96_79 = arith.constant 96 : index
    %c1152_80 = arith.constant 1152 : index
    %243 = vector.load %arg1[%c96_79, %c1152_80] : memref<128x1664xbf16, #tpu.memory_space<vmem>>, vector<32x128xbf16>
    %cst_81 = arith.constant dense<0.000000e+00> : vector<16x128xf32>
    %244 = tpu.matmul %242, %243, %cst_81 {dimension_numbers = #tpu.dot_dimension_numbers<[1], [0], [0], [1], [0, 0, 1, 1], [], []>} : vector<16x32xbf16>, vector<32x128xbf16>, vector<16x128xf32> -> vector<16x128xf32>
    %245 = arith.addf %225, %244 : vector<16x128xf32>
    %c9 = arith.constant 9 : index
    %c0_82 = arith.constant 0 : index
    %246 = vector.load %arg3[%c9, %c0_82] : memref<24x384xf32, #tpu.memory_space<vmem>>, vector<1x128xf32>
    %247 = vector.broadcast %246 : vector<1x128xf32> to vector<16x128xf32>
    %248 = arith.addf %245, %247 : vector<16x128xf32>
    %249 = arith.addf %154, %248 : vector<16x128xf32>
    %c10 = arith.constant 10 : index
    %c0_83 = arith.constant 0 : index
    %250 = vector.load %arg3[%c10, %c0_83] : memref<24x384xf32, #tpu.memory_space<vmem>>, vector<1x128xf32>
    %c11 = arith.constant 11 : index
    %c0_84 = arith.constant 0 : index
    %251 = vector.load %arg3[%c11, %c0_84] : memref<24x384xf32, #tpu.memory_space<vmem>>, vector<1x128xf32>
    %cst_85 = arith.constant dense<0.000000e+00> : vector<16xf32>
    %252 = vector.multi_reduction <add>, %249, %cst_85 [1] : vector<16x128xf32> to vector<16xf32>
    %253 = vector.shape_cast %252 : vector<16xf32> to vector<16x1xf32>
    %cst_86 = arith.constant 1.280000e+02 : f32
    %254 = vector.broadcast %cst_86 : f32 to vector<16x1xf32>
    %255 = arith.divf %253, %254 : vector<16x1xf32>
    %256 = vector.broadcast %255 : vector<16x1xf32> to vector<16x128xf32>
    %257 = arith.subf %249, %256 : vector<16x128xf32>
    %258 = arith.mulf %257, %257 : vector<16x128xf32>
    %cst_87 = arith.constant dense<0.000000e+00> : vector<16xf32>
    %259 = vector.multi_reduction <add>, %258, %cst_87 [1] : vector<16x128xf32> to vector<16xf32>
    %260 = vector.shape_cast %259 : vector<16xf32> to vector<16x1xf32>
    %cst_88 = arith.constant 1.280000e+02 : f32
    %261 = vector.broadcast %cst_88 : f32 to vector<16x1xf32>
    %262 = arith.divf %260, %261 : vector<16x1xf32>
    %cst_89 = arith.constant 9.99999974E-6 : f32
    %263 = vector.broadcast %cst_89 : f32 to vector<16x1xf32>
    %264 = arith.addf %262, %263 : vector<16x1xf32>
    %265 = math.rsqrt %264 : vector<16x1xf32>
    %266 = vector.broadcast %265 : vector<16x1xf32> to vector<16x128xf32>
    %267 = arith.mulf %257, %266 : vector<16x128xf32>
    %268 = vector.broadcast %250 : vector<1x128xf32> to vector<16x128xf32>
    %269 = arith.mulf %267, %268 : vector<16x128xf32>
    %270 = vector.broadcast %251 : vector<1x128xf32> to vector<16x128xf32>
    %271 = arith.addf %269, %270 : vector<16x128xf32>
    %272 = arith.truncf %271 : vector<16x128xf32> to vector<16x128xbf16>
    %c0_90 = arith.constant 0 : index
    %c1280 = arith.constant 1280 : index
    %273 = vector.load %arg1[%c0_90, %c1280] : memref<128x1664xbf16, #tpu.memory_space<vmem>>, vector<128x256xbf16>
    %cst_91 = arith.constant dense<0.000000e+00> : vector<16x256xf32>
    %274 = tpu.matmul %272, %273, %cst_91 {dimension_numbers = #tpu.dot_dimension_numbers<[1], [0], [0], [1], [0, 0, 1, 1], [], []>} : vector<16x128xbf16>, vector<128x256xbf16>, vector<16x256xf32> -> vector<16x256xf32>
    %c12 = arith.constant 12 : index
    %c0_92 = arith.constant 0 : index
    %275 = vector.load %arg3[%c12, %c0_92] : memref<24x384xf32, #tpu.memory_space<vmem>>, vector<1x256xf32>
    %276 = vector.broadcast %275 : vector<1x256xf32> to vector<16x256xf32>
    %277 = arith.addf %274, %276 : vector<16x256xf32>
    %cst_93 = arith.constant 0.000000e+00 : f32
    %278 = vector.broadcast %cst_93 : f32 to vector<16x256xf32>
    %279 = arith.maximumf %277, %278 : vector<16x256xf32>
    %280 = arith.truncf %279 : vector<16x256xf32> to vector<16x256xbf16>
    %c256 = arith.constant 256 : index
    %c0_94 = arith.constant 0 : index
    %281 = vector.load %arg2[%c256, %c0_94] : memref<512x128xbf16, #tpu.memory_space<vmem>>, vector<256x128xbf16>
    %cst_95 = arith.constant dense<0.000000e+00> : vector<16x128xf32>
    %282 = tpu.matmul %280, %281, %cst_95 {dimension_numbers = #tpu.dot_dimension_numbers<[1], [0], [0], [1], [0, 0, 1, 1], [], []>} : vector<16x256xbf16>, vector<256x128xbf16>, vector<16x128xf32> -> vector<16x128xf32>
    %c13 = arith.constant 13 : index
    %c0_96 = arith.constant 0 : index
    %283 = vector.load %arg3[%c13, %c0_96] : memref<24x384xf32, #tpu.memory_space<vmem>>, vector<1x128xf32>
    %284 = vector.broadcast %283 : vector<1x128xf32> to vector<16x128xf32>
    %285 = arith.addf %282, %284 : vector<16x128xf32>
    %286 = arith.addf %271, %285 : vector<16x128xf32>
    %c14 = arith.constant 14 : index
    %c0_97 = arith.constant 0 : index
    %287 = vector.load %arg3[%c14, %c0_97] : memref<24x384xf32, #tpu.memory_space<vmem>>, vector<1x128xf32>
    %c15 = arith.constant 15 : index
    %c0_98 = arith.constant 0 : index
    %288 = vector.load %arg3[%c15, %c0_98] : memref<24x384xf32, #tpu.memory_space<vmem>>, vector<1x128xf32>
    %cst_99 = arith.constant dense<0.000000e+00> : vector<16xf32>
    %289 = vector.multi_reduction <add>, %286, %cst_99 [1] : vector<16x128xf32> to vector<16xf32>
    %290 = vector.shape_cast %289 : vector<16xf32> to vector<16x1xf32>
    %cst_100 = arith.constant 1.280000e+02 : f32
    %291 = vector.broadcast %cst_100 : f32 to vector<16x1xf32>
    %292 = arith.divf %290, %291 : vector<16x1xf32>
    %293 = vector.broadcast %292 : vector<16x1xf32> to vector<16x128xf32>
    %294 = arith.subf %286, %293 : vector<16x128xf32>
    %295 = arith.mulf %294, %294 : vector<16x128xf32>
    %cst_101 = arith.constant dense<0.000000e+00> : vector<16xf32>
    %296 = vector.multi_reduction <add>, %295, %cst_101 [1] : vector<16x128xf32> to vector<16xf32>
    %297 = vector.shape_cast %296 : vector<16xf32> to vector<16x1xf32>
    %cst_102 = arith.constant 1.280000e+02 : f32
    %298 = vector.broadcast %cst_102 : f32 to vector<16x1xf32>
    %299 = arith.divf %297, %298 : vector<16x1xf32>
    %cst_103 = arith.constant 9.99999974E-6 : f32
    %300 = vector.broadcast %cst_103 : f32 to vector<16x1xf32>
    %301 = arith.addf %299, %300 : vector<16x1xf32>
    %302 = math.rsqrt %301 : vector<16x1xf32>
    %303 = vector.broadcast %302 : vector<16x1xf32> to vector<16x128xf32>
    %304 = arith.mulf %294, %303 : vector<16x128xf32>
    %305 = vector.broadcast %287 : vector<1x128xf32> to vector<16x128xf32>
    %306 = arith.mulf %304, %305 : vector<16x128xf32>
    %307 = vector.broadcast %288 : vector<1x128xf32> to vector<16x128xf32>
    %308 = arith.addf %306, %307 : vector<16x128xf32>
    %309 = arith.truncf %308 : vector<16x128xf32> to vector<16x128xbf16>
    %c0_104 = arith.constant 0 : index
    %c1536 = arith.constant 1536 : index
    %310 = vector.load %arg1[%c0_104, %c1536] : memref<128x1664xbf16, #tpu.memory_space<vmem>>, vector<128x128xbf16>
    %cst_105 = arith.constant dense<0.000000e+00> : vector<16x128xf32>
    %311 = tpu.matmul %309, %310, %cst_105 {dimension_numbers = #tpu.dot_dimension_numbers<[1], [0], [0], [1], [0, 0, 1, 1], [], []>} : vector<16x128xbf16>, vector<128x128xbf16>, vector<16x128xf32> -> vector<16x128xf32>
    %c16 = arith.constant 16 : index
    %c0_106 = arith.constant 0 : index
    %312 = vector.load %arg3[%c16, %c0_106] : memref<24x384xf32, #tpu.memory_space<vmem>>, vector<1x128xf32>
    %313 = vector.broadcast %312 : vector<1x128xf32> to vector<16x128xf32>
    %314 = arith.addf %311, %313 : vector<16x128xf32>
    %c0_107 = arith.constant 0 : index
    %c0_108 = arith.constant 0 : index
    %315 = vector.load %arg4[%c0_107, %c0_108] : memref<16x128xf32, #tpu.memory_space<vmem>>, vector<16x128xf32>
    tpu.vector_store %arg4[%c0_107, %c0_108], %314 {strides = array<i32>} : memref<16x128xf32, #tpu.memory_space<vmem>>, vector<16x128xf32>,
    return
  }
}

</mosaic_0001>

<llo_original>
// kernel: forward.1
$region0: #{forward.1}
  #allocation0 [shape = 'u32[]', space=smem, size = 0x4, offset = 0x4, fixed_abs, tag = 'smem constant byte address 0x4 - core index']
  #allocation1 [shape = 'u32[144,128]{1,0:T(1,128)}', space=vmem, size = 0x12000, scoped, tag = 'internal scratch']
  %s0 = inlined_call_operand.vmem [shape: f32[16,128], index: 0, kind: input, shape index: {}]
  %s1 = inlined_call_operand.hbm [shape: bf16[128,1664], index: 1, kind: input, shape index: {}]
  %s2 = inlined_call_operand.vmem [shape: bf16[512,128], index: 2, kind: input, shape index: {}]
  %s3 = inlined_call_operand.hbm [shape: f32[24,384], index: 3, kind: input, shape index: {}]
  %s4 = inlined_call_operand.vmem [shape: f32[16,128], index: 4, kind: output, shape index: {}]
  %s5 = sld [smem:[#allocation0]]
  $region34: #{forward.1} parent=0
    _
  %s7 = ssub.s32 1, %s5
  %s8 = scalar_select 0, %s7, %s5
  $region1: #{forward.1} parent=0
    #allocation2 [shape = 'u8[425984]{0}', space=vmem, size = 0x68000, scoped, tag = 'input window, operand 1, single buffered']
    #allocation3 [shape = 's32[1]{0}', space=sflag, size = 0x4, scoped, tag = 'scoped memory for forward.1']
    #allocation4 [shape = 'u8[36864]{0}', space=vmem, size = 0x9000, scoped, tag = 'input window, operand 3, single buffered']
    #allocation5 [shape = 's32[1]{0}', space=sflag, size = 0x4, scoped, tag = 'scoped memory for forward.1']
    %9 = vsyncpa [#allocation3], 0
    %10 = vsyncpa [#allocation5], 0
    // Predicated region
    $region2: #{forward.1} parent=1 // pred_check
      _
    $region3: #{forward.1} parent=1 // pred_check_branch
      %12 = sbr.rel (0) target = $region5
    $region4: #{forward.1} parent=1 // pred_region
      _
    $region5: #{forward.1} parent=1 // pred_fallthru
      _
    // Predicated region
    $region6: #{forward.1} parent=1 // pred_check
      _
    $region7: #{forward.1} parent=1 // pred_check_branch
      %14 = sbr.rel (0) target = $region9
    $region8: #{forward.1} parent=1 // pred_region
      %s16 = ssub.s32 13312, 13312
      %17 = vsyncadd [#allocation3], %s16
      %s18 = sshll.u32 [#allocation2], 4
      %s19 = int_to_ptr.vmem [resolvable:$true] %s18
      %24 = dma.hbm_to_vmem [thread:$0]  %s1, 13312, %s19, [#allocation3], 832, 832, 52
    $region9: #{forward.1} parent=1 // pred_fallthru
      _
    // Predicated region
    $region10: #{forward.1} parent=1 // pred_check
      _
    $region11: #{forward.1} parent=1 // pred_check_branch
      %26 = sbr.rel (0) target = $region13
    $region12: #{forward.1} parent=1 // pred_region
      _
    $region13: #{forward.1} parent=1 // pred_fallthru
      _
    // Predicated region
    $region14: #{forward.1} parent=1 // pred_check
      _
    $region15: #{forward.1} parent=1 // pred_check_branch
      %28 = sbr.rel (0) target = $region17
    $region16: #{forward.1} parent=1 // pred_region
      %s30 = ssub.s32 1152, 1152
      %31 = vsyncadd [#allocation5], %s30
      %s32 = sshll.u32 [#allocation4], 4
      %s33 = int_to_ptr.vmem [resolvable:$true] %s32
      %38 = dma.hbm_to_vmem [thread:$0]  %s3, 1152, %s33, [#allocation5], 384, 384, 24
    $region17: #{forward.1} parent=1 // pred_fallthru
      _
    // Predicated region
    $region18: #{forward.1} parent=1 // pred_check
      _
    $region19: #{forward.1} parent=1 // pred_check_branch
      %40 = sbr.rel (0) target = $region21
    $region20: #{forward.1} parent=1 // pred_region
      %41 = dma.done [#allocation3], 13312
    $region21: #{forward.1} parent=1 // pred_fallthru
      _
    // Predicated region
    $region22: #{forward.1} parent=1 // pred_check
      _
    $region23: #{forward.1} parent=1 // pred_check_branch
      %43 = sbr.rel (0) target = $region25
    $region24: #{forward.1} parent=1 // pred_region
      %44 = dma.done [#allocation5], 1152
    $region25: #{forward.1} parent=1 // pred_fallthru
      _
    %v46 = vld [vmem:[%s0] sm:$0xff]
    %v47 = vld [vmem:[%s0 + $0x8] sm:$0xff]
    %v48 = vpack.c.bf16 %v47, %v46
    %v49 = vld [vmem:[#allocation2] sm:$0xff]
    %v50 = vld [vmem:[#allocation2 + $0x8] sm:$0xf]
    %v51 = vld [vmem:[#allocation2 + $0x34] sm:$0xff]
    %v52 = vld [vmem:[#allocation2 + $0x3c] sm:$0xf]
    %v53 = vld [vmem:[#allocation2 + $0x68] sm:$0xff]
    %v54 = vld [vmem:[#allocation2 + $0x70] sm:$0xf]
    %v55 = vld [vmem:[#allocation2 + $0x9c] sm:$0xff]
    %v56 = vld [vmem:[#allocation2 + $0xa4] sm:$0xf]
    %v57 = vld [vmem:[#allocation2 + $0xd0] sm:$0xff]
    %v58 = vld [vmem:[#allocation2 + $0xd8] sm:$0xf]
    %v59 = vld [vmem:[#allocation2 + $0x104] sm:$0xff]
    %v60 = vld [vmem:[#allocation2 + $0x10c] sm:$0xf]
    %v61 = vld [vmem:[#allocation2 + $0x138] sm:$0xff]
    %v62 = vld [vmem:[#allocation2 + $0x140] sm:$0xf]
    %v63 = vld [vmem:[#allocation2 + $0x16c] sm:$0xff]
    %v64 = vld [vmem:[#allocation2 + $0x174] sm:$0xf]
    %v65 = vld [vmem:[#allocation2 + $0x1a0] sm:$0xff]
    %v66 = vld [vmem:[#allocation2 + $0x1a8] sm:$0xf]
    %v67 = vld [vmem:[#allocation2 + $0x1d4] sm:$0xff]
    %v68 = vld [vmem:[#allocation2 + $0x1dc] sm:$0xf]
    %v69 = vld [vmem:[#allocation2 + $0x208] sm:$0xff]
    %v70 = vld [vmem:[#allocation2 + $0x210] sm:$0xf]
    %v71 = vld [vmem:[#allocation2 + $0x23c] sm:$0xff]
    %v72 = vld [vmem:[#allocation2 + $0x244] sm:$0xf]
    %v73 = vld [vmem:[#allocation2 + $0x270] sm:$0xff]
    %v74 = vld [vmem:[#allocation2 + $0x278] sm:$0xf]
    %v75 = vld [vmem:[#allocation2 + $0x2a4] sm:$0xff]
    %v76 = vld [vmem:[#allocation2 + $0x2ac] sm:$0xf]
    %v77 = vld [vmem:[#allocation2 + $0x2d8] sm:$0xff]
    %v78 = vld [vmem:[#allocation2 + $0x2e0] sm:$0xf]
    %v79 = vld [vmem:[#allocation2 + $0x30c] sm:$0xff]
    %v80 = vld [vmem:[#allocation2 + $0x314] sm:$0xf]
    %v81 = vld [vmem:[#allocation4] ss:$8 sm:$0x7]
    %v83 = vlaneseq
    %v84 = vshrl.u32 %v83, 7
    %v85 = vsub.s32 0, %v84
    %v86 = vrot.slane %v81, %v85
    %v87 = vlaneseq
    %v88 = vshrl.u32 %v87, 7
    %v89 = vsub.s32 1, %v88
    %v90 = vrot.slane %v81, %v89
    %v91 = vlaneseq
    %v92 = vshrl.u32 %v91, 7
    %v93 = vsub.s32 2, %v92
    %v94 = vrot.slane %v81, %v93
    %v130 = vunpack.c.l.b16 %v49
    %v131 = vunpack.c.h.b16 %v49
    %v132 = vunpack.c.l.b16 %v50
    %v133 = vunpack.c.l.b16 %v51
    %v134 = vunpack.c.h.b16 %v51
    %v135 = vunpack.c.l.b16 %v52
    %v136 = vunpack.c.l.b16 %v53
    %v137 = vunpack.c.h.b16 %v53
    %v138 = vunpack.c.l.b16 %v54
    %v139 = vunpack.c.l.b16 %v55
    %v140 = vunpack.c.h.b16 %v55
    %v141 = vunpack.c.l.b16 %v56
    %v142 = vunpack.c.l.b16 %v57
    %v143 = vunpack.c.h.b16 %v57
    %v144 = vunpack.c.l.b16 %v58
    %v145 = vunpack.c.l.b16 %v59
    %v146 = vunpack.c.h.b16 %v59
    %v147 = vunpack.c.l.b16 %v60
    %v148 = vunpack.c.l.b16 %v61
    %v149 = vunpack.c.h.b16 %v61
    %v150 = vunpack.c.l.b16 %v62
    %v151 = vunpack.c.l.b16 %v63
    %v152 = vunpack.c.h.b16 %v63
    %v153 = vunpack.c.l.b16 %v64
    %v154 = vunpack.c.l.b16 %v65
    %v155 = vunpack.c.h.b16 %v65
    %v156 = vunpack.c.l.b16 %v66
    %v157 = vunpack.c.l.b16 %v67
    %v158 = vunpack.c.h.b16 %v67
    %v159 = vunpack.c.l.b16 %v68
    %v160 = vunpack.c.l.b16 %v69
    %v161 = vunpack.c.h.b16 %v69
    %v162 = vunpack.c.l.b16 %v70
    %v163 = vunpack.c.l.b16 %v71
    %v164 = vunpack.c.h.b16 %v71
    %v165 = vunpack.c.l.b16 %v72
    %v166 = vunpack.c.l.b16 %v73
    %v167 = vunpack.c.h.b16 %v73
    %v168 = vunpack.c.l.b16 %v74
    %v169 = vunpack.c.l.b16 %v75
    %v170 = vunpack.c.h.b16 %v75
    %v171 = vunpack.c.l.b16 %v76
    %v172 = vunpack.c.l.b16 %v77
    %v173 = vunpack.c.h.b16 %v77
    %v174 = vunpack.c.l.b16 %v78
    %v175 = vunpack.c.l.b16 %v79
    %v176 = vunpack.c.h.b16 %v79
    %v177 = vunpack.c.l.b16 %v80
    %v178 = vpack.c.b16 %v133, %v130
    %v179 = vpack.c.b16 %v134, %v131
    %v180 = vpack.c.b16 %v135, %v132
    %v181 = vpack.c.b16 %v139, %v136
    %v182 = vpack.c.b16 %v140, %v137
    %v183 = vpack.c.b16 %v141, %v138
    %v184 = vpack.c.b16 %v145, %v142
    %v185 = vpack.c.b16 %v146, %v143
    %v186 = vpack.c.b16 %v147, %v144
    %v187 = vpack.c.b16 %v151, %v148
    %v188 = vpack.c.b16 %v152, %v149
    %v189 = vpack.c.b16 %v153, %v150
    %v190 = vpack.c.b16 %v157, %v154
    %v191 = vpack.c.b16 %v158, %v155
    %v192 = vpack.c.b16 %v159, %v156
    %v193 = vpack.c.b16 %v163, %v160
    %v194 = vpack.c.b16 %v164, %v161
    %v195 = vpack.c.b16 %v165, %v162
    %v196 = vpack.c.b16 %v169, %v166
    %v197 = vpack.c.b16 %v170, %v167
    %v198 = vpack.c.b16 %v171, %v168
    %v199 = vpack.c.b16 %v175, %v172
    %v200 = vpack.c.b16 %v176, %v173
    %v201 = vpack.c.b16 %v177, %v174
    %226 = vmatprep.subr.bf16.mxu0 %v179
    %227 = vmatpush1.bf16.msra.mxu0 %v178
    %228 = vmatprep.subr.bf16.mxu0 %v182
    %229 = vmatpush1.bf16.msra.mxu0 %v181
    %230 = vmatprep.subr.bf16.mxu0 %v185
    %231 = vmatpush1.bf16.msra.mxu0 %v184
    %232 = vmatprep.subr.bf16.mxu0 %v188
    %233 = vmatpush1.bf16.msra.mxu0 %v187
    %234 = vmatprep.subr.bf16.mxu0 %v191
    %235 = vmatpush1.bf16.msra.mxu0 %v190
    %236 = vmatprep.subr.bf16.mxu0 %v194
    %237 = vmatpush1.bf16.msra.mxu0 %v193
    %238 = vmatprep.subr.bf16.mxu0 %v197
    %239 = vmatpush1.bf16.msra.mxu0 %v196
    %240 = vmatprep.subr.bf16.mxu0 %v200
    %241 = vmatpush1.bf16.msra.mxu0 %v199
    %242 = vmatprep.subr.bf16.mxu0 0
    %243 = vmatpush1.bf16.msra.mxu0 0
    %244 = vmatprep.subr.bf16.mxu0 0
    %245 = vmatpush1.bf16.msra.mxu0 0
    %246 = vmatprep.subr.bf16.mxu0 0
    %247 = vmatpush1.bf16.msra.mxu0 0
    %248 = vmatprep.subr.bf16.mxu0 0
    %249 = vmatpush1.bf16.msra.mxu0 0
    %250 = vmatprep.subr.bf16.mxu0 0
    %251 = vmatpush1.bf16.msra.mxu0 0
    %252 = vmatprep.subr.bf16.mxu0 0
    %253 = vmatpush1.bf16.msra.mxu0 0
    %254 = vmatprep.subr.bf16.mxu0 0
    %255 = vmatpush1.bf16.msra.mxu0 0
    %256 = vmatprep.subr.bf16.mxu0 0
    %257 = vmatpush1.bf16.msra.mxu0 0
    %258 = vmatprep.mubr.bf16.mxu0 0
    %259 = vmatmul.mubr.bf16.gmra.mrb[0].mxu0 %v48
    %v260 = vpop.f32.mrb[0].mxu0
    %v261 = vadd.f32 %v86, %v260
    %v262 = vpop.f32.mrb[0].mxu0
    %v263 = vadd.f32 %v90, %v262
    %v264 = vpop.f32.mrb[0].mxu0
    %v265 = vadd.f32 %v86, %v264
    %v266 = vpop.f32.mrb[0].mxu0
    %v267 = vadd.f32 %v90, %v266
    %268 = vdwg.mxu0
    %269 = vmatprep.subr.bf16.mxu0 0
    %270 = vmatpush1.bf16.msra.mxu0 %v180
    %271 = vmatprep.subr.bf16.mxu0 0
    %272 = vmatpush1.bf16.msra.mxu0 %v183
    %273 = vmatprep.subr.bf16.mxu0 0
    %274 = vmatpush1.bf16.msra.mxu0 %v186
    %275 = vmatprep.subr.bf16.mxu0 0
    %276 = vmatpush1.bf16.msra.mxu0 %v189
    %277 = vmatprep.subr.bf16.mxu0 0
    %278 = vmatpush1.bf16.msra.mxu0 %v192
    %279 = vmatprep.subr.bf16.mxu0 0
    %280 = vmatpush1.bf16.msra.mxu0 %v195
    %281 = vmatprep.subr.bf16.mxu0 0
    %282 = vmatpush1.bf16.msra.mxu0 %v198
    %283 = vmatprep.subr.bf16.mxu0 0
    %284 = vmatpush1.bf16.msra.mxu0 %v201
    %285 = vmatprep.subr.bf16.mxu0 0
    %286 = vmatpush1.bf16.msra.mxu0 0
    %287 = vmatprep.subr.bf16.mxu0 0
    %288 = vmatpush1.bf16.msra.mxu0 0
    %289 = vmatprep.subr.bf16.mxu0 0
    %290 = vmatpush1.bf16.msra.mxu0 0
    %291 = vmatprep.subr.bf16.mxu0 0
    %292 = vmatpush1.bf16.msra.mxu0 0
    %293 = vmatprep.subr.bf16.mxu0 0
    %294 = vmatpush1.bf16.msra.mxu0 0
    %295 = vmatprep.subr.bf16.mxu0 0
    %296 = vmatpush1.bf16.msra.mxu0 0
    %297 = vmatprep.subr.bf16.mxu0 0
    %298 = vmatpush1.bf16.msra.mxu0 0
    %299 = vmatprep.subr.bf16.mxu0 0
    %300 = vmatpush1.bf16.msra.mxu0 0
    %301 = vmatprep.mubr.bf16.mxu0 0
    %302 = vmatmul.mubr.bf16.gmra.mrb[0].mxu0 %v48
    %v303 = vpop.f32.mrb[0].mxu0
    %v304 = vadd.f32 %v94, %v303
    %v305 = vpop.f32.mrb[0].mxu0
    %v306 = vpop.f32.mrb[0].mxu0
    %v307 = vadd.f32 %v94, %v306
    %v308 = vpop.f32.mrb[0].mxu0
    %309 = vdwg.mxu0
    %vm310 = vcmask 261120
    %v312 = vsel %vm310, %v261, 0
    %v315 = vsel %vm310, %v263, 0
    %317 = vmatprep.subr.mxu0 0.0
    %318 = vmatpush1.xpose.msra.mxu0 %v315
    %319 = vmatprep.subr.mxu0 0.0
    %320 = vmatpush1.xpose.msra.mxu0 0.0
    %321 = vmatprep.subr.mxu0 0.0
    %322 = vmatpush1.xpose.msra.mxu0 0.0
    %323 = vmatprep.subr.mxu0 0.0
    %324 = vmatpush1.xpose.msra.mxu0 0.0
    %325 = vmatprep.subr.mxu0 0.0
    %326 = vmatpush1.xpose.msra.mxu0 0.0
    %327 = vmatprep.subr.mxu0 0.0
    %328 = vmatpush1.xpose.msra.mxu0 0.0
    %329 = vmatprep.subr.mxu0 0.0
    %330 = vmatpush1.xpose.msra.mxu0 0.0
    %331 = vmatprep.subr.mxu0 0.0
    %332 = vmatpush1.xpose.msra.mxu0 0.0
    %333 = vmatprep.subr.mxu0 0.0
    %334 = vmatpush1.xpose.msra.mxu0 0.0
    %335 = vmatprep.subr.mxu0 0.0
    %336 = vmatpush1.xpose.msra.mxu0 0.0
    %337 = vmatprep.subr.mxu0 0.0
    %338 = vmatpush1.xpose.msra.mxu0 0.0
    %339 = vmatprep.subr.mxu0 0.0
    %340 = vmatpush1.xpose.msra.mxu0 0.0
    %341 = vmatprep.subr.mxu0 0.0
    %342 = vmatpush1.xpose.msra.mxu0 0.0
    %343 = vmatprep.subr.mxu0 0.0
    %344 = vmatpush1.xpose.msra.mxu0 0.0
    %345 = vmatprep.subr.mxu0 0.0
    %346 = vmatpush1.xpose.msra.mxu0 0.0
    %347 = vmatprep.subr.mxu0 0.0
    %348 = vmatpush1.xpose.msra.mxu0 0.0
    %349 = vmatprep.subr.mxu0 0.0
    %350 = vmatpush1.xpose.msra.mxu0 0.0
    %351 = vmatprep.subr.mxu0 0.0
    %352 = vmatpush1.xpose.msra.mxu0 0.0
    %353 = vmatprep.subr.mxu0 0.0
    %354 = vmatpush1.xpose.msra.mxu0 0.0
    %355 = vmatprep.subr.mxu0 0.0
    %356 = vmatpush1.xpose.msra.mxu0 0.0
    %357 = vmatprep.subr.mxu0 0.0
    %358 = vmatpush1.xpose.msra.mxu0 0.0
    %359 = vmatprep.subr.mxu0 0.0
    %360 = vmatpush1.xpose.msra.mxu0 0.0
    %361 = vmatprep.subr.mxu0 0.0
    %362 = vmatpush1.xpose.msra.mxu0 0.0
    %363 = vmatprep.subr.mxu0 0.0
    %364 = vmatpush1.xpose.msra.mxu0 0.0
    %365 = vmatprep.subr.mxu0 0.0
    %366 = vmatpush1.xpose.msra.mxu0 0.0
    %367 = vmatprep.subr.mxu0 0.0
    %368 = vmatpush1.xpose.msra.mxu0 0.0
    %369 = vmatprep.subr.mxu0 0.0
    %370 = vmatpush1.xpose.msra.mxu0 0.0
    %371 = vmatprep.subr.mxu0 0.0
    %372 = vmatpush1.xpose.msra.mxu0 0.0
    %373 = vmatprep.subr.mxu0 0.0
    %374 = vmatpush1.xpose.msra.mxu0 0.0
    %375 = vmatprep.subr.mxu0 0.0
    %376 = vmatpush1.xpose.msra.mxu0 0.0
    %377 = vmatprep.subr.mxu0 0.0
    %378 = vmatpush1.xpose.msra.mxu0 0.0
    %379 = vmatprep.subr.mxu0 0.0
    %380 = vmatpush1.xpose.msra.mxu0 0.0
    %381 = vmatprep.mubr.f32.mxu0 0.0
    %382 = vmatmul.mubr.f32.gmra.mrb[0].mxu0 %v312
    %v383 = vpop.f32.mrb[0].mxu0
    %v384 = vadd.f32 0.0, %v383
    %v385 = vpop.f32.mrb[0].mxu0
    %386 = vdwg.mxu0
    %v388 = vsel %vm310, %v265, 0
    %v391 = vsel %vm310, %v267, 0
    %393 = vmatprep.subr.mxu0 0.0
    %394 = vmatpush1.xpose.msra.mxu0 %v391
    %395 = vmatprep.subr.mxu0 0.0
    %396 = vmatpush1.xpose.msra.mxu0 0.0
    %397 = vmatprep.subr.mxu0 0.0
    %398 = vmatpush1.xpose.msra.mxu0 0.0
    %399 = vmatprep.subr.mxu0 0.0
    %400 = vmatpush1.xpose.msra.mxu0 0.0
    %401 = vmatprep.subr.mxu0 0.0
    %402 = vmatpush1.xpose.msra.mxu0 0.0
    %403 = vmatprep.subr.mxu0 0.0
    %404 = vmatpush1.xpose.msra.mxu0 0.0
    %405 = vmatprep.subr.mxu0 0.0
    %406 = vmatpush1.xpose.msra.mxu0 0.0
    %407 = vmatprep.subr.mxu0 0.0
    %408 = vmatpush1.xpose.msra.mxu0 0.0
    %409 = vmatprep.subr.mxu0 0.0
    %410 = vmatpush1.xpose.msra.mxu0 0.0
    %411 = vmatprep.subr.mxu0 0.0
    %412 = vmatpush1.xpose.msra.mxu0 0.0
    %413 = vmatprep.subr.mxu0 0.0
    %414 = vmatpush1.xpose.msra.mxu0 0.0
    %415 = vmatprep.subr.mxu0 0.0
    %416 = vmatpush1.xpose.msra.mxu0 0.0
    %417 = vmatprep.subr.mxu0 0.0
    %418 = vmatpush1.xpose.msra.mxu0 0.0
    %419 = vmatprep.subr.mxu0 0.0
    %420 = vmatpush1.xpose.msra.mxu0 0.0
    %421 = vmatprep.subr.mxu0 0.0
    %422 = vmatpush1.xpose.msra.mxu0 0.0
    %423 = vmatprep.subr.mxu0 0.0
    %424 = vmatpush1.xpose.msra.mxu0 0.0
    %425 = vmatprep.subr.mxu0 0.0
    %426 = vmatpush1.xpose.msra.mxu0 0.0
    %427 = vmatprep.subr.mxu0 0.0
    %428 = vmatpush1.xpose.msra.mxu0 0.0
    %429 = vmatprep.subr.mxu0 0.0
    %430 = vmatpush1.xpose.msra.mxu0 0.0
    %431 = vmatprep.subr.mxu0 0.0
    %432 = vmatpush1.xpose.msra.mxu0 0.0
    %433 = vmatprep.subr.mxu0 0.0
    %434 = vmatpush1.xpose.msra.mxu0 0.0
    %435 = vmatprep.subr.mxu0 0.0
    %436 = vmatpush1.xpose.msra.mxu0 0.0
    %437 = vmatprep.subr.mxu0 0.0
    %438 = vmatpush1.xpose.msra.mxu0 0.0
    %439 = vmatprep.subr.mxu0 0.0
    %440 = vmatpush1.xpose.msra.mxu0 0.0
    %441 = vmatprep.subr.mxu0 0.0
    %442 = vmatpush1.xpose.msra.mxu0 0.0
    %443 = vmatprep.subr.mxu0 0.0
    %444 = vmatpush1.xpose.msra.mxu0 0.0
    %445 = vmatprep.subr.mxu0 0.0
    %446 = vmatpush1.xpose.msra.mxu0 0.0
    %447 = vmatprep.subr.mxu0 0.0
    %448 = vmatpush1.xpose.msra.mxu0 0.0
    %449 = vmatprep.subr.mxu0 0.0
    %450 = vmatpush1.xpose.msra.mxu0 0.0
    %451 = vmatprep.subr.mxu0 0.0
    %452 = vmatpush1.xpose.msra.mxu0 0.0
    %453 = vmatprep.subr.mxu0 0.0
    %454 = vmatpush1.xpose.msra.mxu0 0.0
    %455 = vmatprep.subr.mxu0 0.0
    %456 = vmatpush1.xpose.msra.mxu0 0.0
    %457 = vmatprep.mubr.f32.mxu0 0.0
    %458 = vmatmul.mubr.f32.gmra.mrb[0].mxu0 %v388
    %v459 = vpop.f32.mrb[0].mxu0
    %v460 = vadd.f32 0.0, %v459
    %v461 = vpop.f32.mrb[0].mxu0
    %462 = vdwg.mxu0
    %vm463 = vcmask 64512
    %v464 = vsel %vm463, %v384, -inf
    %465 = vmax.xlane.f32.xlu0 %v464
    %v466 = vpop.xlane.xlu0 %465
    %v467 = vsel %vm463, %v460, -inf
    %468 = vmax.xlane.f32.xlu0 %v467
    %v469 = vpop.xlane.xlu0 %468
    %v470 = vsub.f32 %v384, %v466
    %v471 = vsub.f32 %v460, %v469
    %v472 = vmul.f32 %v470, 1.442695
    %v473 = vpow.pop %v472
    %v474 = vmul.f32 %v471, 1.442695
    %v475 = vpow.pop %v474
    %v476 = vsel %vm463, %v473, 0.0
    %477 = vadd.xlane.f32.xlu0 %v476
    %v478 = vpop.xlane.xlu0 %477
    %v479 = vsel %vm463, %v475, 0.0
    %480 = vadd.xlane.f32.xlu0 %v479
    %v481 = vpop.xlane.xlu0 %480
    %v482 = vrcp.pop %v478
    %v483 = vrcp.pop %v481
    %v484 = vmul.f32 %v473, %v482
    %v485 = vmul.f32 %v475, %v483
    %v487 = vsel %vm463, %v484, 0
    %489 = vmatprep.subr.mxu0 0.0
    %490 = vmatpush1.msra.mxu0 %v304
    %491 = vmatprep.subr.mxu0 0.0
    %492 = vmatpush1.msra.mxu0 0.0
    %493 = vmatprep.subr.mxu0 0.0
    %494 = vmatpush1.msra.mxu0 0.0
    %495 = vmatprep.subr.mxu0 0.0
    %496 = vmatpush1.msra.mxu0 0.0
    %497 = vmatprep.subr.mxu0 0.0
    %498 = vmatpush1.msra.mxu0 0.0
    %499 = vmatprep.subr.mxu0 0.0
    %500 = vmatpush1.msra.mxu0 0.0
    %501 = vmatprep.subr.mxu0 0.0
    %502 = vmatpush1.msra.mxu0 0.0
    %503 = vmatprep.subr.mxu0 0.0
    %504 = vmatpush1.msra.mxu0 0.0
    %505 = vmatprep.subr.mxu0 0.0
    %506 = vmatpush1.msra.mxu0 0.0
    %507 = vmatprep.subr.mxu0 0.0
    %508 = vmatpush1.msra.mxu0 0.0
    %509 = vmatprep.subr.mxu0 0.0
    %510 = vmatpush1.msra.mxu0 0.0
    %511 = vmatprep.subr.mxu0 0.0
    %512 = vmatpush1.msra.mxu0 0.0
    %513 = vmatprep.subr.mxu0 0.0
    %514 = vmatpush1.msra.mxu0 0.0
    %515 = vmatprep.subr.mxu0 0.0
    %516 = vmatpush1.msra.mxu0 0.0
    %517 = vmatprep.subr.mxu0 0.0
    %518 = vmatpush1.msra.mxu0 0.0
    %519 = vmatprep.subr.mxu0 0.0
    %520 = vmatpush1.msra.mxu0 0.0
    %521 = vmatprep.subr.mxu0 0.0
    %522 = vmatpush1.msra.mxu0 0.0
    %523 = vmatprep.subr.mxu0 0.0
    %524 = vmatpush1.msra.mxu0 0.0
    %525 = vmatprep.subr.mxu0 0.0
    %526 = vmatpush1.msra.mxu0 0.0
    %527 = vmatprep.subr.mxu0 0.0
    %528 = vmatpush1.msra.mxu0 0.0
    %529 = vmatprep.subr.mxu0 0.0
    %530 = vmatpush1.msra.mxu0 0.0
    %531 = vmatprep.subr.mxu0 0.0
    %532 = vmatpush1.msra.mxu0 0.0
    %533 = vmatprep.subr.mxu0 0.0
    %534 = vmatpush1.msra.mxu0 0.0
    %535 = vmatprep.subr.mxu0 0.0
    %536 = vmatpush1.msra.mxu0 0.0
    %537 = vmatprep.subr.mxu0 0.0
    %538 = vmatpush1.msra.mxu0 0.0
    %539 = vmatprep.subr.mxu0 0.0
    %540 = vmatpush1.msra.mxu0 0.0
    %541 = vmatprep.subr.mxu0 0.0
    %542 = vmatpush1.msra.mxu0 0.0
    %543 = vmatprep.subr.mxu0 0.0
    %544 = vmatpush1.msra.mxu0 0.0
    %545 = vmatprep.subr.mxu0 0.0
    %546 = vmatpush1.msra.mxu0 0.0
    %547 = vmatprep.subr.mxu0 0.0
    %548 = vmatpush1.msra.mxu0 0.0
    %549 = vmatprep.subr.mxu0 0.0
    %550 = vmatpush1.msra.mxu0 0.0
    %551 = vmatprep.subr.mxu0 0.0
    %552 = vmatpush1.msra.mxu0 0.0
    %553 = vmatprep.mubr.f32.mxu0 0.0
    %554 = vmatmul.mubr.f32.gmra.mrb[0].mxu0 %v487
    %v555 = vpop.f32.mrb[0].mxu0
    %v556 = vadd.f32 0.0, %v555
    %v557 = vpop.f32.mrb[0].mxu0
    %558 = vdwg.mxu0
    %v560 = vsel %vm463, %v485, 0
    %562 = vmatprep.subr.mxu0 0.0
    %563 = vmatpush1.msra.mxu0 %v307
    %564 = vmatprep.subr.mxu0 0.0
    %565 = vmatpush1.msra.mxu0 0.0
    %566 = vmatprep.subr.mxu0 0.0
    %567 = vmatpush1.msra.mxu0 0.0
    %568 = vmatprep.subr.mxu0 0.0
    %569 = vmatpush1.msra.mxu0 0.0
    %570 = vmatprep.subr.mxu0 0.0
    %571 = vmatpush1.msra.mxu0 0.0
    %572 = vmatprep.subr.mxu0 0.0
    %573 = vmatpush1.msra.mxu0 0.0
    %574 = vmatprep.subr.mxu0 0.0
    %575 = vmatpush1.msra.mxu0 0.0
    %576 = vmatprep.subr.mxu0 0.0
    %577 = vmatpush1.msra.mxu0 0.0
    %578 = vmatprep.subr.mxu0 0.0
    %579 = vmatpush1.msra.mxu0 0.0
    %580 = vmatprep.subr.mxu0 0.0
    %581 = vmatpush1.msra.mxu0 0.0
    %582 = vmatprep.subr.mxu0 0.0
    %583 = vmatpush1.msra.mxu0 0.0
    %584 = vmatprep.subr.mxu0 0.0
    %585 = vmatpush1.msra.mxu0 0.0
    %586 = vmatprep.subr.mxu0 0.0
    %587 = vmatpush1.msra.mxu0 0.0
    %588 = vmatprep.subr.mxu0 0.0
    %589 = vmatpush1.msra.mxu0 0.0
    %590 = vmatprep.subr.mxu0 0.0
    %591 = vmatpush1.msra.mxu0 0.0
    %592 = vmatprep.subr.mxu0 0.0
    %593 = vmatpush1.msra.mxu0 0.0
    %594 = vmatprep.subr.mxu0 0.0
    %595 = vmatpush1.msra.mxu0 0.0
    %596 = vmatprep.subr.mxu0 0.0
    %597 = vmatpush1.msra.mxu0 0.0
    %598 = vmatprep.subr.mxu0 0.0
    %599 = vmatpush1.msra.mxu0 0.0
    %600 = vmatprep.subr.mxu0 0.0
    %601 = vmatpush1.msra.mxu0 0.0
    %602 = vmatprep.subr.mxu0 0.0
    %603 = vmatpush1.msra.mxu0 0.0
    %604 = vmatprep.subr.mxu0 0.0
    %605 = vmatpush1.msra.mxu0 0.0
    %606 = vmatprep.subr.mxu0 0.0
    %607 = vmatpush1.msra.mxu0 0.0
    %608 = vmatprep.subr.mxu0 0.0
    %609 = vmatpush1.msra.mxu0 0.0
    %610 = vmatprep.subr.mxu0 0.0
    %611 = vmatpush1.msra.mxu0 0.0
    %612 = vmatprep.subr.mxu0 0.0
    %613 = vmatpush1.msra.mxu0 0.0
    %614 = vmatprep.subr.mxu0 0.0
    %615 = vmatpush1.msra.mxu0 0.0
    %616 = vmatprep.subr.mxu0 0.0
    %617 = vmatpush1.msra.mxu0 0.0
    %618 = vmatprep.subr.mxu0 0.0
    %619 = vmatpush1.msra.mxu0 0.0
    %620 = vmatprep.subr.mxu0 0.0
    %621 = vmatpush1.msra.mxu0 0.0
    %622 = vmatprep.subr.mxu0 0.0
    %623 = vmatpush1.msra.mxu0 0.0
    %624 = vmatprep.subr.mxu0 0.0
    %625 = vmatpush1.msra.mxu0 0.0
    %626 = vmatprep.mubr.f32.mxu0 0.0
    %627 = vmatmul.mubr.f32.gmra.mrb[0].mxu0 %v560
    %v628 = vpop.f32.mrb[0].mxu0
    %v629 = vadd.f32 0.0, %v628
    %v630 = vpop.f32.mrb[0].mxu0
    %631 = vdwg.mxu0
    %v632 = vpack.c.bf16 %v629, %v556
    %v633 = vld [vmem:[#allocation2 + $0xc] sm:$0xf]
    %v634 = vld [vmem:[#allocation2 + $0x40] sm:$0xf]
    %v635 = vld [vmem:[#allocation2 + $0x74] sm:$0xf]
    %v636 = vld [vmem:[#allocation2 + $0xa8] sm:$0xf]
    %637 = vrot.lane.b32.xlu0 %v261, 96
    %v638 = vpop.permute.xlu0 %637
    %639 = vrot.lane.b32.xlu0 %v263, 96
    %v640 = vpop.permute.xlu0 %639
    %v641 = vsel %vm310, %v638, 0
    %v643 = vsel %vm310, %v640, 0
    %645 = vmatprep.subr.mxu0 0.0
    %646 = vmatpush1.xpose.msra.mxu0 %v643
    %647 = vmatprep.subr.mxu0 0.0
    %648 = vmatpush1.xpose.msra.mxu0 0.0
    %649 = vmatprep.subr.mxu0 0.0
    %650 = vmatpush1.xpose.msra.mxu0 0.0
    %651 = vmatprep.subr.mxu0 0.0
    %652 = vmatpush1.xpose.msra.mxu0 0.0
    %653 = vmatprep.subr.mxu0 0.0
    %654 = vmatpush1.xpose.msra.mxu0 0.0
    %655 = vmatprep.subr.mxu0 0.0
    %656 = vmatpush1.xpose.msra.mxu0 0.0
    %657 = vmatprep.subr.mxu0 0.0
    %658 = vmatpush1.xpose.msra.mxu0 0.0
    %659 = vmatprep.subr.mxu0 0.0
    %660 = vmatpush1.xpose.msra.mxu0 0.0
    %661 = vmatprep.subr.mxu0 0.0
    %662 = vmatpush1.xpose.msra.mxu0 0.0
    %663 = vmatprep.subr.mxu0 0.0
    %664 = vmatpush1.xpose.msra.mxu0 0.0
    %665 = vmatprep.subr.mxu0 0.0
    %666 = vmatpush1.xpose.msra.mxu0 0.0
    %667 = vmatprep.subr.mxu0 0.0
    %668 = vmatpush1.xpose.msra.mxu0 0.0
    %669 = vmatprep.subr.mxu0 0.0
    %670 = vmatpush1.xpose.msra.mxu0 0.0
    %671 = vmatprep.subr.mxu0 0.0
    %672 = vmatpush1.xpose.msra.mxu0 0.0
    %673 = vmatprep.subr.mxu0 0.0
    %674 = vmatpush1.xpose.msra.mxu0 0.0
    %675 = vmatprep.subr.mxu0 0.0
    %676 = vmatpush1.xpose.msra.mxu0 0.0
    %677 = vmatprep.subr.mxu0 0.0
    %678 = vmatpush1.xpose.msra.mxu0 0.0
    %679 = vmatprep.subr.mxu0 0.0
    %680 = vmatpush1.xpose.msra.mxu0 0.0
    %681 = vmatprep.subr.mxu0 0.0
    %682 = vmatpush1.xpose.msra.mxu0 0.0
    %683 = vmatprep.subr.mxu0 0.0
    %684 = vmatpush1.xpose.msra.mxu0 0.0
    %685 = vmatprep.subr.mxu0 0.0
    %686 = vmatpush1.xpose.msra.mxu0 0.0
    %687 = vmatprep.subr.mxu0 0.0
    %688 = vmatpush1.xpose.msra.mxu0 0.0
    %689 = vmatprep.subr.mxu0 0.0
    %690 = vmatpush1.xpose.msra.mxu0 0.0
    %691 = vmatprep.subr.mxu0 0.0
    %692 = vmatpush1.xpose.msra.mxu0 0.0
    %693 = vmatprep.subr.mxu0 0.0
    %694 = vmatpush1.xpose.msra.mxu0 0.0
    %695 = vmatprep.subr.mxu0 0.0
    %696 = vmatpush1.xpose.msra.mxu0 0.0
    %697 = vmatprep.subr.mxu0 0.0
    %698 = vmatpush1.xpose.msra.mxu0 0.0
    %699 = vmatprep.subr.mxu0 0.0
    %700 = vmatpush1.xpose.msra.mxu0 0.0
    %701 = vmatprep.subr.mxu0 0.0
    %702 = vmatpush1.xpose.msra.mxu0 0.0
    %703 = vmatprep.subr.mxu0 0.0
    %704 = vmatpush1.xpose.msra.mxu0 0.0
    %705 = vmatprep.subr.mxu0 0.0
    %706 = vmatpush1.xpose.msra.mxu0 0.0
    %707 = vmatprep.subr.mxu0 0.0
    %708 = vmatpush1.xpose.msra.mxu0 0.0
    %709 = vmatprep.mubr.f32.mxu0 0.0
    %710 = vmatmul.mubr.f32.gmra.mrb[0].mxu0 %v641
    %v711 = vpop.f32.mrb[0].mxu0
    %v712 = vadd.f32 0.0, %v711
    %v713 = vpop.f32.mrb[0].mxu0
    %714 = vdwg.mxu0
    %715 = vrot.lane.b32.xlu0 %v265, 96
    %v716 = vpop.permute.xlu0 %715
    %717 = vrot.lane.b32.xlu0 %v267, 96
    %v718 = vpop.permute.xlu0 %717
    %v719 = vsel %vm310, %v716, 0
    %v721 = vsel %vm310, %v718, 0
    %723 = vmatprep.subr.mxu0 0.0
    %724 = vmatpush1.xpose.msra.mxu0 %v721
    %725 = vmatprep.subr.mxu0 0.0
    %726 = vmatpush1.xpose.msra.mxu0 0.0
    %727 = vmatprep.subr.mxu0 0.0
    %728 = vmatpush1.xpose.msra.mxu0 0.0
    %729 = vmatprep.subr.mxu0 0.0
    %730 = vmatpush1.xpose.msra.mxu0 0.0
    %731 = vmatprep.subr.mxu0 0.0
    %732 = vmatpush1.xpose.msra.mxu0 0.0
    %733 = vmatprep.subr.mxu0 0.0
    %734 = vmatpush1.xpose.msra.mxu0 0.0
    %735 = vmatprep.subr.mxu0 0.0
    %736 = vmatpush1.xpose.msra.mxu0 0.0
    %737 = vmatprep.subr.mxu0 0.0
    %738 = vmatpush1.xpose.msra.mxu0 0.0
    %739 = vmatprep.subr.mxu0 0.0
    %740 = vmatpush1.xpose.msra.mxu0 0.0
    %741 = vmatprep.subr.mxu0 0.0
    %742 = vmatpush1.xpose.msra.mxu0 0.0
    %743 = vmatprep.subr.mxu0 0.0
    %744 = vmatpush1.xpose.msra.mxu0 0.0
    %745 = vmatprep.subr.mxu0 0.0
    %746 = vmatpush1.xpose.msra.mxu0 0.0
    %747 = vmatprep.subr.mxu0 0.0
    %748 = vmatpush1.xpose.msra.mxu0 0.0
    %749 = vmatprep.subr.mxu0 0.0
    %750 = vmatpush1.xpose.msra.mxu0 0.0
    %751 = vmatprep.subr.mxu0 0.0
    %752 = vmatpush1.xpose.msra.mxu0 0.0
    %753 = vmatprep.subr.mxu0 0.0
    %754 = vmatpush1.xpose.msra.mxu0 0.0
    %755 = vmatprep.subr.mxu0 0.0
    %756 = vmatpush1.xpose.msra.mxu0 0.0
    %757 = vmatprep.subr.mxu0 0.0
    %758 = vmatpush1.xpose.msra.mxu0 0.0
    %759 = vmatprep.subr.mxu0 0.0
    %760 = vmatpush1.xpose.msra.mxu0 0.0
    %761 = vmatprep.subr.mxu0 0.0
    %762 = vmatpush1.xpose.msra.mxu0 0.0
    %763 = vmatprep.subr.mxu0 0.0
    %764 = vmatpush1.xpose.msra.mxu0 0.0
    %765 = vmatprep.subr.mxu0 0.0
    %766 = vmatpush1.xpose.msra.mxu0 0.0
    %767 = vmatprep.subr.mxu0 0.0
    %768 = vmatpush1.xpose.msra.mxu0 0.0
    %769 = vmatprep.subr.mxu0 0.0
    %770 = vmatpush1.xpose.msra.mxu0 0.0
    %771 = vmatprep.subr.mxu0 0.0
    %772 = vmatpush1.xpose.msra.mxu0 0.0
    %773 = vmatprep.subr.mxu0 0.0
    %774 = vmatpush1.xpose.msra.mxu0 0.0
    %775 = vmatprep.subr.mxu0 0.0
    %776 = vmatpush1.xpose.msra.mxu0 0.0
    %777 = vmatprep.subr.mxu0 0.0
    %778 = vmatpush1.xpose.msra.mxu0 0.0
    %779 = vmatprep.subr.mxu0 0.0
    %780 = vmatpush1.xpose.msra.mxu0 0.0
    %781 = vmatprep.subr.mxu0 0.0
    %782 = vmatpush1.xpose.msra.mxu0 0.0
    %783 = vmatprep.subr.mxu0 0.0
    %784 = vmatpush1.xpose.msra.mxu0 0.0
    %785 = vmatprep.subr.mxu0 0.0
    %786 = vmatpush1.xpose.msra.mxu0 0.0
    %787 = vmatprep.mubr.f32.mxu0 0.0
    %788 = vmatmul.mubr.f32.gmra.mrb[0].mxu0 %v719
    %v789 = vpop.f32.mrb[0].mxu0
    %v790 = vadd.f32 0.0, %v789
    %v791 = vpop.f32.mrb[0].mxu0
    %792 = vdwg.mxu0
    %v793 = vsel %vm463, %v712, -inf
    %794 = vmax.xlane.f32.xlu0 %v793
    %v795 = vpop.xlane.xlu0 %794
    %v796 = vsel %vm463, %v790, -inf
    %797 = vmax.xlane.f32.xlu0 %v796
    %v798 = vpop.xlane.xlu0 %797
    %v799 = vsub.f32 %v712, %v795
    %v800 = vsub.f32 %v790, %v798
    %v801 = vmul.f32 %v799, 1.442695
    %v802 = vpow.pop %v801
    %v803 = vmul.f32 %v800, 1.442695
    %v804 = vpow.pop %v803
    %v805 = vsel %vm463, %v802, 0.0
    %806 = vadd.xlane.f32.xlu0 %v805
    %v807 = vpop.xlane.xlu0 %806
    %v808 = vsel %vm463, %v804, 0.0
    %809 = vadd.xlane.f32.xlu0 %v808
    %v810 = vpop.xlane.xlu0 %809
    %v811 = vrcp.pop %v807
    %v812 = vrcp.pop %v810
    %v813 = vmul.f32 %v802, %v811
    %v814 = vmul.f32 %v804, %v812
    %816 = vrot.lane.b32.xlu0 %v304, 96
    %v817 = vpop.permute.xlu0 %816
    %v820 = vsel %vm463, %v813, 0
    %822 = vmatprep.subr.mxu0 0.0
    %823 = vmatpush1.msra.mxu0 %v817
    %824 = vmatprep.subr.mxu0 0.0
    %825 = vmatpush1.msra.mxu0 0.0
    %826 = vmatprep.subr.mxu0 0.0
    %827 = vmatpush1.msra.mxu0 0.0
    %828 = vmatprep.subr.mxu0 0.0
    %829 = vmatpush1.msra.mxu0 0.0
    %830 = vmatprep.subr.mxu0 0.0
    %831 = vmatpush1.msra.mxu0 0.0
    %832 = vmatprep.subr.mxu0 0.0
    %833 = vmatpush1.msra.mxu0 0.0
    %834 = vmatprep.subr.mxu0 0.0
    %835 = vmatpush1.msra.mxu0 0.0
    %836 = vmatprep.subr.mxu0 0.0
    %837 = vmatpush1.msra.mxu0 0.0
    %838 = vmatprep.subr.mxu0 0.0
    %839 = vmatpush1.msra.mxu0 0.0
    %840 = vmatprep.subr.mxu0 0.0
    %841 = vmatpush1.msra.mxu0 0.0
    %842 = vmatprep.subr.mxu0 0.0
    %843 = vmatpush1.msra.mxu0 0.0
    %844 = vmatprep.subr.mxu0 0.0
    %845 = vmatpush1.msra.mxu0 0.0
    %846 = vmatprep.subr.mxu0 0.0
    %847 = vmatpush1.msra.mxu0 0.0
    %848 = vmatprep.subr.mxu0 0.0
    %849 = vmatpush1.msra.mxu0 0.0
    %850 = vmatprep.subr.mxu0 0.0
    %851 = vmatpush1.msra.mxu0 0.0
    %852 = vmatprep.subr.mxu0 0.0
    %853 = vmatpush1.msra.mxu0 0.0
    %854 = vmatprep.subr.mxu0 0.0
    %855 = vmatpush1.msra.mxu0 0.0
    %856 = vmatprep.subr.mxu0 0.0
    %857 = vmatpush1.msra.mxu0 0.0
    %858 = vmatprep.subr.mxu0 0.0
    %859 = vmatpush1.msra.mxu0 0.0
    %860 = vmatprep.subr.mxu0 0.0
    %861 = vmatpush1.msra.mxu0 0.0
    %862 = vmatprep.subr.mxu0 0.0
    %863 = vmatpush1.msra.mxu0 0.0
    %864 = vmatprep.subr.mxu0 0.0
    %865 = vmatpush1.msra.mxu0 0.0
    %866 = vmatprep.subr.mxu0 0.0
    %867 = vmatpush1.msra.mxu0 0.0
    %868 = vmatprep.subr.mxu0 0.0
    %869 = vmatpush1.msra.mxu0 0.0
    %870 = vmatprep.subr.mxu0 0.0
    %871 = vmatpush1.msra.mxu0 0.0
    %872 = vmatprep.subr.mxu0 0.0
    %873 = vmatpush1.msra.mxu0 0.0
    %874 = vmatprep.subr.mxu0 0.0
    %875 = vmatpush1.msra.mxu0 0.0
    %876 = vmatprep.subr.mxu0 0.0
    %877 = vmatpush1.msra.mxu0 0.0
    %878 = vmatprep.subr.mxu0 0.0
    %879 = vmatpush1.msra.mxu0 0.0
    %880 = vmatprep.subr.mxu0 0.0
    %881 = vmatpush1.msra.mxu0 0.0
    %882 = vmatprep.subr.mxu0 0.0
    %883 = vmatpush1.msra.mxu0 0.0
    %884 = vmatprep.subr.mxu0 0.0
    %885 = vmatpush1.msra.mxu0 0.0
    %886 = vmatprep.mubr.f32.mxu0 0.0
    %887 = vmatmul.mubr.f32.gmra.mrb[0].mxu0 %v820
    %v888 = vpop.f32.mrb[0].mxu0
    %v889 = vadd.f32 0.0, %v888
    %v890 = vpop.f32.mrb[0].mxu0
    %891 = vdwg.mxu0
    %893 = vrot.lane.b32.xlu0 %v307, 96
    %v894 = vpop.permute.xlu0 %893
    %v897 = vsel %vm463, %v814, 0
    %899 = vmatprep.subr.mxu0 0.0
    %900 = vmatpush1.msra.mxu0 %v894
    %901 = vmatprep.subr.mxu0 0.0
    %902 = vmatpush1.msra.mxu0 0.0
    %903 = vmatprep.subr.mxu0 0.0
    %904 = vmatpush1.msra.mxu0 0.0
    %905 = vmatprep.subr.mxu0 0.0
    %906 = vmatpush1.msra.mxu0 0.0
    %907 = vmatprep.subr.mxu0 0.0
    %908 = vmatpush1.msra.mxu0 0.0
    %909 = vmatprep.subr.mxu0 0.0
    %910 = vmatpush1.msra.mxu0 0.0
    %911 = vmatprep.subr.mxu0 0.0
    %912 = vmatpush1.msra.mxu0 0.0
    %913 = vmatprep.subr.mxu0 0.0
    %914 = vmatpush1.msra.mxu0 0.0
    %915 = vmatprep.subr.mxu0 0.0
    %916 = vmatpush1.msra.mxu0 0.0
    %917 = vmatprep.subr.mxu0 0.0
    %918 = vmatpush1.msra.mxu0 0.0
    %919 = vmatprep.subr.mxu0 0.0
    %920 = vmatpush1.msra.mxu0 0.0
    %921 = vmatprep.subr.mxu0 0.0
    %922 = vmatpush1.msra.mxu0 0.0
    %923 = vmatprep.subr.mxu0 0.0
    %924 = vmatpush1.msra.mxu0 0.0
    %925 = vmatprep.subr.mxu0 0.0
    %926 = vmatpush1.msra.mxu0 0.0
    %927 = vmatprep.subr.mxu0 0.0
    %928 = vmatpush1.msra.mxu0 0.0
    %929 = vmatprep.subr.mxu0 0.0
    %930 = vmatpush1.msra.mxu0 0.0
    %931 = vmatprep.subr.mxu0 0.0
    %932 = vmatpush1.msra.mxu0 0.0
    %933 = vmatprep.subr.mxu0 0.0
    %934 = vmatpush1.msra.mxu0 0.0
    %935 = vmatprep.subr.mxu0 0.0
    %936 = vmatpush1.msra.mxu0 0.0
    %937 = vmatprep.subr.mxu0 0.0
    %938 = vmatpush1.msra.mxu0 0.0
    %939 = vmatprep.subr.mxu0 0.0
    %940 = vmatpush1.msra.mxu0 0.0
    %941 = vmatprep.subr.mxu0 0.0
    %942 = vmatpush1.msra.mxu0 0.0
    %943 = vmatprep.subr.mxu0 0.0
    %944 = vmatpush1.msra.mxu0 0.0
    %945 = vmatprep.subr.mxu0 0.0
    %946 = vmatpush1.msra.mxu0 0.0
    %947 = vmatprep.subr.mxu0 0.0
    %948 = vmatpush1.msra.mxu0 0.0
    %949 = vmatprep.subr.mxu0 0.0
    %950 = vmatpush1.msra.mxu0 0.0
    %951 = vmatprep.subr.mxu0 0.0
    %952 = vmatpush1.msra.mxu0 0.0
    %953 = vmatprep.subr.mxu0 0.0
    %954 = vmatpush1.msra.mxu0 0.0
    %955 = vmatprep.subr.mxu0 0.0
    %956 = vmatpush1.msra.mxu0 0.0
    %957 = vmatprep.subr.mxu0 0.0
    %958 = vmatpush1.msra.mxu0 0.0
    %959 = vmatprep.subr.mxu0 0.0
    %960 = vmatpush1.msra.mxu0 0.0
    %961 = vmatprep.subr.mxu0 0.0
    %962 = vmatpush1.msra.mxu0 0.0
    %963 = vmatprep.mubr.f32.mxu0 0.0
    %964 = vmatmul.mubr.f32.gmra.mrb[0].mxu0 %v897
    %v965 = vpop.f32.mrb[0].mxu0
    %v966 = vadd.f32 0.0, %v965
    %v967 = vpop.f32.mrb[0].mxu0
    %968 = vdwg.mxu0
    %v969 = vpack.c.bf16 %v966, %v889
    %v970 = vld [vmem:[#allocation2 + $0xdc] sm:$0xf]
    %v971 = vld [vmem:[#allocation2 + $0x110] sm:$0xf]
    %v972 = vld [vmem:[#allocation2 + $0x144] sm:$0xf]
    %v973 = vld [vmem:[#allocation2 + $0x178] sm:$0xf]
    %v978 = vunpack.c.l.b16 %v970
    %v979 = vunpack.c.l.b16 %v971
    %v980 = vunpack.c.l.b16 %v972
    %v981 = vunpack.c.l.b16 %v973
    %v982 = vpack.c.b16 %v979, %v978
    %v983 = vpack.c.b16 %v981, %v980
    %v987 = vsel %vm310, %v969, 0
    %989 = vmatprep.subr.bf16.mxu0 0
    %990 = vmatpush1.bf16.msra.mxu0 %v982
    %991 = vmatprep.subr.bf16.mxu0 0
    %992 = vmatpush1.bf16.msra.mxu0 %v983
    %993 = vmatprep.subr.bf16.mxu0 0
    %994 = vmatpush1.bf16.msra.mxu0 0
    %995 = vmatprep.subr.bf16.mxu0 0
    %996 = vmatpush1.bf16.msra.mxu0 0
    %997 = vmatprep.subr.bf16.mxu0 0
    %998 = vmatpush1.bf16.msra.mxu0 0
    %999 = vmatprep.subr.bf16.mxu0 0
    %1000 = vmatpush1.bf16.msra.mxu0 0
    %1001 = vmatprep.subr.bf16.mxu0 0
    %1002 = vmatpush1.bf16.msra.mxu0 0
    %1003 = vmatprep.subr.bf16.mxu0 0
    %1004 = vmatpush1.bf16.msra.mxu0 0
    %1005 = vmatprep.subr.bf16.mxu0 0
    %1006 = vmatpush1.bf16.msra.mxu0 0
    %1007 = vmatprep.subr.bf16.mxu0 0
    %1008 = vmatpush1.bf16.msra.mxu0 0
    %1009 = vmatprep.subr.bf16.mxu0 0
    %1010 = vmatpush1.bf16.msra.mxu0 0
    %1011 = vmatprep.subr.bf16.mxu0 0
    %1012 = vmatpush1.bf16.msra.mxu0 0
    %1013 = vmatprep.subr.bf16.mxu0 0
    %1014 = vmatpush1.bf16.msra.mxu0 0
    %1015 = vmatprep.subr.bf16.mxu0 0
    %1016 = vmatpush1.bf16.msra.mxu0 0
    %1017 = vmatprep.subr.bf16.mxu0 0
    %1018 = vmatpush1.bf16.msra.mxu0 0
    %1019 = vmatprep.subr.bf16.mxu0 0
    %1020 = vmatpush1.bf16.msra.mxu0 0
    %1021 = vmatprep.mubr.bf16.mxu0 0
    %1022 = vmatmul.mubr.bf16.gmra.mrb[0].mxu0 %v987
    %v1023 = vpop.f32.mrb[0].mxu0
    %v1024 = vadd.f32 0.0, %v1023
    %v1025 = vpop.f32.mrb[0].mxu0
    %v1026 = vpop.f32.mrb[0].mxu0
    %v1027 = vadd.f32 0.0, %v1026
    %v1028 = vpop.f32.mrb[0].mxu0
    %1029 = vdwg.mxu0
    %v1034 = vunpack.c.l.b16 %v633
    %v1035 = vunpack.c.l.b16 %v634
    %v1036 = vunpack.c.l.b16 %v635
    %v1037 = vunpack.c.l.b16 %v636
    %v1038 = vpack.c.b16 %v1035, %v1034
    %v1039 = vpack.c.b16 %v1037, %v1036
    %v1043 = vsel %vm310, %v632, 0
    %1045 = vmatprep.subr.bf16.mxu0 0
    %1046 = vmatpush1.bf16.msra.mxu0 %v1038
    %1047 = vmatprep.subr.bf16.mxu0 0
    %1048 = vmatpush1.bf16.msra.mxu0 %v1039
    %1049 = vmatprep.subr.bf16.mxu0 0
    %1050 = vmatpush1.bf16.msra.mxu0 0
    %1051 = vmatprep.subr.bf16.mxu0 0
    %1052 = vmatpush1.bf16.msra.mxu0 0
    %1053 = vmatprep.subr.bf16.mxu0 0
    %1054 = vmatpush1.bf16.msra.mxu0 0
    %1055 = vmatprep.subr.bf16.mxu0 0
    %1056 = vmatpush1.bf16.msra.mxu0 0
    %1057 = vmatprep.subr.bf16.mxu0 0
    %1058 = vmatpush1.bf16.msra.mxu0 0
    %1059 = vmatprep.subr.bf16.mxu0 0
    %1060 = vmatpush1.bf16.msra.mxu0 0
    %1061 = vmatprep.subr.bf16.mxu0 0
    %1062 = vmatpush1.bf16.msra.mxu0 0
    %1063 = vmatprep.subr.bf16.mxu0 0
    %1064 = vmatpush1.bf16.msra.mxu0 0
    %1065 = vmatprep.subr.bf16.mxu0 0
    %1066 = vmatpush1.bf16.msra.mxu0 0
    %1067 = vmatprep.subr.bf16.mxu0 0
    %1068 = vmatpush1.bf16.msra.mxu0 0
    %1069 = vmatprep.subr.bf16.mxu0 0
    %1070 = vmatpush1.bf16.msra.mxu0 0
    %1071 = vmatprep.subr.bf16.mxu0 0
    %1072 = vmatpush1.bf16.msra.mxu0 0
    %1073 = vmatprep.subr.bf16.mxu0 0
    %1074 = vmatpush1.bf16.msra.mxu0 0
    %1075 = vmatprep.subr.bf16.mxu0 0
    %1076 = vmatpush1.bf16.msra.mxu0 0
    %1077 = vmatprep.mubr.bf16.mxu0 0
    %1078 = vmatmul.mubr.bf16.gmra.mrb[0].mxu0 %v1043
    %v1079 = vpop.f32.mrb[0].mxu0
    %v1080 = vadd.f32 %v1024, %v1079
    %v1081 = vpop.f32.mrb[0].mxu0
    %v1082 = vpop.f32.mrb[0].mxu0
    %v1083 = vadd.f32 %v1027, %v1082
    %v1084 = vpop.f32.mrb[0].mxu0
    %1085 = vdwg.mxu0
    %1086 = vrot.lane.b32.xlu0 %v261, 64
    %v1087 = vpop.permute.xlu0 %1086
    %1088 = vrot.lane.b32.xlu0 %v263, 64
    %v1089 = vpop.permute.xlu0 %1088
    %v1090 = vsel %vm310, %v1087, 0
    %v1092 = vsel %vm310, %v1089, 0
    %1094 = vmatprep.subr.mxu0 0.0
    %1095 = vmatpush1.xpose.msra.mxu0 %v1092
    %1096 = vmatprep.subr.mxu0 0.0
    %1097 = vmatpush1.xpose.msra.mxu0 0.0
    %1098 = vmatprep.subr.mxu0 0.0
    %1099 = vmatpush1.xpose.msra.mxu0 0.0
    %1100 = vmatprep.subr.mxu0 0.0
    %1101 = vmatpush1.xpose.msra.mxu0 0.0
    %1102 = vmatprep.subr.mxu0 0.0
    %1103 = vmatpush1.xpose.msra.mxu0 0.0
    %1104 = vmatprep.subr.mxu0 0.0
    %1105 = vmatpush1.xpose.msra.mxu0 0.0
    %1106 = vmatprep.subr.mxu0 0.0
    %1107 = vmatpush1.xpose.msra.mxu0 0.0
    %1108 = vmatprep.subr.mxu0 0.0
    %1109 = vmatpush1.xpose.msra.mxu0 0.0
    %1110 = vmatprep.subr.mxu0 0.0
    %1111 = vmatpush1.xpose.msra.mxu0 0.0
    %1112 = vmatprep.subr.mxu0 0.0
    %1113 = vmatpush1.xpose.msra.mxu0 0.0
    %1114 = vmatprep.subr.mxu0 0.0
    %1115 = vmatpush1.xpose.msra.mxu0 0.0
    %1116 = vmatprep.subr.mxu0 0.0
    %1117 = vmatpush1.xpose.msra.mxu0 0.0
    %1118 = vmatprep.subr.mxu0 0.0
    %1119 = vmatpush1.xpose.msra.mxu0 0.0
    %1120 = vmatprep.subr.mxu0 0.0
    %1121 = vmatpush1.xpose.msra.mxu0 0.0
    %1122 = vmatprep.subr.mxu0 0.0
    %1123 = vmatpush1.xpose.msra.mxu0 0.0
    %1124 = vmatprep.subr.mxu0 0.0
    %1125 = vmatpush1.xpose.msra.mxu0 0.0
    %1126 = vmatprep.subr.mxu0 0.0
    %1127 = vmatpush1.xpose.msra.mxu0 0.0
    %1128 = vmatprep.subr.mxu0 0.0
    %1129 = vmatpush1.xpose.msra.mxu0 0.0
    %1130 = vmatprep.subr.mxu0 0.0
    %1131 = vmatpush1.xpose.msra.mxu0 0.0
    %1132 = vmatprep.subr.mxu0 0.0
    %1133 = vmatpush1.xpose.msra.mxu0 0.0
    %1134 = vmatprep.subr.mxu0 0.0
    %1135 = vmatpush1.xpose.msra.mxu0 0.0
    %1136 = vmatprep.subr.mxu0 0.0
    %1137 = vmatpush1.xpose.msra.mxu0 0.0
    %1138 = vmatprep.subr.mxu0 0.0
    %1139 = vmatpush1.xpose.msra.mxu0 0.0
    %1140 = vmatprep.subr.mxu0 0.0
    %1141 = vmatpush1.xpose.msra.mxu0 0.0
    %1142 = vmatprep.subr.mxu0 0.0
    %1143 = vmatpush1.xpose.msra.mxu0 0.0
    %1144 = vmatprep.subr.mxu0 0.0
    %1145 = vmatpush1.xpose.msra.mxu0 0.0
    %1146 = vmatprep.subr.mxu0 0.0
    %1147 = vmatpush1.xpose.msra.mxu0 0.0
    %1148 = vmatprep.subr.mxu0 0.0
    %1149 = vmatpush1.xpose.msra.mxu0 0.0
    %1150 = vmatprep.subr.mxu0 0.0
    %1151 = vmatpush1.xpose.msra.mxu0 0.0
    %1152 = vmatprep.subr.mxu0 0.0
    %1153 = vmatpush1.xpose.msra.mxu0 0.0
    %1154 = vmatprep.subr.mxu0 0.0
    %1155 = vmatpush1.xpose.msra.mxu0 0.0
    %1156 = vmatprep.subr.mxu0 0.0
    %1157 = vmatpush1.xpose.msra.mxu0 0.0
    %1158 = vmatprep.mubr.f32.mxu0 0.0
    %1159 = vmatmul.mubr.f32.gmra.mrb[0].mxu0 %v1090
    %v1160 = vpop.f32.mrb[0].mxu0
    %v1161 = vadd.f32 0.0, %v1160
    %v1162 = vpop.f32.mrb[0].mxu0
    %1163 = vdwg.mxu0
    %1164 = vrot.lane.b32.xlu0 %v265, 64
    %v1165 = vpop.permute.xlu0 %1164
    %1166 = vrot.lane.b32.xlu0 %v267, 64
    %v1167 = vpop.permute.xlu0 %1166
    %v1168 = vsel %vm310, %v1165, 0
    %v1170 = vsel %vm310, %v1167, 0
    %1172 = vmatprep.subr.mxu0 0.0
    %1173 = vmatpush1.xpose.msra.mxu0 %v1170
    %1174 = vmatprep.subr.mxu0 0.0
    %1175 = vmatpush1.xpose.msra.mxu0 0.0
    %1176 = vmatprep.subr.mxu0 0.0
    %1177 = vmatpush1.xpose.msra.mxu0 0.0
    %1178 = vmatprep.subr.mxu0 0.0
    %1179 = vmatpush1.xpose.msra.mxu0 0.0
    %1180 = vmatprep.subr.mxu0 0.0
    %1181 = vmatpush1.xpose.msra.mxu0 0.0
    %1182 = vmatprep.subr.mxu0 0.0
    %1183 = vmatpush1.xpose.msra.mxu0 0.0
    %1184 = vmatprep.subr.mxu0 0.0
    %1185 = vmatpush1.xpose.msra.mxu0 0.0
    %1186 = vmatprep.subr.mxu0 0.0
    %1187 = vmatpush1.xpose.msra.mxu0 0.0
    %1188 = vmatprep.subr.mxu0 0.0
    %1189 = vmatpush1.xpose.msra.mxu0 0.0
    %1190 = vmatprep.subr.mxu0 0.0
    %1191 = vmatpush1.xpose.msra.mxu0 0.0
    %1192 = vmatprep.subr.mxu0 0.0
    %1193 = vmatpush1.xpose.msra.mxu0 0.0
    %1194 = vmatprep.subr.mxu0 0.0
    %1195 = vmatpush1.xpose.msra.mxu0 0.0
    %1196 = vmatprep.subr.mxu0 0.0
    %1197 = vmatpush1.xpose.msra.mxu0 0.0
    %1198 = vmatprep.subr.mxu0 0.0
    %1199 = vmatpush1.xpose.msra.mxu0 0.0
    %1200 = vmatprep.subr.mxu0 0.0
    %1201 = vmatpush1.xpose.msra.mxu0 0.0
    %1202 = vmatprep.subr.mxu0 0.0
    %1203 = vmatpush1.xpose.msra.mxu0 0.0
    %1204 = vmatprep.subr.mxu0 0.0
    %1205 = vmatpush1.xpose.msra.mxu0 0.0
    %1206 = vmatprep.subr.mxu0 0.0
    %1207 = vmatpush1.xpose.msra.mxu0 0.0
    %1208 = vmatprep.subr.mxu0 0.0
    %1209 = vmatpush1.xpose.msra.mxu0 0.0
    %1210 = vmatprep.subr.mxu0 0.0
    %1211 = vmatpush1.xpose.msra.mxu0 0.0
    %1212 = vmatprep.subr.mxu0 0.0
    %1213 = vmatpush1.xpose.msra.mxu0 0.0
    %1214 = vmatprep.subr.mxu0 0.0
    %1215 = vmatpush1.xpose.msra.mxu0 0.0
    %1216 = vmatprep.subr.mxu0 0.0
    %1217 = vmatpush1.xpose.msra.mxu0 0.0
    %1218 = vmatprep.subr.mxu0 0.0
    %1219 = vmatpush1.xpose.msra.mxu0 0.0
    %1220 = vmatprep.subr.mxu0 0.0
    %1221 = vmatpush1.xpose.msra.mxu0 0.0
    %1222 = vmatprep.subr.mxu0 0.0
    %1223 = vmatpush1.xpose.msra.mxu0 0.0
    %1224 = vmatprep.subr.mxu0 0.0
    %1225 = vmatpush1.xpose.msra.mxu0 0.0
    %1226 = vmatprep.subr.mxu0 0.0
    %1227 = vmatpush1.xpose.msra.mxu0 0.0
    %1228 = vmatprep.subr.mxu0 0.0
    %1229 = vmatpush1.xpose.msra.mxu0 0.0
    %1230 = vmatprep.subr.mxu0 0.0
    %1231 = vmatpush1.xpose.msra.mxu0 0.0
    %1232 = vmatprep.subr.mxu0 0.0
    %1233 = vmatpush1.xpose.msra.mxu0 0.0
    %1234 = vmatprep.subr.mxu0 0.0
    %1235 = vmatpush1.xpose.msra.mxu0 0.0
    %1236 = vmatprep.mubr.f32.mxu0 0.0
    %1237 = vmatmul.mubr.f32.gmra.mrb[0].mxu0 %v1168
    %v1238 = vpop.f32.mrb[0].mxu0
    %v1239 = vadd.f32 0.0, %v1238
    %v1240 = vpop.f32.mrb[0].mxu0
    %1241 = vdwg.mxu0
    %v1242 = vsel %vm463, %v1161, -inf
    %1243 = vmax.xlane.f32.xlu0 %v1242
    %v1244 = vpop.xlane.xlu0 %1243
    %v1245 = vsel %vm463, %v1239, -inf
    %1246 = vmax.xlane.f32.xlu0 %v1245
    %v1247 = vpop.xlane.xlu0 %1246
    %v1248 = vsub.f32 %v1161, %v1244
    %v1249 = vsub.f32 %v1239, %v1247
    %v1250 = vmul.f32 %v1248, 1.442695
    %v1251 = vpow.pop %v1250
    %v1252 = vmul.f32 %v1249, 1.442695
    %v1253 = vpow.pop %v1252
    %v1254 = vsel %vm463, %v1251, 0.0
    %1255 = vadd.xlane.f32.xlu0 %v1254
    %v1256 = vpop.xlane.xlu0 %1255
    %v1257 = vsel %vm463, %v1253, 0.0
    %1258 = vadd.xlane.f32.xlu0 %v1257
    %v1259 = vpop.xlane.xlu0 %1258
    %v1260 = vrcp.pop %v1256
    %v1261 = vrcp.pop %v1259
    %v1262 = vmul.f32 %v1251, %v1260
    %v1263 = vmul.f32 %v1253, %v1261
    %1264 = vrot.lane.b32.xlu0 %v304, 64
    %v1265 = vpop.permute.xlu0 %1264
    %v1268 = vsel %vm463, %v1262, 0
    %1270 = vmatprep.subr.mxu0 0.0
    %1271 = vmatpush1.msra.mxu0 %v1265
    %1272 = vmatprep.subr.mxu0 0.0
    %1273 = vmatpush1.msra.mxu0 0.0
    %1274 = vmatprep.subr.mxu0 0.0
    %1275 = vmatpush1.msra.mxu0 0.0
    %1276 = vmatprep.subr.mxu0 0.0
    %1277 = vmatpush1.msra.mxu0 0.0
    %1278 = vmatprep.subr.mxu0 0.0
    %1279 = vmatpush1.msra.mxu0 0.0
    %1280 = vmatprep.subr.mxu0 0.0
    %1281 = vmatpush1.msra.mxu0 0.0
    %1282 = vmatprep.subr.mxu0 0.0
    %1283 = vmatpush1.msra.mxu0 0.0
    %1284 = vmatprep.subr.mxu0 0.0
    %1285 = vmatpush1.msra.mxu0 0.0
    %1286 = vmatprep.subr.mxu0 0.0
    %1287 = vmatpush1.msra.mxu0 0.0
    %1288 = vmatprep.subr.mxu0 0.0
    %1289 = vmatpush1.msra.mxu0 0.0
    %1290 = vmatprep.subr.mxu0 0.0
    %1291 = vmatpush1.msra.mxu0 0.0
    %1292 = vmatprep.subr.mxu0 0.0
    %1293 = vmatpush1.msra.mxu0 0.0
    %1294 = vmatprep.subr.mxu0 0.0
    %1295 = vmatpush1.msra.mxu0 0.0
    %1296 = vmatprep.subr.mxu0 0.0
    %1297 = vmatpush1.msra.mxu0 0.0
    %1298 = vmatprep.subr.mxu0 0.0
    %1299 = vmatpush1.msra.mxu0 0.0
    %1300 = vmatprep.subr.mxu0 0.0
    %1301 = vmatpush1.msra.mxu0 0.0
    %1302 = vmatprep.subr.mxu0 0.0
    %1303 = vmatpush1.msra.mxu0 0.0
    %1304 = vmatprep.subr.mxu0 0.0
    %1305 = vmatpush1.msra.mxu0 0.0
    %1306 = vmatprep.subr.mxu0 0.0
    %1307 = vmatpush1.msra.mxu0 0.0
    %1308 = vmatprep.subr.mxu0 0.0
    %1309 = vmatpush1.msra.mxu0 0.0
    %1310 = vmatprep.subr.mxu0 0.0
    %1311 = vmatpush1.msra.mxu0 0.0
    %1312 = vmatprep.subr.mxu0 0.0
    %1313 = vmatpush1.msra.mxu0 0.0
    %1314 = vmatprep.subr.mxu0 0.0
    %1315 = vmatpush1.msra.mxu0 0.0
    %1316 = vmatprep.subr.mxu0 0.0
    %1317 = vmatpush1.msra.mxu0 0.0
    %1318 = vmatprep.subr.mxu0 0.0
    %1319 = vmatpush1.msra.mxu0 0.0
    %1320 = vmatprep.subr.mxu0 0.0
    %1321 = vmatpush1.msra.mxu0 0.0
    %1322 = vmatprep.subr.mxu0 0.0
    %1323 = vmatpush1.msra.mxu0 0.0
    %1324 = vmatprep.subr.mxu0 0.0
    %1325 = vmatpush1.msra.mxu0 0.0
    %1326 = vmatprep.subr.mxu0 0.0
    %1327 = vmatpush1.msra.mxu0 0.0
    %1328 = vmatprep.subr.mxu0 0.0
    %1329 = vmatpush1.msra.mxu0 0.0
    %1330 = vmatprep.subr.mxu0 0.0
    %1331 = vmatpush1.msra.mxu0 0.0
    %1332 = vmatprep.subr.mxu0 0.0
    %1333 = vmatpush1.msra.mxu0 0.0
    %1334 = vmatprep.mubr.f32.mxu0 0.0
    %1335 = vmatmul.mubr.f32.gmra.mrb[0].mxu0 %v1268
    %v1336 = vpop.f32.mrb[0].mxu0
    %v1337 = vadd.f32 0.0, %v1336
    %v1338 = vpop.f32.mrb[0].mxu0
    %1339 = vdwg.mxu0
    %1340 = vrot.lane.b32.xlu0 %v307, 64
    %v1341 = vpop.permute.xlu0 %1340
    %v1344 = vsel %vm463, %v1263, 0
    %1346 = vmatprep.subr.mxu0 0.0
    %1347 = vmatpush1.msra.mxu0 %v1341
    %1348 = vmatprep.subr.mxu0 0.0
    %1349 = vmatpush1.msra.mxu0 0.0
    %1350 = vmatprep.subr.mxu0 0.0
    %1351 = vmatpush1.msra.mxu0 0.0
    %1352 = vmatprep.subr.mxu0 0.0
    %1353 = vmatpush1.msra.mxu0 0.0
    %1354 = vmatprep.subr.mxu0 0.0
    %1355 = vmatpush1.msra.mxu0 0.0
    %1356 = vmatprep.subr.mxu0 0.0
    %1357 = vmatpush1.msra.mxu0 0.0
    %1358 = vmatprep.subr.mxu0 0.0
    %1359 = vmatpush1.msra.mxu0 0.0
    %1360 = vmatprep.subr.mxu0 0.0
    %1361 = vmatpush1.msra.mxu0 0.0
    %1362 = vmatprep.subr.mxu0 0.0
    %1363 = vmatpush1.msra.mxu0 0.0
    %1364 = vmatprep.subr.mxu0 0.0
    %1365 = vmatpush1.msra.mxu0 0.0
    %1366 = vmatprep.subr.mxu0 0.0
    %1367 = vmatpush1.msra.mxu0 0.0
    %1368 = vmatprep.subr.mxu0 0.0
    %1369 = vmatpush1.msra.mxu0 0.0
    %1370 = vmatprep.subr.mxu0 0.0
    %1371 = vmatpush1.msra.mxu0 0.0
    %1372 = vmatprep.subr.mxu0 0.0
    %1373 = vmatpush1.msra.mxu0 0.0
    %1374 = vmatprep.subr.mxu0 0.0
    %1375 = vmatpush1.msra.mxu0 0.0
    %1376 = vmatprep.subr.mxu0 0.0
    %1377 = vmatpush1.msra.mxu0 0.0
    %1378 = vmatprep.subr.mxu0 0.0
    %1379 = vmatpush1.msra.mxu0 0.0
    %1380 = vmatprep.subr.mxu0 0.0
    %1381 = vmatpush1.msra.mxu0 0.0
    %1382 = vmatprep.subr.mxu0 0.0
    %1383 = vmatpush1.msra.mxu0 0.0
    %1384 = vmatprep.subr.mxu0 0.0
    %1385 = vmatpush1.msra.mxu0 0.0
    %1386 = vmatprep.subr.mxu0 0.0
    %1387 = vmatpush1.msra.mxu0 0.0
    %1388 = vmatprep.subr.mxu0 0.0
    %1389 = vmatpush1.msra.mxu0 0.0
    %1390 = vmatprep.subr.mxu0 0.0
    %1391 = vmatpush1.msra.mxu0 0.0
    %1392 = vmatprep.subr.mxu0 0.0
    %1393 = vmatpush1.msra.mxu0 0.0
    %1394 = vmatprep.subr.mxu0 0.0
    %1395 = vmatpush1.msra.mxu0 0.0
    %1396 = vmatprep.subr.mxu0 0.0
    %1397 = vmatpush1.msra.mxu0 0.0
    %1398 = vmatprep.subr.mxu0 0.0
    %1399 = vmatpush1.msra.mxu0 0.0
    %1400 = vmatprep.subr.mxu0 0.0
    %1401 = vmatpush1.msra.mxu0 0.0
    %1402 = vmatprep.subr.mxu0 0.0
    %1403 = vmatpush1.msra.mxu0 0.0
    %1404 = vmatprep.subr.mxu0 0.0
    %1405 = vmatpush1.msra.mxu0 0.0
    %1406 = vmatprep.subr.mxu0 0.0
    %1407 = vmatpush1.msra.mxu0 0.0
    %1408 = vmatprep.subr.mxu0 0.0
    %1409 = vmatpush1.msra.mxu0 0.0
    %1410 = vmatprep.mubr.f32.mxu0 0.0
    %1411 = vmatmul.mubr.f32.gmra.mrb[0].mxu0 %v1344
    %v1412 = vpop.f32.mrb[0].mxu0
    %v1413 = vadd.f32 0.0, %v1412
    %v1414 = vpop.f32.mrb[0].mxu0
    %1415 = vdwg.mxu0
    %v1416 = vpack.c.bf16 %v1413, %v1337
    %v1417 = vld [vmem:[#allocation2 + $0x1ac] sm:$0xf]
    %v1418 = vld [vmem:[#allocation2 + $0x1e0] sm:$0xf]
    %v1419 = vld [vmem:[#allocation2 + $0x214] sm:$0xf]
    %v1420 = vld [vmem:[#allocation2 + $0x248] sm:$0xf]
    %v1425 = vunpack.c.l.b16 %v1417
    %v1426 = vunpack.c.l.b16 %v1418
    %v1427 = vunpack.c.l.b16 %v1419
    %v1428 = vunpack.c.l.b16 %v1420
    %v1429 = vpack.c.b16 %v1426, %v1425
    %v1430 = vpack.c.b16 %v1428, %v1427
    %v1434 = vsel %vm310, %v1416, 0
    %1436 = vmatprep.subr.bf16.mxu0 0
    %1437 = vmatpush1.bf16.msra.mxu0 %v1429
    %1438 = vmatprep.subr.bf16.mxu0 0
    %1439 = vmatpush1.bf16.msra.mxu0 %v1430
    %1440 = vmatprep.subr.bf16.mxu0 0
    %1441 = vmatpush1.bf16.msra.mxu0 0
    %1442 = vmatprep.subr.bf16.mxu0 0
    %1443 = vmatpush1.bf16.msra.mxu0 0
    %1444 = vmatprep.subr.bf16.mxu0 0
    %1445 = vmatpush1.bf16.msra.mxu0 0
    %1446 = vmatprep.subr.bf16.mxu0 0
    %1447 = vmatpush1.bf16.msra.mxu0 0
    %1448 = vmatprep.subr.bf16.mxu0 0
    %1449 = vmatpush1.bf16.msra.mxu0 0
    %1450 = vmatprep.subr.bf16.mxu0 0
    %1451 = vmatpush1.bf16.msra.mxu0 0
    %1452 = vmatprep.subr.bf16.mxu0 0
    %1453 = vmatpush1.bf16.msra.mxu0 0
    %1454 = vmatprep.subr.bf16.mxu0 0
    %1455 = vmatpush1.bf16.msra.mxu0 0
    %1456 = vmatprep.subr.bf16.mxu0 0
    %1457 = vmatpush1.bf16.msra.mxu0 0
    %1458 = vmatprep.subr.bf16.mxu0 0
    %1459 = vmatpush1.bf16.msra.mxu0 0
    %1460 = vmatprep.subr.bf16.mxu0 0
    %1461 = vmatpush1.bf16.msra.mxu0 0
    %1462 = vmatprep.subr.bf16.mxu0 0
    %1463 = vmatpush1.bf16.msra.mxu0 0
    %1464 = vmatprep.subr.bf16.mxu0 0
    %1465 = vmatpush1.bf16.msra.mxu0 0
    %1466 = vmatprep.subr.bf16.mxu0 0
    %1467 = vmatpush1.bf16.msra.mxu0 0
    %1468 = vmatprep.mubr.bf16.mxu0 0
    %1469 = vmatmul.mubr.bf16.gmra.mrb[0].mxu0 %v1434
    %v1470 = vpop.f32.mrb[0].mxu0
    %v1471 = vadd.f32 0.0, %v1470
    %v1472 = vpop.f32.mrb[0].mxu0
    %v1473 = vpop.f32.mrb[0].mxu0
    %v1474 = vadd.f32 0.0, %v1473
    %v1475 = vpop.f32.mrb[0].mxu0
    %1476 = vdwg.mxu0
    %v1477 = vadd.f32 %v1080, %v1471
    %v1478 = vadd.f32 %v1083, %v1474
    %1479 = vrot.lane.b32.xlu0 %v261, 32
    %v1480 = vpop.permute.xlu0 %1479
    %1481 = vrot.lane.b32.xlu0 %v263, 32
    %v1482 = vpop.permute.xlu0 %1481
    %v1483 = vsel %vm310, %v1480, 0
    %v1485 = vsel %vm310, %v1482, 0
    %1487 = vmatprep.subr.mxu0 0.0
    %1488 = vmatpush1.xpose.msra.mxu0 %v1485
    %1489 = vmatprep.subr.mxu0 0.0
    %1490 = vmatpush1.xpose.msra.mxu0 0.0
    %1491 = vmatprep.subr.mxu0 0.0
    %1492 = vmatpush1.xpose.msra.mxu0 0.0
    %1493 = vmatprep.subr.mxu0 0.0
    %1494 = vmatpush1.xpose.msra.mxu0 0.0
    %1495 = vmatprep.subr.mxu0 0.0
    %1496 = vmatpush1.xpose.msra.mxu0 0.0
    %1497 = vmatprep.subr.mxu0 0.0
    %1498 = vmatpush1.xpose.msra.mxu0 0.0
    %1499 = vmatprep.subr.mxu0 0.0
    %1500 = vmatpush1.xpose.msra.mxu0 0.0
    %1501 = vmatprep.subr.mxu0 0.0
    %1502 = vmatpush1.xpose.msra.mxu0 0.0
    %1503 = vmatprep.subr.mxu0 0.0
    %1504 = vmatpush1.xpose.msra.mxu0 0.0
    %1505 = vmatprep.subr.mxu0 0.0
    %1506 = vmatpush1.xpose.msra.mxu0 0.0
    %1507 = vmatprep.subr.mxu0 0.0
    %1508 = vmatpush1.xpose.msra.mxu0 0.0
    %1509 = vmatprep.subr.mxu0 0.0
    %1510 = vmatpush1.xpose.msra.mxu0 0.0
    %1511 = vmatprep.subr.mxu0 0.0
    %1512 = vmatpush1.xpose.msra.mxu0 0.0
    %1513 = vmatprep.subr.mxu0 0.0
    %1514 = vmatpush1.xpose.msra.mxu0 0.0
    %1515 = vmatprep.subr.mxu0 0.0
    %1516 = vmatpush1.xpose.msra.mxu0 0.0
    %1517 = vmatprep.subr.mxu0 0.0
    %1518 = vmatpush1.xpose.msra.mxu0 0.0
    %1519 = vmatprep.subr.mxu0 0.0
    %1520 = vmatpush1.xpose.msra.mxu0 0.0
    %1521 = vmatprep.subr.mxu0 0.0
    %1522 = vmatpush1.xpose.msra.mxu0 0.0
    %1523 = vmatprep.subr.mxu0 0.0
    %1524 = vmatpush1.xpose.msra.mxu0 0.0
    %1525 = vmatprep.subr.mxu0 0.0
    %1526 = vmatpush1.xpose.msra.mxu0 0.0
    %1527 = vmatprep.subr.mxu0 0.0
    %1528 = vmatpush1.xpose.msra.mxu0 0.0
    %1529 = vmatprep.subr.mxu0 0.0
    %1530 = vmatpush1.xpose.msra.mxu0 0.0
    %1531 = vmatprep.subr.mxu0 0.0
    %1532 = vmatpush1.xpose.msra.mxu0 0.0
    %1533 = vmatprep.subr.mxu0 0.0
    %1534 = vmatpush1.xpose.msra.mxu0 0.0
    %1535 = vmatprep.subr.mxu0 0.0
    %1536 = vmatpush1.xpose.msra.mxu0 0.0
    %1537 = vmatprep.subr.mxu0 0.0
    %1538 = vmatpush1.xpose.msra.mxu0 0.0
    %1539 = vmatprep.subr.mxu0 0.0
    %1540 = vmatpush1.xpose.msra.mxu0 0.0
    %1541 = vmatprep.subr.mxu0 0.0
    %1542 = vmatpush1.xpose.msra.mxu0 0.0
    %1543 = vmatprep.subr.mxu0 0.0
    %1544 = vmatpush1.xpose.msra.mxu0 0.0
    %1545 = vmatprep.subr.mxu0 0.0
    %1546 = vmatpush1.xpose.msra.mxu0 0.0
    %1547 = vmatprep.subr.mxu0 0.0
    %1548 = vmatpush1.xpose.msra.mxu0 0.0
    %1549 = vmatprep.subr.mxu0 0.0
    %1550 = vmatpush1.xpose.msra.mxu0 0.0
    %1551 = vmatprep.mubr.f32.mxu0 0.0
    %1552 = vmatmul.mubr.f32.gmra.mrb[0].mxu0 %v1483
    %v1553 = vpop.f32.mrb[0].mxu0
    %v1554 = vadd.f32 0.0, %v1553
    %v1555 = vpop.f32.mrb[0].mxu0
    %1556 = vdwg.mxu0
    %1557 = vrot.lane.b32.xlu0 %v265, 32
    %v1558 = vpop.permute.xlu0 %1557
    %1559 = vrot.lane.b32.xlu0 %v267, 32
    %v1560 = vpop.permute.xlu0 %1559
    %v1561 = vsel %vm310, %v1558, 0
    %v1563 = vsel %vm310, %v1560, 0
    %1565 = vmatprep.subr.mxu0 0.0
    %1566 = vmatpush1.xpose.msra.mxu0 %v1563
    %1567 = vmatprep.subr.mxu0 0.0
    %1568 = vmatpush1.xpose.msra.mxu0 0.0
    %1569 = vmatprep.subr.mxu0 0.0
    %1570 = vmatpush1.xpose.msra.mxu0 0.0
    %1571 = vmatprep.subr.mxu0 0.0
    %1572 = vmatpush1.xpose.msra.mxu0 0.0
    %1573 = vmatprep.subr.mxu0 0.0
    %1574 = vmatpush1.xpose.msra.mxu0 0.0
    %1575 = vmatprep.subr.mxu0 0.0
    %1576 = vmatpush1.xpose.msra.mxu0 0.0
    %1577 = vmatprep.subr.mxu0 0.0
    %1578 = vmatpush1.xpose.msra.mxu0 0.0
    %1579 = vmatprep.subr.mxu0 0.0
    %1580 = vmatpush1.xpose.msra.mxu0 0.0
    %1581 = vmatprep.subr.mxu0 0.0
    %1582 = vmatpush1.xpose.msra.mxu0 0.0
    %1583 = vmatprep.subr.mxu0 0.0
    %1584 = vmatpush1.xpose.msra.mxu0 0.0
    %1585 = vmatprep.subr.mxu0 0.0
    %1586 = vmatpush1.xpose.msra.mxu0 0.0
    %1587 = vmatprep.subr.mxu0 0.0
    %1588 = vmatpush1.xpose.msra.mxu0 0.0
    %1589 = vmatprep.subr.mxu0 0.0
    %1590 = vmatpush1.xpose.msra.mxu0 0.0
    %1591 = vmatprep.subr.mxu0 0.0
    %1592 = vmatpush1.xpose.msra.mxu0 0.0
    %1593 = vmatprep.subr.mxu0 0.0
    %1594 = vmatpush1.xpose.msra.mxu0 0.0
    %1595 = vmatprep.subr.mxu0 0.0
    %1596 = vmatpush1.xpose.msra.mxu0 0.0
    %1597 = vmatprep.subr.mxu0 0.0
    %1598 = vmatpush1.xpose.msra.mxu0 0.0
    %1599 = vmatprep.subr.mxu0 0.0
    %1600 = vmatpush1.xpose.msra.mxu0 0.0
    %1601 = vmatprep.subr.mxu0 0.0
    %1602 = vmatpush1.xpose.msra.mxu0 0.0
    %1603 = vmatprep.subr.mxu0 0.0
    %1604 = vmatpush1.xpose.msra.mxu0 0.0
    %1605 = vmatprep.subr.mxu0 0.0
    %1606 = vmatpush1.xpose.msra.mxu0 0.0
    %1607 = vmatprep.subr.mxu0 0.0
    %1608 = vmatpush1.xpose.msra.mxu0 0.0
    %1609 = vmatprep.subr.mxu0 0.0
    %1610 = vmatpush1.xpose.msra.mxu0 0.0
    %1611 = vmatprep.subr.mxu0 0.0
    %1612 = vmatpush1.xpose.msra.mxu0 0.0
    %1613 = vmatprep.subr.mxu0 0.0
    %1614 = vmatpush1.xpose.msra.mxu0 0.0
    %1615 = vmatprep.subr.mxu0 0.0
    %1616 = vmatpush1.xpose.msra.mxu0 0.0
    %1617 = vmatprep.subr.mxu0 0.0
    %1618 = vmatpush1.xpose.msra.mxu0 0.0
    %1619 = vmatprep.subr.mxu0 0.0
    %1620 = vmatpush1.xpose.msra.mxu0 0.0
    %1621 = vmatprep.subr.mxu0 0.0
    %1622 = vmatpush1.xpose.msra.mxu0 0.0
    %1623 = vmatprep.subr.mxu0 0.0
    %1624 = vmatpush1.xpose.msra.mxu0 0.0
    %1625 = vmatprep.subr.mxu0 0.0
    %1626 = vmatpush1.xpose.msra.mxu0 0.0
    %1627 = vmatprep.subr.mxu0 0.0
    %1628 = vmatpush1.xpose.msra.mxu0 0.0
    %1629 = vmatprep.mubr.f32.mxu0 0.0
    %1630 = vmatmul.mubr.f32.gmra.mrb[0].mxu0 %v1561
    %v1631 = vpop.f32.mrb[0].mxu0
    %v1632 = vadd.f32 0.0, %v1631
    %v1633 = vpop.f32.mrb[0].mxu0
    %1634 = vdwg.mxu0
    %v1635 = vsel %vm463, %v1554, -inf
    %1636 = vmax.xlane.f32.xlu0 %v1635
    %v1637 = vpop.xlane.xlu0 %1636
    %v1638 = vsel %vm463, %v1632, -inf
    %1639 = vmax.xlane.f32.xlu0 %v1638
    %v1640 = vpop.xlane.xlu0 %1639
    %v1641 = vsub.f32 %v1554, %v1637
    %v1642 = vsub.f32 %v1632, %v1640
    %v1643 = vmul.f32 %v1641, 1.442695
    %v1644 = vpow.pop %v1643
    %v1645 = vmul.f32 %v1642, 1.442695
    %v1646 = vpow.pop %v1645
    %v1647 = vsel %vm463, %v1644, 0.0
    %1648 = vadd.xlane.f32.xlu0 %v1647
    %v1649 = vpop.xlane.xlu0 %1648
    %v1650 = vsel %vm463, %v1646, 0.0
    %1651 = vadd.xlane.f32.xlu0 %v1650
    %v1652 = vpop.xlane.xlu0 %1651
    %v1653 = vrcp.pop %v1649
    %v1654 = vrcp.pop %v1652
    %v1655 = vmul.f32 %v1644, %v1653
    %v1656 = vmul.f32 %v1646, %v1654
    %1657 = vrot.lane.b32.xlu0 %v304, 32
    %v1658 = vpop.permute.xlu0 %1657
    %v1661 = vsel %vm463, %v1655, 0
    %1663 = vmatprep.subr.mxu0 0.0
    %1664 = vmatpush1.msra.mxu0 %v1658
    %1665 = vmatprep.subr.mxu0 0.0
    %1666 = vmatpush1.msra.mxu0 0.0
    %1667 = vmatprep.subr.mxu0 0.0
    %1668 = vmatpush1.msra.mxu0 0.0
    %1669 = vmatprep.subr.mxu0 0.0
    %1670 = vmatpush1.msra.mxu0 0.0
    %1671 = vmatprep.subr.mxu0 0.0
    %1672 = vmatpush1.msra.mxu0 0.0
    %1673 = vmatprep.subr.mxu0 0.0
    %1674 = vmatpush1.msra.mxu0 0.0
    %1675 = vmatprep.subr.mxu0 0.0
    %1676 = vmatpush1.msra.mxu0 0.0
    %1677 = vmatprep.subr.mxu0 0.0
    %1678 = vmatpush1.msra.mxu0 0.0
    %1679 = vmatprep.subr.mxu0 0.0
    %1680 = vmatpush1.msra.mxu0 0.0
    %1681 = vmatprep.subr.mxu0 0.0
    %1682 = vmatpush1.msra.mxu0 0.0
    %1683 = vmatprep.subr.mxu0 0.0
    %1684 = vmatpush1.msra.mxu0 0.0
    %1685 = vmatprep.subr.mxu0 0.0
    %1686 = vmatpush1.msra.mxu0 0.0
    %1687 = vmatprep.subr.mxu0 0.0
    %1688 = vmatpush1.msra.mxu0 0.0
    %1689 = vmatprep.subr.mxu0 0.0
    %1690 = vmatpush1.msra.mxu0 0.0
    %1691 = vmatprep.subr.mxu0 0.0
    %1692 = vmatpush1.msra.mxu0 0.0
    %1693 = vmatprep.subr.mxu0 0.0
    %1694 = vmatpush1.msra.mxu0 0.0
    %1695 = vmatprep.subr.mxu0 0.0
    %1696 = vmatpush1.msra.mxu0 0.0
    %1697 = vmatprep.subr.mxu0 0.0
    %1698 = vmatpush1.msra.mxu0 0.0
    %1699 = vmatprep.subr.mxu0 0.0
    %1700 = vmatpush1.msra.mxu0 0.0
    %1701 = vmatprep.subr.mxu0 0.0
    %1702 = vmatpush1.msra.mxu0 0.0
    %1703 = vmatprep.subr.mxu0 0.0
    %1704 = vmatpush1.msra.mxu0 0.0
    %1705 = vmatprep.subr.mxu0 0.0
    %1706 = vmatpush1.msra.mxu0 0.0
    %1707 = vmatprep.subr.mxu0 0.0
    %1708 = vmatpush1.msra.mxu0 0.0
    %1709 = vmatprep.subr.mxu0 0.0
    %1710 = vmatpush1.msra.mxu0 0.0
    %1711 = vmatprep.subr.mxu0 0.0
    %1712 = vmatpush1.msra.mxu0 0.0
    %1713 = vmatprep.subr.mxu0 0.0
    %1714 = vmatpush1.msra.mxu0 0.0
    %1715 = vmatprep.subr.mxu0 0.0
    %1716 = vmatpush1.msra.mxu0 0.0
    %1717 = vmatprep.subr.mxu0 0.0
    %1718 = vmatpush1.msra.mxu0 0.0
    %1719 = vmatprep.subr.mxu0 0.0
    %1720 = vmatpush1.msra.mxu0 0.0
    %1721 = vmatprep.subr.mxu0 0.0
    %1722 = vmatpush1.msra.mxu0 0.0
    %1723 = vmatprep.subr.mxu0 0.0
    %1724 = vmatpush1.msra.mxu0 0.0
    %1725 = vmatprep.subr.mxu0 0.0
    %1726 = vmatpush1.msra.mxu0 0.0
    %1727 = vmatprep.mubr.f32.mxu0 0.0
    %1728 = vmatmul.mubr.f32.gmra.mrb[0].mxu0 %v1661
    %v1729 = vpop.f32.mrb[0].mxu0
    %v1730 = vadd.f32 0.0, %v1729
    %v1731 = vpop.f32.mrb[0].mxu0
    %1732 = vdwg.mxu0
    %1733 = vrot.lane.b32.xlu0 %v307, 32
    %v1734 = vpop.permute.xlu0 %1733
    %v1737 = vsel %vm463, %v1656, 0
    %1739 = vmatprep.subr.mxu0 0.0
    %1740 = vmatpush1.msra.mxu0 %v1734
    %1741 = vmatprep.subr.mxu0 0.0
    %1742 = vmatpush1.msra.mxu0 0.0
    %1743 = vmatprep.subr.mxu0 0.0
    %1744 = vmatpush1.msra.mxu0 0.0
    %1745 = vmatprep.subr.mxu0 0.0
    %1746 = vmatpush1.msra.mxu0 0.0
    %1747 = vmatprep.subr.mxu0 0.0
    %1748 = vmatpush1.msra.mxu0 0.0
    %1749 = vmatprep.subr.mxu0 0.0
    %1750 = vmatpush1.msra.mxu0 0.0
    %1751 = vmatprep.subr.mxu0 0.0
    %1752 = vmatpush1.msra.mxu0 0.0
    %1753 = vmatprep.subr.mxu0 0.0
    %1754 = vmatpush1.msra.mxu0 0.0
    %1755 = vmatprep.subr.mxu0 0.0
    %1756 = vmatpush1.msra.mxu0 0.0
    %1757 = vmatprep.subr.mxu0 0.0
    %1758 = vmatpush1.msra.mxu0 0.0
    %1759 = vmatprep.subr.mxu0 0.0
    %1760 = vmatpush1.msra.mxu0 0.0
    %1761 = vmatprep.subr.mxu0 0.0
    %1762 = vmatpush1.msra.mxu0 0.0
    %1763 = vmatprep.subr.mxu0 0.0
    %1764 = vmatpush1.msra.mxu0 0.0
    %1765 = vmatprep.subr.mxu0 0.0
    %1766 = vmatpush1.msra.mxu0 0.0
    %1767 = vmatprep.subr.mxu0 0.0
    %1768 = vmatpush1.msra.mxu0 0.0
    %1769 = vmatprep.subr.mxu0 0.0
    %1770 = vmatpush1.msra.mxu0 0.0
    %1771 = vmatprep.subr.mxu0 0.0
    %1772 = vmatpush1.msra.mxu0 0.0
    %1773 = vmatprep.subr.mxu0 0.0
    %1774 = vmatpush1.msra.mxu0 0.0
    %1775 = vmatprep.subr.mxu0 0.0
    %1776 = vmatpush1.msra.mxu0 0.0
    %1777 = vmatprep.subr.mxu0 0.0
    %1778 = vmatpush1.msra.mxu0 0.0
    %1779 = vmatprep.subr.mxu0 0.0
    %1780 = vmatpush1.msra.mxu0 0.0
    %1781 = vmatprep.subr.mxu0 0.0
    %1782 = vmatpush1.msra.mxu0 0.0
    %1783 = vmatprep.subr.mxu0 0.0
    %1784 = vmatpush1.msra.mxu0 0.0
    %1785 = vmatprep.subr.mxu0 0.0
    %1786 = vmatpush1.msra.mxu0 0.0
    %1787 = vmatprep.subr.mxu0 0.0
    %1788 = vmatpush1.msra.mxu0 0.0
    %1789 = vmatprep.subr.mxu0 0.0
    %1790 = vmatpush1.msra.mxu0 0.0
    %1791 = vmatprep.subr.mxu0 0.0
    %1792 = vmatpush1.msra.mxu0 0.0
    %1793 = vmatprep.subr.mxu0 0.0
    %1794 = vmatpush1.msra.mxu0 0.0
    %1795 = vmatprep.subr.mxu0 0.0
    %1796 = vmatpush1.msra.mxu0 0.0
    %1797 = vmatprep.subr.mxu0 0.0
    %1798 = vmatpush1.msra.mxu0 0.0
    %1799 = vmatprep.subr.mxu0 0.0
    %1800 = vmatpush1.msra.mxu0 0.0
    %1801 = vmatprep.subr.mxu0 0.0
    %1802 = vmatpush1.msra.mxu0 0.0
    %1803 = vmatprep.mubr.f32.mxu0 0.0
    %1804 = vmatmul.mubr.f32.gmra.mrb[0].mxu0 %v1737
    %v1805 = vpop.f32.mrb[0].mxu0
    %v1806 = vadd.f32 0.0, %v1805
    %v1807 = vpop.f32.mrb[0].mxu0
    %1808 = vdwg.mxu0
    %v1809 = vpack.c.bf16 %v1806, %v1730
    %v1810 = vld [vmem:[#allocation2 + $0x27c] sm:$0xf]
    %v1811 = vld [vmem:[#allocation2 + $0x2b0] sm:$0xf]
    %v1812 = vld [vmem:[#allocation2 + $0x2e4] sm:$0xf]
    %v1813 = vld [vmem:[#allocation2 + $0x318] sm:$0xf]
    %v1818 = vunpack.c.l.b16 %v1810
    %v1819 = vunpack.c.l.b16 %v1811
    %v1820 = vunpack.c.l.b16 %v1812
    %v1821 = vunpack.c.l.b16 %v1813
    %v1822 = vpack.c.b16 %v1819, %v1818
    %v1823 = vpack.c.b16 %v1821, %v1820
    %v1827 = vsel %vm310, %v1809, 0
    %1829 = vmatprep.subr.bf16.mxu0 0
    %1830 = vmatpush1.bf16.msra.mxu0 %v1822
    %1831 = vmatprep.subr.bf16.mxu0 0
    %1832 = vmatpush1.bf16.msra.mxu0 %v1823
    %1833 = vmatprep.subr.bf16.mxu0 0
    %1834 = vmatpush1.bf16.msra.mxu0 0
    %1835 = vmatprep.subr.bf16.mxu0 0
    %1836 = vmatpush1.bf16.msra.mxu0 0
    %1837 = vmatprep.subr.bf16.mxu0 0
    %1838 = vmatpush1.bf16.msra.mxu0 0
    %1839 = vmatprep.subr.bf16.mxu0 0
    %1840 = vmatpush1.bf16.msra.mxu0 0
    %1841 = vmatprep.subr.bf16.mxu0 0
    %1842 = vmatpush1.bf16.msra.mxu0 0
    %1843 = vmatprep.subr.bf16.mxu0 0
    %1844 = vmatpush1.bf16.msra.mxu0 0
    %1845 = vmatprep.subr.bf16.mxu0 0
    %1846 = vmatpush1.bf16.msra.mxu0 0
    %1847 = vmatprep.subr.bf16.mxu0 0
    %1848 = vmatpush1.bf16.msra.mxu0 0
    %1849 = vmatprep.subr.bf16.mxu0 0
    %1850 = vmatpush1.bf16.msra.mxu0 0
    %1851 = vmatprep.subr.bf16.mxu0 0
    %1852 = vmatpush1.bf16.msra.mxu0 0
    %1853 = vmatprep.subr.bf16.mxu0 0
    %1854 = vmatpush1.bf16.msra.mxu0 0
    %1855 = vmatprep.subr.bf16.mxu0 0
    %1856 = vmatpush1.bf16.msra.mxu0 0
    %1857 = vmatprep.subr.bf16.mxu0 0
    %1858 = vmatpush1.bf16.msra.mxu0 0
    %1859 = vmatprep.subr.bf16.mxu0 0
    %1860 = vmatpush1.bf16.msra.mxu0 0
    %1861 = vmatprep.mubr.bf16.mxu0 0
    %1862 = vmatmul.mubr.bf16.gmra.mrb[0].mxu0 %v1827
    %v1863 = vpop.f32.mrb[0].mxu0
    %v1864 = vadd.f32 0.0, %v1863
    %v1865 = vpop.f32.mrb[0].mxu0
    %v1866 = vpop.f32.mrb[0].mxu0
    %v1867 = vadd.f32 0.0, %v1866
    %v1868 = vpop.f32.mrb[0].mxu0
    %1869 = vdwg.mxu0
    %v1870 = vadd.f32 %v1477, %v1864
    %v1871 = vadd.f32 %v1478, %v1867
    %v1872 = vld [vmem:[#allocation4 + $0x1] ss:$0 sm:$0xff]
    %v1873 = vadd.f32 %v1870, %v1872
    %v1874 = vadd.f32 %v1871, %v1872
    %v1875 = vadd.f32 %v46, %v1873
    %v1876 = vadd.f32 %v47, %v1874
    %v1877 = vld [vmem:[#allocation4 + $0x2] ss:$0 sm:$0xff]
    %v1878 = vld [vmem:[#allocation4 + $0x3] ss:$0 sm:$0xff]
    %1879 = vadd.xlane.f32.xlu0 %v1875
    %v1880 = vpop.xlane.xlu0 %1879
    %1881 = vadd.xlane.f32.xlu0 %v1876
    %v1882 = vpop.xlane.xlu0 %1881
    %v1883 = vrcp.pop 128.0
    %v1884 = vmul.f32 %v1880, %v1883
    %v1885 = vmul.f32 %v1882, %v1883
    %v1886 = vsub.f32 %v1875, %v1884
    %v1887 = vsub.f32 %v1876, %v1885
    %v1888 = vmul.f32 %v1886, %v1886
    %v1889 = vmul.f32 %v1887, %v1887
    %1890 = vadd.xlane.f32.xlu0 %v1888
    %v1891 = vpop.xlane.xlu0 %1890
    %1892 = vadd.xlane.f32.xlu0 %v1889
    %v1893 = vpop.xlane.xlu0 %1892
    %v1894 = vmul.f32 %v1891, %v1883
    %v1895 = vmul.f32 %v1893, %v1883
    %v1896 = vadd.f32 %v1894, 1e-05
    %v1897 = vadd.f32 %v1895, 1e-05
    %v1898 = vrsqrt.pop %v1896
    %v1899 = vrsqrt.pop %v1897
    %v1900 = vmul.f32 %v1886, %v1898
    %v1901 = vmul.f32 %v1887, %v1899
    %v1902 = vmul.f32 %v1900, %v1877
    %v1903 = vmul.f32 %v1901, %v1877
    %v1904 = vadd.f32 %v1902, %v1878
    %v1905 = vadd.f32 %v1903, %v1878
    %v1906 = vpack.c.bf16 %v1905, %v1904
    %v1907 = vld [vmem:[#allocation2 + $0x10] sm:$0xff]
    %v1908 = vld [vmem:[#allocation2 + $0x44] sm:$0xff]
    %v1909 = vld [vmem:[#allocation2 + $0x78] sm:$0xff]
    %v1910 = vld [vmem:[#allocation2 + $0xac] sm:$0xff]
    %v1911 = vld [vmem:[#allocation2 + $0xe0] sm:$0xff]
    %v1912 = vld [vmem:[#allocation2 + $0x114] sm:$0xff]
    %v1913 = vld [vmem:[#allocation2 + $0x148] sm:$0xff]
    %v1914 = vld [vmem:[#allocation2 + $0x17c] sm:$0xff]
    %v1915 = vld [vmem:[#allocation2 + $0x1b0] sm:$0xff]
    %v1916 = vld [vmem:[#allocation2 + $0x1e4] sm:$0xff]
    %v1917 = vld [vmem:[#allocation2 + $0x218] sm:$0xff]
    %v1918 = vld [vmem:[#allocation2 + $0x24c] sm:$0xff]
    %v1919 = vld [vmem:[#allocation2 + $0x280] sm:$0xff]
    %v1920 = vld [vmem:[#allocation2 + $0x2b4] sm:$0xff]
    %v1921 = vld [vmem:[#allocation2 + $0x2e8] sm:$0xff]
    %v1922 = vld [vmem:[#allocation2 + $0x31c] sm:$0xff]
    %s1923 = scalar_lea.vmem [#allocation4], 4
    %v1924 = vld [vmem:[%s1923] ss:$8 sm:$0x3]
    %v1926 = vlaneseq
    %v1927 = vshrl.u32 %v1926, 7
    %v1928 = vsub.s32 0, %v1927
    %v1929 = vrot.slane %v1924, %v1928
    %v1930 = vlaneseq
    %v1931 = vshrl.u32 %v1930, 7
    %v1932 = vsub.s32 1, %v1931
    %v1933 = vrot.slane %v1924, %v1932
    %v1952 = vunpack.c.l.b16 %v1907
    %v1953 = vunpack.c.h.b16 %v1907
    %v1954 = vunpack.c.l.b16 %v1908
    %v1955 = vunpack.c.h.b16 %v1908
    %v1956 = vunpack.c.l.b16 %v1909
    %v1957 = vunpack.c.h.b16 %v1909
    %v1958 = vunpack.c.l.b16 %v1910
    %v1959 = vunpack.c.h.b16 %v1910
    %v1960 = vunpack.c.l.b16 %v1911
    %v1961 = vunpack.c.h.b16 %v1911
    %v1962 = vunpack.c.l.b16 %v1912
    %v1963 = vunpack.c.h.b16 %v1912
    %v1964 = vunpack.c.l.b16 %v1913
    %v1965 = vunpack.c.h.b16 %v1913
    %v1966 = vunpack.c.l.b16 %v1914
    %v1967 = vunpack.c.h.b16 %v1914
    %v1968 = vunpack.c.l.b16 %v1915
    %v1969 = vunpack.c.h.b16 %v1915
    %v1970 = vunpack.c.l.b16 %v1916
    %v1971 = vunpack.c.h.b16 %v1916
    %v1972 = vunpack.c.l.b16 %v1917
    %v1973 = vunpack.c.h.b16 %v1917
    %v1974 = vunpack.c.l.b16 %v1918
    %v1975 = vunpack.c.h.b16 %v1918
    %v1976 = vunpack.c.l.b16 %v1919
    %v1977 = vunpack.c.h.b16 %v1919
    %v1978 = vunpack.c.l.b16 %v1920
    %v1979 = vunpack.c.h.b16 %v1920
    %v1980 = vunpack.c.l.b16 %v1921
    %v1981 = vunpack.c.h.b16 %v1921
    %v1982 = vunpack.c.l.b16 %v1922
    %v1983 = vunpack.c.h.b16 %v1922
    %v1984 = vpack.c.b16 %v1954, %v1952
    %v1985 = vpack.c.b16 %v1955, %v1953
    %v1986 = vpack.c.b16 %v1958, %v1956
    %v1987 = vpack.c.b16 %v1959, %v1957
    %v1988 = vpack.c.b16 %v1962, %v1960
    %v1989 = vpack.c.b16 %v1963, %v1961
    %v1990 = vpack.c.b16 %v1966, %v1964
    %v1991 = vpack.c.b16 %v1967, %v1965
    %v1992 = vpack.c.b16 %v1970, %v1968
    %v1993 = vpack.c.b16 %v1971, %v1969
    %v1994 = vpack.c.b16 %v1974, %v1972
    %v1995 = vpack.c.b16 %v1975, %v1973
    %v1996 = vpack.c.b16 %v1978, %v1976
    %v1997 = vpack.c.b16 %v1979, %v1977
    %v1998 = vpack.c.b16 %v1982, %v1980
    %v1999 = vpack.c.b16 %v1983, %v1981
    %2016 = vmatprep.subr.bf16.mxu0 %v1985
    %2017 = vmatpush1.bf16.msra.mxu0 %v1984
    %2018 = vmatprep.subr.bf16.mxu0 %v1987
    %2019 = vmatpush1.bf16.msra.mxu0 %v1986
    %2020 = vmatprep.subr.bf16.mxu0 %v1989
    %2021 = vmatpush1.bf16.msra.mxu0 %v1988
    %2022 = vmatprep.subr.bf16.mxu0 %v1991
    %2023 = vmatpush1.bf16.msra.mxu0 %v1990
    %2024 = vmatprep.subr.bf16.mxu0 %v1993
    %2025 = vmatpush1.bf16.msra.mxu0 %v1992
    %2026 = vmatprep.subr.bf16.mxu0 %v1995
    %2027 = vmatpush1.bf16.msra.mxu0 %v1994
    %2028 = vmatprep.subr.bf16.mxu0 %v1997
    %2029 = vmatpush1.bf16.msra.mxu0 %v1996
    %2030 = vmatprep.subr.bf16.mxu0 %v1999
    %2031 = vmatpush1.bf16.msra.mxu0 %v1998
    %2032 = vmatprep.subr.bf16.mxu0 0
    %2033 = vmatpush1.bf16.msra.mxu0 0
    %2034 = vmatprep.subr.bf16.mxu0 0
    %2035 = vmatpush1.bf16.msra.mxu0 0
    %2036 = vmatprep.subr.bf16.mxu0 0
    %2037 = vmatpush1.bf16.msra.mxu0 0
    %2038 = vmatprep.subr.bf16.mxu0 0
    %2039 = vmatpush1.bf16.msra.mxu0 0
    %2040 = vmatprep.subr.bf16.mxu0 0
    %2041 = vmatpush1.bf16.msra.mxu0 0
    %2042 = vmatprep.subr.bf16.mxu0 0
    %2043 = vmatpush1.bf16.msra.mxu0 0
    %2044 = vmatprep.subr.bf16.mxu0 0
    %2045 = vmatpush1.bf16.msra.mxu0 0
    %2046 = vmatprep.subr.bf16.mxu0 0
    %2047 = vmatpush1.bf16.msra.mxu0 0
    %2048 = vmatprep.mubr.bf16.mxu0 0
    %2049 = vmatmul.mubr.bf16.gmra.mrb[0].mxu0 %v1906
    %v2050 = vpop.f32.mrb[0].mxu0
    %v2051 = vadd.f32 %v1929, %v2050
    %v2052 = vpop.f32.mrb[0].mxu0
    %v2053 = vadd.f32 %v1933, %v2052
    %v2054 = vpop.f32.mrb[0].mxu0
    %v2055 = vadd.f32 %v1929, %v2054
    %v2056 = vpop.f32.mrb[0].mxu0
    %v2057 = vadd.f32 %v1933, %v2056
    %2058 = vdwg.mxu0
    %v2059 = vmax.f32 %v2051, 0.0
    %v2060 = vmax.f32 %v2053, 0.0
    %v2061 = vmax.f32 %v2055, 0.0
    %v2062 = vmax.f32 %v2057, 0.0
    %v2063 = vpack.c.bf16 %v2061, %v2059
    %v2064 = vpack.c.bf16 %v2062, %v2060
    %v2065 = vld [vmem:[%s2] sm:$0xf]
    %v2066 = vld [vmem:[%s2 + $0x4] sm:$0xf]
    %v2067 = vld [vmem:[%s2 + $0x8] sm:$0xf]
    %v2068 = vld [vmem:[%s2 + $0xc] sm:$0xf]
    %v2069 = vld [vmem:[%s2 + $0x10] sm:$0xf]
    %v2070 = vld [vmem:[%s2 + $0x14] sm:$0xf]
    %v2071 = vld [vmem:[%s2 + $0x18] sm:$0xf]
    %v2072 = vld [vmem:[%s2 + $0x1c] sm:$0xf]
    %v2073 = vld [vmem:[%s2 + $0x20] sm:$0xf]
    %v2074 = vld [vmem:[%s2 + $0x24] sm:$0xf]
    %v2075 = vld [vmem:[%s2 + $0x28] sm:$0xf]
    %v2076 = vld [vmem:[%s2 + $0x2c] sm:$0xf]
    %v2077 = vld [vmem:[%s2 + $0x30] sm:$0xf]
    %v2078 = vld [vmem:[%s2 + $0x34] sm:$0xf]
    %v2079 = vld [vmem:[%s2 + $0x38] sm:$0xf]
    %v2080 = vld [vmem:[%s2 + $0x3c] sm:$0xf]
    %v2081 = vld [vmem:[%s2 + $0x40] sm:$0xf]
    %v2082 = vld [vmem:[%s2 + $0x44] sm:$0xf]
    %v2083 = vld [vmem:[%s2 + $0x48] sm:$0xf]
    %v2084 = vld [vmem:[%s2 + $0x4c] sm:$0xf]
    %v2085 = vld [vmem:[%s2 + $0x50] sm:$0xf]
    %v2086 = vld [vmem:[%s2 + $0x54] sm:$0xf]
    %v2087 = vld [vmem:[%s2 + $0x58] sm:$0xf]
    %v2088 = vld [vmem:[%s2 + $0x5c] sm:$0xf]
    %v2089 = vld [vmem:[%s2 + $0x60] sm:$0xf]
    %v2090 = vld [vmem:[%s2 + $0x64] sm:$0xf]
    %v2091 = vld [vmem:[%s2 + $0x68] sm:$0xf]
    %v2092 = vld [vmem:[%s2 + $0x6c] sm:$0xf]
    %v2093 = vld [vmem:[%s2 + $0x70] sm:$0xf]
    %v2094 = vld [vmem:[%s2 + $0x74] sm:$0xf]
    %v2095 = vld [vmem:[%s2 + $0x78] sm:$0xf]
    %v2096 = vld [vmem:[%s2 + $0x7c] sm:$0xf]
    %v2097 = vld [vmem:[#allocation4 + $0x5] ss:$0 sm:$0xff]
    %v2130 = vunpack.c.l.b16 %v2065
    %v2131 = vunpack.c.l.b16 %v2066
    %v2132 = vunpack.c.l.b16 %v2067
    %v2133 = vunpack.c.l.b16 %v2068
    %v2134 = vunpack.c.l.b16 %v2069
    %v2135 = vunpack.c.l.b16 %v2070
    %v2136 = vunpack.c.l.b16 %v2071
    %v2137 = vunpack.c.l.b16 %v2072
    %v2138 = vunpack.c.l.b16 %v2073
    %v2139 = vunpack.c.l.b16 %v2074
    %v2140 = vunpack.c.l.b16 %v2075
    %v2141 = vunpack.c.l.b16 %v2076
    %v2142 = vunpack.c.l.b16 %v2077
    %v2143 = vunpack.c.l.b16 %v2078
    %v2144 = vunpack.c.l.b16 %v2079
    %v2145 = vunpack.c.l.b16 %v2080
    %v2146 = vunpack.c.l.b16 %v2081
    %v2147 = vunpack.c.l.b16 %v2082
    %v2148 = vunpack.c.l.b16 %v2083
    %v2149 = vunpack.c.l.b16 %v2084
    %v2150 = vunpack.c.l.b16 %v2085
    %v2151 = vunpack.c.l.b16 %v2086
    %v2152 = vunpack.c.l.b16 %v2087
    %v2153 = vunpack.c.l.b16 %v2088
    %v2154 = vunpack.c.l.b16 %v2089
    %v2155 = vunpack.c.l.b16 %v2090
    %v2156 = vunpack.c.l.b16 %v2091
    %v2157 = vunpack.c.l.b16 %v2092
    %v2158 = vunpack.c.l.b16 %v2093
    %v2159 = vunpack.c.l.b16 %v2094
    %v2160 = vunpack.c.l.b16 %v2095
    %v2161 = vunpack.c.l.b16 %v2096
    %v2162 = vpack.c.b16 %v2131, %v2130
    %v2163 = vpack.c.b16 %v2133, %v2132
    %v2164 = vpack.c.b16 %v2135, %v2134
    %v2165 = vpack.c.b16 %v2137, %v2136
    %v2166 = vpack.c.b16 %v2139, %v2138
    %v2167 = vpack.c.b16 %v2141, %v2140
    %v2168 = vpack.c.b16 %v2143, %v2142
    %v2169 = vpack.c.b16 %v2145, %v2144
    %v2170 = vpack.c.b16 %v2147, %v2146
    %v2171 = vpack.c.b16 %v2149, %v2148
    %v2172 = vpack.c.b16 %v2151, %v2150
    %v2173 = vpack.c.b16 %v2153, %v2152
    %v2174 = vpack.c.b16 %v2155, %v2154
    %v2175 = vpack.c.b16 %v2157, %v2156
    %v2176 = vpack.c.b16 %v2159, %v2158
    %v2177 = vpack.c.b16 %v2161, %v2160
    %2194 = vmatprep.subr.bf16.mxu0 0
    %2195 = vmatpush1.bf16.msra.mxu0 %v2162
    %2196 = vmatprep.subr.bf16.mxu0 0
    %2197 = vmatpush1.bf16.msra.mxu0 %v2163
    %2198 = vmatprep.subr.bf16.mxu0 0
    %2199 = vmatpush1.bf16.msra.mxu0 %v2164
    %2200 = vmatprep.subr.bf16.mxu0 0
    %2201 = vmatpush1.bf16.msra.mxu0 %v2165
    %2202 = vmatprep.subr.bf16.mxu0 0
    %2203 = vmatpush1.bf16.msra.mxu0 %v2166
    %2204 = vmatprep.subr.bf16.mxu0 0
    %2205 = vmatpush1.bf16.msra.mxu0 %v2167
    %2206 = vmatprep.subr.bf16.mxu0 0
    %2207 = vmatpush1.bf16.msra.mxu0 %v2168
    %2208 = vmatprep.subr.bf16.mxu0 0
    %2209 = vmatpush1.bf16.msra.mxu0 %v2169
    %2210 = vmatprep.subr.bf16.mxu0 0
    %2211 = vmatpush1.bf16.msra.mxu0 %v2170
    %2212 = vmatprep.subr.bf16.mxu0 0
    %2213 = vmatpush1.bf16.msra.mxu0 %v2171
    %2214 = vmatprep.subr.bf16.mxu0 0
    %2215 = vmatpush1.bf16.msra.mxu0 %v2172
    %2216 = vmatprep.subr.bf16.mxu0 0
    %2217 = vmatpush1.bf16.msra.mxu0 %v2173
    %2218 = vmatprep.subr.bf16.mxu0 0
    %2219 = vmatpush1.bf16.msra.mxu0 %v2174
    %2220 = vmatprep.subr.bf16.mxu0 0
    %2221 = vmatpush1.bf16.msra.mxu0 %v2175
    %2222 = vmatprep.subr.bf16.mxu0 0
    %2223 = vmatpush1.bf16.msra.mxu0 %v2176
    %2224 = vmatprep.subr.bf16.mxu0 0
    %2225 = vmatpush1.bf16.msra.mxu0 %v2177
    %2226 = vmatprep.mubr.bf16.mxu0 %v2064
    %2227 = vmatmul.mubr.bf16.gmra.mrb[0].mxu0 %v2063
    %v2228 = vpop.f32.mrb[0].mxu0
    %v2229 = vadd.f32 %v2097, %v2228
    %v2230 = vpop.f32.mrb[0].mxu0
    %v2231 = vpop.f32.mrb[0].mxu0
    %v2232 = vadd.f32 %v2097, %v2231
    %v2233 = vpop.f32.mrb[0].mxu0
    %2234 = vdwg.mxu0
    %v2235 = vadd.f32 %v1904, %v2229
    %v2236 = vadd.f32 %v1905, %v2232
    %v2237 = vld [vmem:[#allocation4 + $0x6] ss:$0 sm:$0xff]
    %v2238 = vld [vmem:[#allocation4 + $0x7] ss:$0 sm:$0xff]
    %2239 = vadd.xlane.f32.xlu0 %v2235
    %v2240 = vpop.xlane.xlu0 %2239
    %2241 = vadd.xlane.f32.xlu0 %v2236
    %v2242 = vpop.xlane.xlu0 %2241
    %v2243 = vmul.f32 %v2240, %v1883
    %v2244 = vmul.f32 %v2242, %v1883
    %v2245 = vsub.f32 %v2235, %v2243
    %v2246 = vsub.f32 %v2236, %v2244
    %v2247 = vmul.f32 %v2245, %v2245
    %v2248 = vmul.f32 %v2246, %v2246
    %2249 = vadd.xlane.f32.xlu0 %v2247
    %v2250 = vpop.xlane.xlu0 %2249
    %2251 = vadd.xlane.f32.xlu0 %v2248
    %v2252 = vpop.xlane.xlu0 %2251
    %v2253 = vmul.f32 %v2250, %v1883
    %v2254 = vmul.f32 %v2252, %v1883
    %v2255 = vadd.f32 %v2253, 1e-05
    %v2256 = vadd.f32 %v2254, 1e-05
    %v2257 = vrsqrt.pop %v2255
    %v2258 = vrsqrt.pop %v2256
    %v2259 = vmul.f32 %v2245, %v2257
    %v2260 = vmul.f32 %v2246, %v2258
    %v2261 = vmul.f32 %v2259, %v2237
    %v2262 = vmul.f32 %v2260, %v2237
    %v2263 = vadd.f32 %v2261, %v2238
    %v2264 = vadd.f32 %v2262, %v2238
    %v2265 = vpack.c.bf16 %v2264, %v2263
    %v2266 = vld [vmem:[#allocation2 + $0x18] sm:$0xff]
    %v2267 = vld [vmem:[#allocation2 + $0x20] sm:$0xf]
    %v2268 = vld [vmem:[#allocation2 + $0x4c] sm:$0xff]
    %v2269 = vld [vmem:[#allocation2 + $0x54] sm:$0xf]
    %v2270 = vld [vmem:[#allocation2 + $0x80] sm:$0xff]
    %v2271 = vld [vmem:[#allocation2 + $0x88] sm:$0xf]
    %v2272 = vld [vmem:[#allocation2 + $0xb4] sm:$0xff]
    %v2273 = vld [vmem:[#allocation2 + $0xbc] sm:$0xf]
    %v2274 = vld [vmem:[#allocation2 + $0xe8] sm:$0xff]
    %v2275 = vld [vmem:[#allocation2 + $0xf0] sm:$0xf]
    %v2276 = vld [vmem:[#allocation2 + $0x11c] sm:$0xff]
    %v2277 = vld [vmem:[#allocation2 + $0x124] sm:$0xf]
    %v2278 = vld [vmem:[#allocation2 + $0x150] sm:$0xff]
    %v2279 = vld [vmem:[#allocation2 + $0x158] sm:$0xf]
    %v2280 = vld [vmem:[#allocation2 + $0x184] sm:$0xff]
    %v2281 = vld [vmem:[#allocation2 + $0x18c] sm:$0xf]
    %v2282 = vld [vmem:[#allocation2 + $0x1b8] sm:$0xff]
    %v2283 = vld [vmem:[#allocation2 + $0x1c0] sm:$0xf]
    %v2284 = vld [vmem:[#allocation2 + $0x1ec] sm:$0xff]
    %v2285 = vld [vmem:[#allocation2 + $0x1f4] sm:$0xf]
    %v2286 = vld [vmem:[#allocation2 + $0x220] sm:$0xff]
    %v2287 = vld [vmem:[#allocation2 + $0x228] sm:$0xf]
    %v2288 = vld [vmem:[#allocation2 + $0x254] sm:$0xff]
    %v2289 = vld [vmem:[#allocation2 + $0x25c] sm:$0xf]
    %v2290 = vld [vmem:[#allocation2 + $0x288] sm:$0xff]
    %v2291 = vld [vmem:[#allocation2 + $0x290] sm:$0xf]
    %v2292 = vld [vmem:[#allocation2 + $0x2bc] sm:$0xff]
    %v2293 = vld [vmem:[#allocation2 + $0x2c4] sm:$0xf]
    %v2294 = vld [vmem:[#allocation2 + $0x2f0] sm:$0xff]
    %v2295 = vld [vmem:[#allocation2 + $0x2f8] sm:$0xf]
    %v2296 = vld [vmem:[#allocation2 + $0x324] sm:$0xff]
    %v2297 = vld [vmem:[#allocation2 + $0x32c] sm:$0xf]
    %s2298 = scalar_lea.vmem [#allocation4], 24
    %v2299 = vld [vmem:[%s2298] ss:$8 sm:$0x7]
    %v2301 = vlaneseq
    %v2302 = vshrl.u32 %v2301, 7
    %v2303 = vsub.s32 0, %v2302
    %v2304 = vrot.slane %v2299, %v2303
    %v2305 = vlaneseq
    %v2306 = vshrl.u32 %v2305, 7
    %v2307 = vsub.s32 1, %v2306
    %v2308 = vrot.slane %v2299, %v2307
    %v2309 = vlaneseq
    %v2310 = vshrl.u32 %v2309, 7
    %v2311 = vsub.s32 2, %v2310
    %v2312 = vrot.slane %v2299, %v2311
    %v2348 = vunpack.c.l.b16 %v2266
    %v2349 = vunpack.c.h.b16 %v2266
    %v2350 = vunpack.c.l.b16 %v2267
    %v2351 = vunpack.c.l.b16 %v2268
    %v2352 = vunpack.c.h.b16 %v2268
    %v2353 = vunpack.c.l.b16 %v2269
    %v2354 = vunpack.c.l.b16 %v2270
    %v2355 = vunpack.c.h.b16 %v2270
    %v2356 = vunpack.c.l.b16 %v2271
    %v2357 = vunpack.c.l.b16 %v2272
    %v2358 = vunpack.c.h.b16 %v2272
    %v2359 = vunpack.c.l.b16 %v2273
    %v2360 = vunpack.c.l.b16 %v2274
    %v2361 = vunpack.c.h.b16 %v2274
    %v2362 = vunpack.c.l.b16 %v2275
    %v2363 = vunpack.c.l.b16 %v2276
    %v2364 = vunpack.c.h.b16 %v2276
    %v2365 = vunpack.c.l.b16 %v2277
    %v2366 = vunpack.c.l.b16 %v2278
    %v2367 = vunpack.c.h.b16 %v2278
    %v2368 = vunpack.c.l.b16 %v2279
    %v2369 = vunpack.c.l.b16 %v2280
    %v2370 = vunpack.c.h.b16 %v2280
    %v2371 = vunpack.c.l.b16 %v2281
    %v2372 = vunpack.c.l.b16 %v2282
    %v2373 = vunpack.c.h.b16 %v2282
    %v2374 = vunpack.c.l.b16 %v2283
    %v2375 = vunpack.c.l.b16 %v2284
    %v2376 = vunpack.c.h.b16 %v2284
    %v2377 = vunpack.c.l.b16 %v2285
    %v2378 = vunpack.c.l.b16 %v2286
    %v2379 = vunpack.c.h.b16 %v2286
    %v2380 = vunpack.c.l.b16 %v2287
    %v2381 = vunpack.c.l.b16 %v2288
    %v2382 = vunpack.c.h.b16 %v2288
    %v2383 = vunpack.c.l.b16 %v2289
    %v2384 = vunpack.c.l.b16 %v2290
    %v2385 = vunpack.c.h.b16 %v2290
    %v2386 = vunpack.c.l.b16 %v2291
    %v2387 = vunpack.c.l.b16 %v2292
    %v2388 = vunpack.c.h.b16 %v2292
    %v2389 = vunpack.c.l.b16 %v2293
    %v2390 = vunpack.c.l.b16 %v2294
    %v2391 = vunpack.c.h.b16 %v2294
    %v2392 = vunpack.c.l.b16 %v2295
    %v2393 = vunpack.c.l.b16 %v2296
    %v2394 = vunpack.c.h.b16 %v2296
    %v2395 = vunpack.c.l.b16 %v2297
    %v2396 = vpack.c.b16 %v2351, %v2348
    %v2397 = vpack.c.b16 %v2352, %v2349
    %v2398 = vpack.c.b16 %v2353, %v2350
    %v2399 = vpack.c.b16 %v2357, %v2354
    %v2400 = vpack.c.b16 %v2358, %v2355
    %v2401 = vpack.c.b16 %v2359, %v2356
    %v2402 = vpack.c.b16 %v2363, %v2360
    %v2403 = vpack.c.b16 %v2364, %v2361
    %v2404 = vpack.c.b16 %v2365, %v2362
    %v2405 = vpack.c.b16 %v2369, %v2366
    %v2406 = vpack.c.b16 %v2370, %v2367
    %v2407 = vpack.c.b16 %v2371, %v2368
    %v2408 = vpack.c.b16 %v2375, %v2372
    %v2409 = vpack.c.b16 %v2376, %v2373
    %v2410 = vpack.c.b16 %v2377, %v2374
    %v2411 = vpack.c.b16 %v2381, %v2378
    %v2412 = vpack.c.b16 %v2382, %v2379
    %v2413 = vpack.c.b16 %v2383, %v2380
    %v2414 = vpack.c.b16 %v2387, %v2384
    %v2415 = vpack.c.b16 %v2388, %v2385
    %v2416 = vpack.c.b16 %v2389, %v2386
    %v2417 = vpack.c.b16 %v2393, %v2390
    %v2418 = vpack.c.b16 %v2394, %v2391
    %v2419 = vpack.c.b16 %v2395, %v2392
    %2444 = vmatprep.subr.bf16.mxu0 %v2397
    %2445 = vmatpush1.bf16.msra.mxu0 %v2396
    %2446 = vmatprep.subr.bf16.mxu0 %v2400
    %2447 = vmatpush1.bf16.msra.mxu0 %v2399
    %2448 = vmatprep.subr.bf16.mxu0 %v2403
    %2449 = vmatpush1.bf16.msra.mxu0 %v2402
    %2450 = vmatprep.subr.bf16.mxu0 %v2406
    %2451 = vmatpush1.bf16.msra.mxu0 %v2405
    %2452 = vmatprep.subr.bf16.mxu0 %v2409
    %2453 = vmatpush1.bf16.msra.mxu0 %v2408
    %2454 = vmatprep.subr.bf16.mxu0 %v2412
    %2455 = vmatpush1.bf16.msra.mxu0 %v2411
    %2456 = vmatprep.subr.bf16.mxu0 %v2415
    %2457 = vmatpush1.bf16.msra.mxu0 %v2414
    %2458 = vmatprep.subr.bf16.mxu0 %v2418
    %2459 = vmatpush1.bf16.msra.mxu0 %v2417
    %2460 = vmatprep.subr.bf16.mxu0 0
    %2461 = vmatpush1.bf16.msra.mxu0 0
    %2462 = vmatprep.subr.bf16.mxu0 0
    %2463 = vmatpush1.bf16.msra.mxu0 0
    %2464 = vmatprep.subr.bf16.mxu0 0
    %2465 = vmatpush1.bf16.msra.mxu0 0
    %2466 = vmatprep.subr.bf16.mxu0 0
    %2467 = vmatpush1.bf16.msra.mxu0 0
    %2468 = vmatprep.subr.bf16.mxu0 0
    %2469 = vmatpush1.bf16.msra.mxu0 0
    %2470 = vmatprep.subr.bf16.mxu0 0
    %2471 = vmatpush1.bf16.msra.mxu0 0
    %2472 = vmatprep.subr.bf16.mxu0 0
    %2473 = vmatpush1.bf16.msra.mxu0 0
    %2474 = vmatprep.subr.bf16.mxu0 0
    %2475 = vmatpush1.bf16.msra.mxu0 0
    %2476 = vmatprep.mubr.bf16.mxu0 0
    %2477 = vmatmul.mubr.bf16.gmra.mrb[0].mxu0 %v2265
    %v2478 = vpop.f32.mrb[0].mxu0
    %v2479 = vadd.f32 %v2304, %v2478
    %v2480 = vpop.f32.mrb[0].mxu0
    %v2481 = vadd.f32 %v2308, %v2480
    %v2482 = vpop.f32.mrb[0].mxu0
    %v2483 = vadd.f32 %v2304, %v2482
    %v2484 = vpop.f32.mrb[0].mxu0
    %v2485 = vadd.f32 %v2308, %v2484
    %2486 = vdwg.mxu0
    %2487 = vmatprep.subr.bf16.mxu0 0
    %2488 = vmatpush1.bf16.msra.mxu0 %v2398
    %2489 = vmatprep.subr.bf16.mxu0 0
    %2490 = vmatpush1.bf16.msra.mxu0 %v2401
    %2491 = vmatprep.subr.bf16.mxu0 0
    %2492 = vmatpush1.bf16.msra.mxu0 %v2404
    %2493 = vmatprep.subr.bf16.mxu0 0
    %2494 = vmatpush1.bf16.msra.mxu0 %v2407
    %2495 = vmatprep.subr.bf16.mxu0 0
    %2496 = vmatpush1.bf16.msra.mxu0 %v2410
    %2497 = vmatprep.subr.bf16.mxu0 0
    %2498 = vmatpush1.bf16.msra.mxu0 %v2413
    %2499 = vmatprep.subr.bf16.mxu0 0
    %2500 = vmatpush1.bf16.msra.mxu0 %v2416
    %2501 = vmatprep.subr.bf16.mxu0 0
    %2502 = vmatpush1.bf16.msra.mxu0 %v2419
    %2503 = vmatprep.subr.bf16.mxu0 0
    %2504 = vmatpush1.bf16.msra.mxu0 0
    %2505 = vmatprep.subr.bf16.mxu0 0
    %2506 = vmatpush1.bf16.msra.mxu0 0
    %2507 = vmatprep.subr.bf16.mxu0 0
    %2508 = vmatpush1.bf16.msra.mxu0 0
    %2509 = vmatprep.subr.bf16.mxu0 0
    %2510 = vmatpush1.bf16.msra.mxu0 0
    %2511 = vmatprep.subr.bf16.mxu0 0
    %2512 = vmatpush1.bf16.msra.mxu0 0
    %2513 = vmatprep.subr.bf16.mxu0 0
    %2514 = vmatpush1.bf16.msra.mxu0 0
    %2515 = vmatprep.subr.bf16.mxu0 0
    %2516 = vmatpush1.bf16.msra.mxu0 0
    %2517 = vmatprep.subr.bf16.mxu0 0
    %2518 = vmatpush1.bf16.msra.mxu0 0
    %2519 = vmatprep.mubr.bf16.mxu0 0
    %2520 = vmatmul.mubr.bf16.gmra.mrb[0].mxu0 %v2265
    %v2521 = vpop.f32.mrb[0].mxu0
    %v2522 = vadd.f32 %v2312, %v2521
    %v2523 = vpop.f32.mrb[0].mxu0
    %v2524 = vpop.f32.mrb[0].mxu0
    %v2525 = vadd.f32 %v2312, %v2524
    %v2526 = vpop.f32.mrb[0].mxu0
    %2527 = vdwg.mxu0
    %v2529 = vsel %vm310, %v2479, 0
    %v2532 = vsel %vm310, %v2481, 0
    %2534 = vmatprep.subr.mxu0 0.0
    %2535 = vmatpush1.xpose.msra.mxu0 %v2532
    %2536 = vmatprep.subr.mxu0 0.0
    %2537 = vmatpush1.xpose.msra.mxu0 0.0
    %2538 = vmatprep.subr.mxu0 0.0
    %2539 = vmatpush1.xpose.msra.mxu0 0.0
    %2540 = vmatprep.subr.mxu0 0.0
    %2541 = vmatpush1.xpose.msra.mxu0 0.0
    %2542 = vmatprep.subr.mxu0 0.0
    %2543 = vmatpush1.xpose.msra.mxu0 0.0
    %2544 = vmatprep.subr.mxu0 0.0
    %2545 = vmatpush1.xpose.msra.mxu0 0.0
    %2546 = vmatprep.subr.mxu0 0.0
    %2547 = vmatpush1.xpose.msra.mxu0 0.0
    %2548 = vmatprep.subr.mxu0 0.0
    %2549 = vmatpush1.xpose.msra.mxu0 0.0
    %2550 = vmatprep.subr.mxu0 0.0
    %2551 = vmatpush1.xpose.msra.mxu0 0.0
    %2552 = vmatprep.subr.mxu0 0.0
    %2553 = vmatpush1.xpose.msra.mxu0 0.0
    %2554 = vmatprep.subr.mxu0 0.0
    %2555 = vmatpush1.xpose.msra.mxu0 0.0
    %2556 = vmatprep.subr.mxu0 0.0
    %2557 = vmatpush1.xpose.msra.mxu0 0.0
    %2558 = vmatprep.subr.mxu0 0.0
    %2559 = vmatpush1.xpose.msra.mxu0 0.0
    %2560 = vmatprep.subr.mxu0 0.0
    %2561 = vmatpush1.xpose.msra.mxu0 0.0
    %2562 = vmatprep.subr.mxu0 0.0
    %2563 = vmatpush1.xpose.msra.mxu0 0.0
    %2564 = vmatprep.subr.mxu0 0.0
    %2565 = vmatpush1.xpose.msra.mxu0 0.0
    %2566 = vmatprep.subr.mxu0 0.0
    %2567 = vmatpush1.xpose.msra.mxu0 0.0
    %2568 = vmatprep.subr.mxu0 0.0
    %2569 = vmatpush1.xpose.msra.mxu0 0.0
    %2570 = vmatprep.subr.mxu0 0.0
    %2571 = vmatpush1.xpose.msra.mxu0 0.0
    %2572 = vmatprep.subr.mxu0 0.0
    %2573 = vmatpush1.xpose.msra.mxu0 0.0
    %2574 = vmatprep.subr.mxu0 0.0
    %2575 = vmatpush1.xpose.msra.mxu0 0.0
    %2576 = vmatprep.subr.mxu0 0.0
    %2577 = vmatpush1.xpose.msra.mxu0 0.0
    %2578 = vmatprep.subr.mxu0 0.0
    %2579 = vmatpush1.xpose.msra.mxu0 0.0
    %2580 = vmatprep.subr.mxu0 0.0
    %2581 = vmatpush1.xpose.msra.mxu0 0.0
    %2582 = vmatprep.subr.mxu0 0.0
    %2583 = vmatpush1.xpose.msra.mxu0 0.0
    %2584 = vmatprep.subr.mxu0 0.0
    %2585 = vmatpush1.xpose.msra.mxu0 0.0
    %2586 = vmatprep.subr.mxu0 0.0
    %2587 = vmatpush1.xpose.msra.mxu0 0.0
    %2588 = vmatprep.subr.mxu0 0.0
    %2589 = vmatpush1.xpose.msra.mxu0 0.0
    %2590 = vmatprep.subr.mxu0 0.0
    %2591 = vmatpush1.xpose.msra.mxu0 0.0
    %2592 = vmatprep.subr.mxu0 0.0
    %2593 = vmatpush1.xpose.msra.mxu0 0.0
    %2594 = vmatprep.subr.mxu0 0.0
    %2595 = vmatpush1.xpose.msra.mxu0 0.0
    %2596 = vmatprep.subr.mxu0 0.0
    %2597 = vmatpush1.xpose.msra.mxu0 0.0
    %2598 = vmatprep.mubr.f32.mxu0 0.0
    %2599 = vmatmul.mubr.f32.gmra.mrb[0].mxu0 %v2529
    %v2600 = vpop.f32.mrb[0].mxu0
    %v2601 = vadd.f32 0.0, %v2600
    %v2602 = vpop.f32.mrb[0].mxu0
    %2603 = vdwg.mxu0
    %v2605 = vsel %vm310, %v2483, 0
    %v2608 = vsel %vm310, %v2485, 0
    %2610 = vmatprep.subr.mxu0 0.0
    %2611 = vmatpush1.xpose.msra.mxu0 %v2608
    %2612 = vmatprep.subr.mxu0 0.0
    %2613 = vmatpush1.xpose.msra.mxu0 0.0
    %2614 = vmatprep.subr.mxu0 0.0
    %2615 = vmatpush1.xpose.msra.mxu0 0.0
    %2616 = vmatprep.subr.mxu0 0.0
    %2617 = vmatpush1.xpose.msra.mxu0 0.0
    %2618 = vmatprep.subr.mxu0 0.0
    %2619 = vmatpush1.xpose.msra.mxu0 0.0
    %2620 = vmatprep.subr.mxu0 0.0
    %2621 = vmatpush1.xpose.msra.mxu0 0.0
    %2622 = vmatprep.subr.mxu0 0.0
    %2623 = vmatpush1.xpose.msra.mxu0 0.0
    %2624 = vmatprep.subr.mxu0 0.0
    %2625 = vmatpush1.xpose.msra.mxu0 0.0
    %2626 = vmatprep.subr.mxu0 0.0
    %2627 = vmatpush1.xpose.msra.mxu0 0.0
    %2628 = vmatprep.subr.mxu0 0.0
    %2629 = vmatpush1.xpose.msra.mxu0 0.0
    %2630 = vmatprep.subr.mxu0 0.0
    %2631 = vmatpush1.xpose.msra.mxu0 0.0
    %2632 = vmatprep.subr.mxu0 0.0
    %2633 = vmatpush1.xpose.msra.mxu0 0.0
    %2634 = vmatprep.subr.mxu0 0.0
    %2635 = vmatpush1.xpose.msra.mxu0 0.0
    %2636 = vmatprep.subr.mxu0 0.0
    %2637 = vmatpush1.xpose.msra.mxu0 0.0
    %2638 = vmatprep.subr.mxu0 0.0
    %2639 = vmatpush1.xpose.msra.mxu0 0.0
    %2640 = vmatprep.subr.mxu0 0.0
    %2641 = vmatpush1.xpose.msra.mxu0 0.0
    %2642 = vmatprep.subr.mxu0 0.0
    %2643 = vmatpush1.xpose.msra.mxu0 0.0
    %2644 = vmatprep.subr.mxu0 0.0
    %2645 = vmatpush1.xpose.msra.mxu0 0.0
    %2646 = vmatprep.subr.mxu0 0.0
    %2647 = vmatpush1.xpose.msra.mxu0 0.0
    %2648 = vmatprep.subr.mxu0 0.0
    %2649 = vmatpush1.xpose.msra.mxu0 0.0
    %2650 = vmatprep.subr.mxu0 0.0
    %2651 = vmatpush1.xpose.msra.mxu0 0.0
    %2652 = vmatprep.subr.mxu0 0.0
    %2653 = vmatpush1.xpose.msra.mxu0 0.0
    %2654 = vmatprep.subr.mxu0 0.0
    %2655 = vmatpush1.xpose.msra.mxu0 0.0
    %2656 = vmatprep.subr.mxu0 0.0
    %2657 = vmatpush1.xpose.msra.mxu0 0.0
    %2658 = vmatprep.subr.mxu0 0.0
    %2659 = vmatpush1.xpose.msra.mxu0 0.0
    %2660 = vmatprep.subr.mxu0 0.0
    %2661 = vmatpush1.xpose.msra.mxu0 0.0
    %2662 = vmatprep.subr.mxu0 0.0
    %2663 = vmatpush1.xpose.msra.mxu0 0.0
    %2664 = vmatprep.subr.mxu0 0.0
    %2665 = vmatpush1.xpose.msra.mxu0 0.0
    %2666 = vmatprep.subr.mxu0 0.0
    %2667 = vmatpush1.xpose.msra.mxu0 0.0
    %2668 = vmatprep.subr.mxu0 0.0
    %2669 = vmatpush1.xpose.msra.mxu0 0.0
    %2670 = vmatprep.subr.mxu0 0.0
    %2671 = vmatpush1.xpose.msra.mxu0 0.0
    %2672 = vmatprep.subr.mxu0 0.0
    %2673 = vmatpush1.xpose.msra.mxu0 0.0
    %2674 = vmatprep.mubr.f32.mxu0 0.0
    %2675 = vmatmul.mubr.f32.gmra.mrb[0].mxu0 %v2605
    %v2676 = vpop.f32.mrb[0].mxu0
    %v2677 = vadd.f32 0.0, %v2676
    %v2678 = vpop.f32.mrb[0].mxu0
    %2679 = vdwg.mxu0
    %v2680 = vsel %vm463, %v2601, -inf
    %2681 = vmax.xlane.f32.xlu0 %v2680
    %v2682 = vpop.xlane.xlu0 %2681
    %v2683 = vsel %vm463, %v2677, -inf
    %2684 = vmax.xlane.f32.xlu0 %v2683
    %v2685 = vpop.xlane.xlu0 %2684
    %v2686 = vsub.f32 %v2601, %v2682
    %v2687 = vsub.f32 %v2677, %v2685
    %v2688 = vmul.f32 %v2686, 1.442695
    %v2689 = vpow.pop %v2688
    %v2690 = vmul.f32 %v2687, 1.442695
    %v2691 = vpow.pop %v2690
    %v2692 = vsel %vm463, %v2689, 0.0
    %2693 = vadd.xlane.f32.xlu0 %v2692
    %v2694 = vpop.xlane.xlu0 %2693
    %v2695 = vsel %vm463, %v2691, 0.0
    %2696 = vadd.xlane.f32.xlu0 %v2695
    %v2697 = vpop.xlane.xlu0 %2696
    %v2698 = vrcp.pop %v2694
    %v2699 = vrcp.pop %v2697
    %v2700 = vmul.f32 %v2689, %v2698
    %v2701 = vmul.f32 %v2691, %v2699
    %v2703 = vsel %vm463, %v2700, 0
    %2705 = vmatprep.subr.mxu0 0.0
    %2706 = vmatpush1.msra.mxu0 %v2522
    %2707 = vmatprep.subr.mxu0 0.0
    %2708 = vmatpush1.msra.mxu0 0.0
    %2709 = vmatprep.subr.mxu0 0.0
    %2710 = vmatpush1.msra.mxu0 0.0
    %2711 = vmatprep.subr.mxu0 0.0
    %2712 = vmatpush1.msra.mxu0 0.0
    %2713 = vmatprep.subr.mxu0 0.0
    %2714 = vmatpush1.msra.mxu0 0.0
    %2715 = vmatprep.subr.mxu0 0.0
    %2716 = vmatpush1.msra.mxu0 0.0
    %2717 = vmatprep.subr.mxu0 0.0
    %2718 = vmatpush1.msra.mxu0 0.0
    %2719 = vmatprep.subr.mxu0 0.0
    %2720 = vmatpush1.msra.mxu0 0.0
    %2721 = vmatprep.subr.mxu0 0.0
    %2722 = vmatpush1.msra.mxu0 0.0
    %2723 = vmatprep.subr.mxu0 0.0
    %2724 = vmatpush1.msra.mxu0 0.0
    %2725 = vmatprep.subr.mxu0 0.0
    %2726 = vmatpush1.msra.mxu0 0.0
    %2727 = vmatprep.subr.mxu0 0.0
    %2728 = vmatpush1.msra.mxu0 0.0
    %2729 = vmatprep.subr.mxu0 0.0
    %2730 = vmatpush1.msra.mxu0 0.0
    %2731 = vmatprep.subr.mxu0 0.0
    %2732 = vmatpush1.msra.mxu0 0.0
    %2733 = vmatprep.subr.mxu0 0.0
    %2734 = vmatpush1.msra.mxu0 0.0
    %2735 = vmatprep.subr.mxu0 0.0
    %2736 = vmatpush1.msra.mxu0 0.0
    %2737 = vmatprep.subr.mxu0 0.0
    %2738 = vmatpush1.msra.mxu0 0.0
    %2739 = vmatprep.subr.mxu0 0.0
    %2740 = vmatpush1.msra.mxu0 0.0
    %2741 = vmatprep.subr.mxu0 0.0
    %2742 = vmatpush1.msra.mxu0 0.0
    %2743 = vmatprep.subr.mxu0 0.0
    %2744 = vmatpush1.msra.mxu0 0.0
    %2745 = vmatprep.subr.mxu0 0.0
    %2746 = vmatpush1.msra.mxu0 0.0
    %2747 = vmatprep.subr.mxu0 0.0
    %2748 = vmatpush1.msra.mxu0 0.0
    %2749 = vmatprep.subr.mxu0 0.0
    %2750 = vmatpush1.msra.mxu0 0.0
    %2751 = vmatprep.subr.mxu0 0.0
    %2752 = vmatpush1.msra.mxu0 0.0
    %2753 = vmatprep.subr.mxu0 0.0
    %2754 = vmatpush1.msra.mxu0 0.0
    %2755 = vmatprep.subr.mxu0 0.0
    %2756 = vmatpush1.msra.mxu0 0.0
    %2757 = vmatprep.subr.mxu0 0.0
    %2758 = vmatpush1.msra.mxu0 0.0
    %2759 = vmatprep.subr.mxu0 0.0
    %2760 = vmatpush1.msra.mxu0 0.0
    %2761 = vmatprep.subr.mxu0 0.0
    %2762 = vmatpush1.msra.mxu0 0.0
    %2763 = vmatprep.subr.mxu0 0.0
    %2764 = vmatpush1.msra.mxu0 0.0
    %2765 = vmatprep.subr.mxu0 0.0
    %2766 = vmatpush1.msra.mxu0 0.0
    %2767 = vmatprep.subr.mxu0 0.0
    %2768 = vmatpush1.msra.mxu0 0.0
    %2769 = vmatprep.mubr.f32.mxu0 0.0
    %2770 = vmatmul.mubr.f32.gmra.mrb[0].mxu0 %v2703
    %v2771 = vpop.f32.mrb[0].mxu0
    %v2772 = vadd.f32 0.0, %v2771
    %v2773 = vpop.f32.mrb[0].mxu0
    %2774 = vdwg.mxu0
    %v2776 = vsel %vm463, %v2701, 0
    %2778 = vmatprep.subr.mxu0 0.0
    %2779 = vmatpush1.msra.mxu0 %v2525
    %2780 = vmatprep.subr.mxu0 0.0
    %2781 = vmatpush1.msra.mxu0 0.0
    %2782 = vmatprep.subr.mxu0 0.0
    %2783 = vmatpush1.msra.mxu0 0.0
    %2784 = vmatprep.subr.mxu0 0.0
    %2785 = vmatpush1.msra.mxu0 0.0
    %2786 = vmatprep.subr.mxu0 0.0
    %2787 = vmatpush1.msra.mxu0 0.0
    %2788 = vmatprep.subr.mxu0 0.0
    %2789 = vmatpush1.msra.mxu0 0.0
    %2790 = vmatprep.subr.mxu0 0.0
    %2791 = vmatpush1.msra.mxu0 0.0
    %2792 = vmatprep.subr.mxu0 0.0
    %2793 = vmatpush1.msra.mxu0 0.0
    %2794 = vmatprep.subr.mxu0 0.0
    %2795 = vmatpush1.msra.mxu0 0.0
    %2796 = vmatprep.subr.mxu0 0.0
    %2797 = vmatpush1.msra.mxu0 0.0
    %2798 = vmatprep.subr.mxu0 0.0
    %2799 = vmatpush1.msra.mxu0 0.0
    %2800 = vmatprep.subr.mxu0 0.0
    %2801 = vmatpush1.msra.mxu0 0.0
    %2802 = vmatprep.subr.mxu0 0.0
    %2803 = vmatpush1.msra.mxu0 0.0
    %2804 = vmatprep.subr.mxu0 0.0
    %2805 = vmatpush1.msra.mxu0 0.0
    %2806 = vmatprep.subr.mxu0 0.0
    %2807 = vmatpush1.msra.mxu0 0.0
    %2808 = vmatprep.subr.mxu0 0.0
    %2809 = vmatpush1.msra.mxu0 0.0
    %2810 = vmatprep.subr.mxu0 0.0
    %2811 = vmatpush1.msra.mxu0 0.0
    %2812 = vmatprep.subr.mxu0 0.0
    %2813 = vmatpush1.msra.mxu0 0.0
    %2814 = vmatprep.subr.mxu0 0.0
    %2815 = vmatpush1.msra.mxu0 0.0
    %2816 = vmatprep.subr.mxu0 0.0
    %2817 = vmatpush1.msra.mxu0 0.0
    %2818 = vmatprep.subr.mxu0 0.0
    %2819 = vmatpush1.msra.mxu0 0.0
    %2820 = vmatprep.subr.mxu0 0.0
    %2821 = vmatpush1.msra.mxu0 0.0
    %2822 = vmatprep.subr.mxu0 0.0
    %2823 = vmatpush1.msra.mxu0 0.0
    %2824 = vmatprep.subr.mxu0 0.0
    %2825 = vmatpush1.msra.mxu0 0.0
    %2826 = vmatprep.subr.mxu0 0.0
    %2827 = vmatpush1.msra.mxu0 0.0
    %2828 = vmatprep.subr.mxu0 0.0
    %2829 = vmatpush1.msra.mxu0 0.0
    %2830 = vmatprep.subr.mxu0 0.0
    %2831 = vmatpush1.msra.mxu0 0.0
    %2832 = vmatprep.subr.mxu0 0.0
    %2833 = vmatpush1.msra.mxu0 0.0
    %2834 = vmatprep.subr.mxu0 0.0
    %2835 = vmatpush1.msra.mxu0 0.0
    %2836 = vmatprep.subr.mxu0 0.0
    %2837 = vmatpush1.msra.mxu0 0.0
    %2838 = vmatprep.subr.mxu0 0.0
    %2839 = vmatpush1.msra.mxu0 0.0
    %2840 = vmatprep.subr.mxu0 0.0
    %2841 = vmatpush1.msra.mxu0 0.0
    %2842 = vmatprep.mubr.f32.mxu0 0.0
    %2843 = vmatmul.mubr.f32.gmra.mrb[0].mxu0 %v2776
    %v2844 = vpop.f32.mrb[0].mxu0
    %v2845 = vadd.f32 0.0, %v2844
    %v2846 = vpop.f32.mrb[0].mxu0
    %2847 = vdwg.mxu0
    %v2848 = vpack.c.bf16 %v2845, %v2772
    %v2849 = vld [vmem:[#allocation2 + $0x24] sm:$0xf]
    %v2850 = vld [vmem:[#allocation2 + $0x58] sm:$0xf]
    %v2851 = vld [vmem:[#allocation2 + $0x8c] sm:$0xf]
    %v2852 = vld [vmem:[#allocation2 + $0xc0] sm:$0xf]
    %2853 = vrot.lane.b32.xlu0 %v2479, 96
    %v2854 = vpop.permute.xlu0 %2853
    %2855 = vrot.lane.b32.xlu0 %v2481, 96
    %v2856 = vpop.permute.xlu0 %2855
    %v2857 = vsel %vm310, %v2854, 0
    %v2859 = vsel %vm310, %v2856, 0
    %2861 = vmatprep.subr.mxu0 0.0
    %2862 = vmatpush1.xpose.msra.mxu0 %v2859
    %2863 = vmatprep.subr.mxu0 0.0
    %2864 = vmatpush1.xpose.msra.mxu0 0.0
    %2865 = vmatprep.subr.mxu0 0.0
    %2866 = vmatpush1.xpose.msra.mxu0 0.0
    %2867 = vmatprep.subr.mxu0 0.0
    %2868 = vmatpush1.xpose.msra.mxu0 0.0
    %2869 = vmatprep.subr.mxu0 0.0
    %2870 = vmatpush1.xpose.msra.mxu0 0.0
    %2871 = vmatprep.subr.mxu0 0.0
    %2872 = vmatpush1.xpose.msra.mxu0 0.0
    %2873 = vmatprep.subr.mxu0 0.0
    %2874 = vmatpush1.xpose.msra.mxu0 0.0
    %2875 = vmatprep.subr.mxu0 0.0
    %2876 = vmatpush1.xpose.msra.mxu0 0.0
    %2877 = vmatprep.subr.mxu0 0.0
    %2878 = vmatpush1.xpose.msra.mxu0 0.0
    %2879 = vmatprep.subr.mxu0 0.0
    %2880 = vmatpush1.xpose.msra.mxu0 0.0
    %2881 = vmatprep.subr.mxu0 0.0
    %2882 = vmatpush1.xpose.msra.mxu0 0.0
    %2883 = vmatprep.subr.mxu0 0.0
    %2884 = vmatpush1.xpose.msra.mxu0 0.0
    %2885 = vmatprep.subr.mxu0 0.0
    %2886 = vmatpush1.xpose.msra.mxu0 0.0
    %2887 = vmatprep.subr.mxu0 0.0
    %2888 = vmatpush1.xpose.msra.mxu0 0.0
    %2889 = vmatprep.subr.mxu0 0.0
    %2890 = vmatpush1.xpose.msra.mxu0 0.0
    %2891 = vmatprep.subr.mxu0 0.0
    %2892 = vmatpush1.xpose.msra.mxu0 0.0
    %2893 = vmatprep.subr.mxu0 0.0
    %2894 = vmatpush1.xpose.msra.mxu0 0.0
    %2895 = vmatprep.subr.mxu0 0.0
    %2896 = vmatpush1.xpose.msra.mxu0 0.0
    %2897 = vmatprep.subr.mxu0 0.0
    %2898 = vmatpush1.xpose.msra.mxu0 0.0
    %2899 = vmatprep.subr.mxu0 0.0
    %2900 = vmatpush1.xpose.msra.mxu0 0.0
    %2901 = vmatprep.subr.mxu0 0.0
    %2902 = vmatpush1.xpose.msra.mxu0 0.0
    %2903 = vmatprep.subr.mxu0 0.0
    %2904 = vmatpush1.xpose.msra.mxu0 0.0
    %2905 = vmatprep.subr.mxu0 0.0
    %2906 = vmatpush1.xpose.msra.mxu0 0.0
    %2907 = vmatprep.subr.mxu0 0.0
    %2908 = vmatpush1.xpose.msra.mxu0 0.0
    %2909 = vmatprep.subr.mxu0 0.0
    %2910 = vmatpush1.xpose.msra.mxu0 0.0
    %2911 = vmatprep.subr.mxu0 0.0
    %2912 = vmatpush1.xpose.msra.mxu0 0.0
    %2913 = vmatprep.subr.mxu0 0.0
    %2914 = vmatpush1.xpose.msra.mxu0 0.0
    %2915 = vmatprep.subr.mxu0 0.0
    %2916 = vmatpush1.xpose.msra.mxu0 0.0
    %2917 = vmatprep.subr.mxu0 0.0
    %2918 = vmatpush1.xpose.msra.mxu0 0.0
    %2919 = vmatprep.subr.mxu0 0.0
    %2920 = vmatpush1.xpose.msra.mxu0 0.0
    %2921 = vmatprep.subr.mxu0 0.0
    %2922 = vmatpush1.xpose.msra.mxu0 0.0
    %2923 = vmatprep.subr.mxu0 0.0
    %2924 = vmatpush1.xpose.msra.mxu0 0.0
    %2925 = vmatprep.mubr.f32.mxu0 0.0
    %2926 = vmatmul.mubr.f32.gmra.mrb[0].mxu0 %v2857
    %v2927 = vpop.f32.mrb[0].mxu0
    %v2928 = vadd.f32 0.0, %v2927
    %v2929 = vpop.f32.mrb[0].mxu0
    %2930 = vdwg.mxu0
    %2931 = vrot.lane.b32.xlu0 %v2483, 96
    %v2932 = vpop.permute.xlu0 %2931
    %2933 = vrot.lane.b32.xlu0 %v2485, 96
    %v2934 = vpop.permute.xlu0 %2933
    %v2935 = vsel %vm310, %v2932, 0
    %v2937 = vsel %vm310, %v2934, 0
    %2939 = vmatprep.subr.mxu0 0.0
    %2940 = vmatpush1.xpose.msra.mxu0 %v2937
    %2941 = vmatprep.subr.mxu0 0.0
    %2942 = vmatpush1.xpose.msra.mxu0 0.0
    %2943 = vmatprep.subr.mxu0 0.0
    %2944 = vmatpush1.xpose.msra.mxu0 0.0
    %2945 = vmatprep.subr.mxu0 0.0
    %2946 = vmatpush1.xpose.msra.mxu0 0.0
    %2947 = vmatprep.subr.mxu0 0.0
    %2948 = vmatpush1.xpose.msra.mxu0 0.0
    %2949 = vmatprep.subr.mxu0 0.0
    %2950 = vmatpush1.xpose.msra.mxu0 0.0
    %2951 = vmatprep.subr.mxu0 0.0
    %2952 = vmatpush1.xpose.msra.mxu0 0.0
    %2953 = vmatprep.subr.mxu0 0.0
    %2954 = vmatpush1.xpose.msra.mxu0 0.0
    %2955 = vmatprep.subr.mxu0 0.0
    %2956 = vmatpush1.xpose.msra.mxu0 0.0
    %2957 = vmatprep.subr.mxu0 0.0
    %2958 = vmatpush1.xpose.msra.mxu0 0.0
    %2959 = vmatprep.subr.mxu0 0.0
    %2960 = vmatpush1.xpose.msra.mxu0 0.0
    %2961 = vmatprep.subr.mxu0 0.0
    %2962 = vmatpush1.xpose.msra.mxu0 0.0
    %2963 = vmatprep.subr.mxu0 0.0
    %2964 = vmatpush1.xpose.msra.mxu0 0.0
    %2965 = vmatprep.subr.mxu0 0.0
    %2966 = vmatpush1.xpose.msra.mxu0 0.0
    %2967 = vmatprep.subr.mxu0 0.0
    %2968 = vmatpush1.xpose.msra.mxu0 0.0
    %2969 = vmatprep.subr.mxu0 0.0
    %2970 = vmatpush1.xpose.msra.mxu0 0.0
    %2971 = vmatprep.subr.mxu0 0.0
    %2972 = vmatpush1.xpose.msra.mxu0 0.0
    %2973 = vmatprep.subr.mxu0 0.0
    %2974 = vmatpush1.xpose.msra.mxu0 0.0
    %2975 = vmatprep.subr.mxu0 0.0
    %2976 = vmatpush1.xpose.msra.mxu0 0.0
    %2977 = vmatprep.subr.mxu0 0.0
    %2978 = vmatpush1.xpose.msra.mxu0 0.0
    %2979 = vmatprep.subr.mxu0 0.0
    %2980 = vmatpush1.xpose.msra.mxu0 0.0
    %2981 = vmatprep.subr.mxu0 0.0
    %2982 = vmatpush1.xpose.msra.mxu0 0.0
    %2983 = vmatprep.subr.mxu0 0.0
    %2984 = vmatpush1.xpose.msra.mxu0 0.0
    %2985 = vmatprep.subr.mxu0 0.0
    %2986 = vmatpush1.xpose.msra.mxu0 0.0
    %2987 = vmatprep.subr.mxu0 0.0
    %2988 = vmatpush1.xpose.msra.mxu0 0.0
    %2989 = vmatprep.subr.mxu0 0.0
    %2990 = vmatpush1.xpose.msra.mxu0 0.0
    %2991 = vmatprep.subr.mxu0 0.0
    %2992 = vmatpush1.xpose.msra.mxu0 0.0
    %2993 = vmatprep.subr.mxu0 0.0
    %2994 = vmatpush1.xpose.msra.mxu0 0.0
    %2995 = vmatprep.subr.mxu0 0.0
    %2996 = vmatpush1.xpose.msra.mxu0 0.0
    %2997 = vmatprep.subr.mxu0 0.0
    %2998 = vmatpush1.xpose.msra.mxu0 0.0
    %2999 = vmatprep.subr.mxu0 0.0
    %3000 = vmatpush1.xpose.msra.mxu0 0.0
    %3001 = vmatprep.subr.mxu0 0.0
    %3002 = vmatpush1.xpose.msra.mxu0 0.0
    %3003 = vmatprep.mubr.f32.mxu0 0.0
    %3004 = vmatmul.mubr.f32.gmra.mrb[0].mxu0 %v2935
    %v3005 = vpop.f32.mrb[0].mxu0
    %v3006 = vadd.f32 0.0, %v3005
    %v3007 = vpop.f32.mrb[0].mxu0
    %3008 = vdwg.mxu0
    %v3009 = vsel %vm463, %v2928, -inf
    %3010 = vmax.xlane.f32.xlu0 %v3009
    %v3011 = vpop.xlane.xlu0 %3010
    %v3012 = vsel %vm463, %v3006, -inf
    %3013 = vmax.xlane.f32.xlu0 %v3012
    %v3014 = vpop.xlane.xlu0 %3013
    %v3015 = vsub.f32 %v2928, %v3011
    %v3016 = vsub.f32 %v3006, %v3014
    %v3017 = vmul.f32 %v3015, 1.442695
    %v3018 = vpow.pop %v3017
    %v3019 = vmul.f32 %v3016, 1.442695
    %v3020 = vpow.pop %v3019
    %v3021 = vsel %vm463, %v3018, 0.0
    %3022 = vadd.xlane.f32.xlu0 %v3021
    %v3023 = vpop.xlane.xlu0 %3022
    %v3024 = vsel %vm463, %v3020, 0.0
    %3025 = vadd.xlane.f32.xlu0 %v3024
    %v3026 = vpop.xlane.xlu0 %3025
    %v3027 = vrcp.pop %v3023
    %v3028 = vrcp.pop %v3026
    %v3029 = vmul.f32 %v3018, %v3027
    %v3030 = vmul.f32 %v3020, %v3028
    %3032 = vrot.lane.b32.xlu0 %v2522, 96
    %v3033 = vpop.permute.xlu0 %3032
    %v3036 = vsel %vm463, %v3029, 0
    %3038 = vmatprep.subr.mxu0 0.0
    %3039 = vmatpush1.msra.mxu0 %v3033
    %3040 = vmatprep.subr.mxu0 0.0
    %3041 = vmatpush1.msra.mxu0 0.0
    %3042 = vmatprep.subr.mxu0 0.0
    %3043 = vmatpush1.msra.mxu0 0.0
    %3044 = vmatprep.subr.mxu0 0.0
    %3045 = vmatpush1.msra.mxu0 0.0
    %3046 = vmatprep.subr.mxu0 0.0
    %3047 = vmatpush1.msra.mxu0 0.0
    %3048 = vmatprep.subr.mxu0 0.0
    %3049 = vmatpush1.msra.mxu0 0.0
    %3050 = vmatprep.subr.mxu0 0.0
    %3051 = vmatpush1.msra.mxu0 0.0
    %3052 = vmatprep.subr.mxu0 0.0
    %3053 = vmatpush1.msra.mxu0 0.0
    %3054 = vmatprep.subr.mxu0 0.0
    %3055 = vmatpush1.msra.mxu0 0.0
    %3056 = vmatprep.subr.mxu0 0.0
    %3057 = vmatpush1.msra.mxu0 0.0
    %3058 = vmatprep.subr.mxu0 0.0
    %3059 = vmatpush1.msra.mxu0 0.0
    %3060 = vmatprep.subr.mxu0 0.0
    %3061 = vmatpush1.msra.mxu0 0.0
    %3062 = vmatprep.subr.mxu0 0.0
    %3063 = vmatpush1.msra.mxu0 0.0
    %3064 = vmatprep.subr.mxu0 0.0
    %3065 = vmatpush1.msra.mxu0 0.0
    %3066 = vmatprep.subr.mxu0 0.0
    %3067 = vmatpush1.msra.mxu0 0.0
    %3068 = vmatprep.subr.mxu0 0.0
    %3069 = vmatpush1.msra.mxu0 0.0
    %3070 = vmatprep.subr.mxu0 0.0
    %3071 = vmatpush1.msra.mxu0 0.0
    %3072 = vmatprep.subr.mxu0 0.0
    %3073 = vmatpush1.msra.mxu0 0.0
    %3074 = vmatprep.subr.mxu0 0.0
    %3075 = vmatpush1.msra.mxu0 0.0
    %3076 = vmatprep.subr.mxu0 0.0
    %3077 = vmatpush1.msra.mxu0 0.0
    %3078 = vmatprep.subr.mxu0 0.0
    %3079 = vmatpush1.msra.mxu0 0.0
    %3080 = vmatprep.subr.mxu0 0.0
    %3081 = vmatpush1.msra.mxu0 0.0
    %3082 = vmatprep.subr.mxu0 0.0
    %3083 = vmatpush1.msra.mxu0 0.0
    %3084 = vmatprep.subr.mxu0 0.0
    %3085 = vmatpush1.msra.mxu0 0.0
    %3086 = vmatprep.subr.mxu0 0.0
    %3087 = vmatpush1.msra.mxu0 0.0
    %3088 = vmatprep.subr.mxu0 0.0
    %3089 = vmatpush1.msra.mxu0 0.0
    %3090 = vmatprep.subr.mxu0 0.0
    %3091 = vmatpush1.msra.mxu0 0.0
    %3092 = vmatprep.subr.mxu0 0.0
    %3093 = vmatpush1.msra.mxu0 0.0
    %3094 = vmatprep.subr.mxu0 0.0
    %3095 = vmatpush1.msra.mxu0 0.0
    %3096 = vmatprep.subr.mxu0 0.0
    %3097 = vmatpush1.msra.mxu0 0.0
    %3098 = vmatprep.subr.mxu0 0.0
    %3099 = vmatpush1.msra.mxu0 0.0
    %3100 = vmatprep.subr.mxu0 0.0
    %3101 = vmatpush1.msra.mxu0 0.0
    %3102 = vmatprep.mubr.f32.mxu0 0.0
    %3103 = vmatmul.mubr.f32.gmra.mrb[0].mxu0 %v3036
    %v3104 = vpop.f32.mrb[0].mxu0
    %v3105 = vadd.f32 0.0, %v3104
    %v3106 = vpop.f32.mrb[0].mxu0
    %3107 = vdwg.mxu0
    %3109 = vrot.lane.b32.xlu0 %v2525, 96
    %v3110 = vpop.permute.xlu0 %3109
    %v3113 = vsel %vm463, %v3030, 0
    %3115 = vmatprep.subr.mxu0 0.0
    %3116 = vmatpush1.msra.mxu0 %v3110
    %3117 = vmatprep.subr.mxu0 0.0
    %3118 = vmatpush1.msra.mxu0 0.0
    %3119 = vmatprep.subr.mxu0 0.0
    %3120 = vmatpush1.msra.mxu0 0.0
    %3121 = vmatprep.subr.mxu0 0.0
    %3122 = vmatpush1.msra.mxu0 0.0
    %3123 = vmatprep.subr.mxu0 0.0
    %3124 = vmatpush1.msra.mxu0 0.0
    %3125 = vmatprep.subr.mxu0 0.0
    %3126 = vmatpush1.msra.mxu0 0.0
    %3127 = vmatprep.subr.mxu0 0.0
    %3128 = vmatpush1.msra.mxu0 0.0
    %3129 = vmatprep.subr.mxu0 0.0
    %3130 = vmatpush1.msra.mxu0 0.0
    %3131 = vmatprep.subr.mxu0 0.0
    %3132 = vmatpush1.msra.mxu0 0.0
    %3133 = vmatprep.subr.mxu0 0.0
    %3134 = vmatpush1.msra.mxu0 0.0
    %3135 = vmatprep.subr.mxu0 0.0
    %3136 = vmatpush1.msra.mxu0 0.0
    %3137 = vmatprep.subr.mxu0 0.0
    %3138 = vmatpush1.msra.mxu0 0.0
    %3139 = vmatprep.subr.mxu0 0.0
    %3140 = vmatpush1.msra.mxu0 0.0
    %3141 = vmatprep.subr.mxu0 0.0
    %3142 = vmatpush1.msra.mxu0 0.0
    %3143 = vmatprep.subr.mxu0 0.0
    %3144 = vmatpush1.msra.mxu0 0.0
    %3145 = vmatprep.subr.mxu0 0.0
    %3146 = vmatpush1.msra.mxu0 0.0
    %3147 = vmatprep.subr.mxu0 0.0
    %3148 = vmatpush1.msra.mxu0 0.0
    %3149 = vmatprep.subr.mxu0 0.0
    %3150 = vmatpush1.msra.mxu0 0.0
    %3151 = vmatprep.subr.mxu0 0.0
    %3152 = vmatpush1.msra.mxu0 0.0
    %3153 = vmatprep.subr.mxu0 0.0
    %3154 = vmatpush1.msra.mxu0 0.0
    %3155 = vmatprep.subr.mxu0 0.0
    %3156 = vmatpush1.msra.mxu0 0.0
    %3157 = vmatprep.subr.mxu0 0.0
    %3158 = vmatpush1.msra.mxu0 0.0
    %3159 = vmatprep.subr.mxu0 0.0
    %3160 = vmatpush1.msra.mxu0 0.0
    %3161 = vmatprep.subr.mxu0 0.0
    %3162 = vmatpush1.msra.mxu0 0.0
    %3163 = vmatprep.subr.mxu0 0.0
    %3164 = vmatpush1.msra.mxu0 0.0
    %3165 = vmatprep.subr.mxu0 0.0
    %3166 = vmatpush1.msra.mxu0 0.0
    %3167 = vmatprep.subr.mxu0 0.0
    %3168 = vmatpush1.msra.mxu0 0.0
    %3169 = vmatprep.subr.mxu0 0.0
    %3170 = vmatpush1.msra.mxu0 0.0
    %3171 = vmatprep.subr.mxu0 0.0
    %3172 = vmatpush1.msra.mxu0 0.0
    %3173 = vmatprep.subr.mxu0 0.0
    %3174 = vmatpush1.msra.mxu0 0.0
    %3175 = vmatprep.subr.mxu0 0.0
    %3176 = vmatpush1.msra.mxu0 0.0
    %3177 = vmatprep.subr.mxu0 0.0
    %3178 = vmatpush1.msra.mxu0 0.0
    %3179 = vmatprep.mubr.f32.mxu0 0.0
    %3180 = vmatmul.mubr.f32.gmra.mrb[0].mxu0 %v3113
    %v3181 = vpop.f32.mrb[0].mxu0
    %v3182 = vadd.f32 0.0, %v3181
    %v3183 = vpop.f32.mrb[0].mxu0
    %3184 = vdwg.mxu0
    %v3185 = vpack.c.bf16 %v3182, %v3105
    %v3186 = vld [vmem:[#allocation2 + $0xf4] sm:$0xf]
    %v3187 = vld [vmem:[#allocation2 + $0x128] sm:$0xf]
    %v3188 = vld [vmem:[#allocation2 + $0x15c] sm:$0xf]
    %v3189 = vld [vmem:[#allocation2 + $0x190] sm:$0xf]
    %v3194 = vunpack.c.l.b16 %v3186
    %v3195 = vunpack.c.l.b16 %v3187
    %v3196 = vunpack.c.l.b16 %v3188
    %v3197 = vunpack.c.l.b16 %v3189
    %v3198 = vpack.c.b16 %v3195, %v3194
    %v3199 = vpack.c.b16 %v3197, %v3196
    %v3203 = vsel %vm310, %v3185, 0
    %3205 = vmatprep.subr.bf16.mxu0 0
    %3206 = vmatpush1.bf16.msra.mxu0 %v3198
    %3207 = vmatprep.subr.bf16.mxu0 0
    %3208 = vmatpush1.bf16.msra.mxu0 %v3199
    %3209 = vmatprep.subr.bf16.mxu0 0
    %3210 = vmatpush1.bf16.msra.mxu0 0
    %3211 = vmatprep.subr.bf16.mxu0 0
    %3212 = vmatpush1.bf16.msra.mxu0 0
    %3213 = vmatprep.subr.bf16.mxu0 0
    %3214 = vmatpush1.bf16.msra.mxu0 0
    %3215 = vmatprep.subr.bf16.mxu0 0
    %3216 = vmatpush1.bf16.msra.mxu0 0
    %3217 = vmatprep.subr.bf16.mxu0 0
    %3218 = vmatpush1.bf16.msra.mxu0 0
    %3219 = vmatprep.subr.bf16.mxu0 0
    %3220 = vmatpush1.bf16.msra.mxu0 0
    %3221 = vmatprep.subr.bf16.mxu0 0
    %3222 = vmatpush1.bf16.msra.mxu0 0
    %3223 = vmatprep.subr.bf16.mxu0 0
    %3224 = vmatpush1.bf16.msra.mxu0 0
    %3225 = vmatprep.subr.bf16.mxu0 0
    %3226 = vmatpush1.bf16.msra.mxu0 0
    %3227 = vmatprep.subr.bf16.mxu0 0
    %3228 = vmatpush1.bf16.msra.mxu0 0
    %3229 = vmatprep.subr.bf16.mxu0 0
    %3230 = vmatpush1.bf16.msra.mxu0 0
    %3231 = vmatprep.subr.bf16.mxu0 0
    %3232 = vmatpush1.bf16.msra.mxu0 0
    %3233 = vmatprep.subr.bf16.mxu0 0
    %3234 = vmatpush1.bf16.msra.mxu0 0
    %3235 = vmatprep.subr.bf16.mxu0 0
    %3236 = vmatpush1.bf16.msra.mxu0 0
    %3237 = vmatprep.mubr.bf16.mxu0 0
    %3238 = vmatmul.mubr.bf16.gmra.mrb[0].mxu0 %v3203
    %v3239 = vpop.f32.mrb[0].mxu0
    %v3240 = vadd.f32 0.0, %v3239
    %v3241 = vpop.f32.mrb[0].mxu0
    %v3242 = vpop.f32.mrb[0].mxu0
    %v3243 = vadd.f32 0.0, %v3242
    %v3244 = vpop.f32.mrb[0].mxu0
    %3245 = vdwg.mxu0
    %v3250 = vunpack.c.l.b16 %v2849
    %v3251 = vunpack.c.l.b16 %v2850
    %v3252 = vunpack.c.l.b16 %v2851
    %v3253 = vunpack.c.l.b16 %v2852
    %v3254 = vpack.c.b16 %v3251, %v3250
    %v3255 = vpack.c.b16 %v3253, %v3252
    %v3259 = vsel %vm310, %v2848, 0
    %3261 = vmatprep.subr.bf16.mxu0 0
    %3262 = vmatpush1.bf16.msra.mxu0 %v3254
    %3263 = vmatprep.subr.bf16.mxu0 0
    %3264 = vmatpush1.bf16.msra.mxu0 %v3255
    %3265 = vmatprep.subr.bf16.mxu0 0
    %3266 = vmatpush1.bf16.msra.mxu0 0
    %3267 = vmatprep.subr.bf16.mxu0 0
    %3268 = vmatpush1.bf16.msra.mxu0 0
    %3269 = vmatprep.subr.bf16.mxu0 0
    %3270 = vmatpush1.bf16.msra.mxu0 0
    %3271 = vmatprep.subr.bf16.mxu0 0
    %3272 = vmatpush1.bf16.msra.mxu0 0
    %3273 = vmatprep.subr.bf16.mxu0 0
    %3274 = vmatpush1.bf16.msra.mxu0 0
    %3275 = vmatprep.subr.bf16.mxu0 0
    %3276 = vmatpush1.bf16.msra.mxu0 0
    %3277 = vmatprep.subr.bf16.mxu0 0
    %3278 = vmatpush1.bf16.msra.mxu0 0
    %3279 = vmatprep.subr.bf16.mxu0 0
    %3280 = vmatpush1.bf16.msra.mxu0 0
    %3281 = vmatprep.subr.bf16.mxu0 0
    %3282 = vmatpush1.bf16.msra.mxu0 0
    %3283 = vmatprep.subr.bf16.mxu0 0
    %3284 = vmatpush1.bf16.msra.mxu0 0
    %3285 = vmatprep.subr.bf16.mxu0 0
    %3286 = vmatpush1.bf16.msra.mxu0 0
    %3287 = vmatprep.subr.bf16.mxu0 0
    %3288 = vmatpush1.bf16.msra.mxu0 0
    %3289 = vmatprep.subr.bf16.mxu0 0
    %3290 = vmatpush1.bf16.msra.mxu0 0
    %3291 = vmatprep.subr.bf16.mxu0 0
    %3292 = vmatpush1.bf16.msra.mxu0 0
    %3293 = vmatprep.mubr.bf16.mxu0 0
    %3294 = vmatmul.mubr.bf16.gmra.mrb[0].mxu0 %v3259
    %v3295 = vpop.f32.mrb[0].mxu0
    %v3296 = vadd.f32 %v3240, %v3295
    %v3297 = vpop.f32.mrb[0].mxu0
    %v3298 = vpop.f32.mrb[0].mxu0
    %v3299 = vadd.f32 %v3243, %v3298
    %v3300 = vpop.f32.mrb[0].mxu0
    %3301 = vdwg.mxu0
    %3302 = vrot.lane.b32.xlu0 %v2479, 64
    %v3303 = vpop.permute.xlu0 %3302
    %3304 = vrot.lane.b32.xlu0 %v2481, 64
    %v3305 = vpop.permute.xlu0 %3304
    %v3306 = vsel %vm310, %v3303, 0
    %v3308 = vsel %vm310, %v3305, 0
    %3310 = vmatprep.subr.mxu0 0.0
    %3311 = vmatpush1.xpose.msra.mxu0 %v3308
    %3312 = vmatprep.subr.mxu0 0.0
    %3313 = vmatpush1.xpose.msra.mxu0 0.0
    %3314 = vmatprep.subr.mxu0 0.0
    %3315 = vmatpush1.xpose.msra.mxu0 0.0
    %3316 = vmatprep.subr.mxu0 0.0
    %3317 = vmatpush1.xpose.msra.mxu0 0.0
    %3318 = vmatprep.subr.mxu0 0.0
    %3319 = vmatpush1.xpose.msra.mxu0 0.0
    %3320 = vmatprep.subr.mxu0 0.0
    %3321 = vmatpush1.xpose.msra.mxu0 0.0
    %3322 = vmatprep.subr.mxu0 0.0
    %3323 = vmatpush1.xpose.msra.mxu0 0.0
    %3324 = vmatprep.subr.mxu0 0.0
    %3325 = vmatpush1.xpose.msra.mxu0 0.0
    %3326 = vmatprep.subr.mxu0 0.0
    %3327 = vmatpush1.xpose.msra.mxu0 0.0
    %3328 = vmatprep.subr.mxu0 0.0
    %3329 = vmatpush1.xpose.msra.mxu0 0.0
    %3330 = vmatprep.subr.mxu0 0.0
    %3331 = vmatpush1.xpose.msra.mxu0 0.0
    %3332 = vmatprep.subr.mxu0 0.0
    %3333 = vmatpush1.xpose.msra.mxu0 0.0
    %3334 = vmatprep.subr.mxu0 0.0
    %3335 = vmatpush1.xpose.msra.mxu0 0.0
    %3336 = vmatprep.subr.mxu0 0.0
    %3337 = vmatpush1.xpose.msra.mxu0 0.0
    %3338 = vmatprep.subr.mxu0 0.0
    %3339 = vmatpush1.xpose.msra.mxu0 0.0
    %3340 = vmatprep.subr.mxu0 0.0
    %3341 = vmatpush1.xpose.msra.mxu0 0.0
    %3342 = vmatprep.subr.mxu0 0.0
    %3343 = vmatpush1.xpose.msra.mxu0 0.0
    %3344 = vmatprep.subr.mxu0 0.0
    %3345 = vmatpush1.xpose.msra.mxu0 0.0
    %3346 = vmatprep.subr.mxu0 0.0
    %3347 = vmatpush1.xpose.msra.mxu0 0.0
    %3348 = vmatprep.subr.mxu0 0.0
    %3349 = vmatpush1.xpose.msra.mxu0 0.0
    %3350 = vmatprep.subr.mxu0 0.0
    %3351 = vmatpush1.xpose.msra.mxu0 0.0
    %3352 = vmatprep.subr.mxu0 0.0
    %3353 = vmatpush1.xpose.msra.mxu0 0.0
    %3354 = vmatprep.subr.mxu0 0.0
    %3355 = vmatpush1.xpose.msra.mxu0 0.0
    %3356 = vmatprep.subr.mxu0 0.0
    %3357 = vmatpush1.xpose.msra.mxu0 0.0
    %3358 = vmatprep.subr.mxu0 0.0
    %3359 = vmatpush1.xpose.msra.mxu0 0.0
    %3360 = vmatprep.subr.mxu0 0.0
    %3361 = vmatpush1.xpose.msra.mxu0 0.0
    %3362 = vmatprep.subr.mxu0 0.0
    %3363 = vmatpush1.xpose.msra.mxu0 0.0
    %3364 = vmatprep.subr.mxu0 0.0
    %3365 = vmatpush1.xpose.msra.mxu0 0.0
    %3366 = vmatprep.subr.mxu0 0.0
    %3367 = vmatpush1.xpose.msra.mxu0 0.0
    %3368 = vmatprep.subr.mxu0 0.0
    %3369 = vmatpush1.xpose.msra.mxu0 0.0
    %3370 = vmatprep.subr.mxu0 0.0
    %3371 = vmatpush1.xpose.msra.mxu0 0.0
    %3372 = vmatprep.subr.mxu0 0.0
    %3373 = vmatpush1.xpose.msra.mxu0 0.0
    %3374 = vmatprep.mubr.f32.mxu0 0.0
    %3375 = vmatmul.mubr.f32.gmra.mrb[0].mxu0 %v3306
    %v3376 = vpop.f32.mrb[0].mxu0
    %v3377 = vadd.f32 0.0, %v3376
    %v3378 = vpop.f32.mrb[0].mxu0
    %3379 = vdwg.mxu0
    %3380 = vrot.lane.b32.xlu0 %v2483, 64
    %v3381 = vpop.permute.xlu0 %3380
    %3382 = vrot.lane.b32.xlu0 %v2485, 64
    %v3383 = vpop.permute.xlu0 %3382
    %v3384 = vsel %vm310, %v3381, 0
    %v3386 = vsel %vm310, %v3383, 0
    %3388 = vmatprep.subr.mxu0 0.0
    %3389 = vmatpush1.xpose.msra.mxu0 %v3386
    %3390 = vmatprep.subr.mxu0 0.0
    %3391 = vmatpush1.xpose.msra.mxu0 0.0
    %3392 = vmatprep.subr.mxu0 0.0
    %3393 = vmatpush1.xpose.msra.mxu0 0.0
    %3394 = vmatprep.subr.mxu0 0.0
    %3395 = vmatpush1.xpose.msra.mxu0 0.0
    %3396 = vmatprep.subr.mxu0 0.0
    %3397 = vmatpush1.xpose.msra.mxu0 0.0
    %3398 = vmatprep.subr.mxu0 0.0
    %3399 = vmatpush1.xpose.msra.mxu0 0.0
    %3400 = vmatprep.subr.mxu0 0.0
    %3401 = vmatpush1.xpose.msra.mxu0 0.0
    %3402 = vmatprep.subr.mxu0 0.0
    %3403 = vmatpush1.xpose.msra.mxu0 0.0
    %3404 = vmatprep.subr.mxu0 0.0
    %3405 = vmatpush1.xpose.msra.mxu0 0.0
    %3406 = vmatprep.subr.mxu0 0.0
    %3407 = vmatpush1.xpose.msra.mxu0 0.0
    %3408 = vmatprep.subr.mxu0 0.0
    %3409 = vmatpush1.xpose.msra.mxu0 0.0
    %3410 = vmatprep.subr.mxu0 0.0
    %3411 = vmatpush1.xpose.msra.mxu0 0.0
    %3412 = vmatprep.subr.mxu0 0.0
    %3413 = vmatpush1.xpose.msra.mxu0 0.0
    %3414 = vmatprep.subr.mxu0 0.0
    %3415 = vmatpush1.xpose.msra.mxu0 0.0
    %3416 = vmatprep.subr.mxu0 0.0
    %3417 = vmatpush1.xpose.msra.mxu0 0.0
    %3418 = vmatprep.subr.mxu0 0.0
    %3419 = vmatpush1.xpose.msra.mxu0 0.0
    %3420 = vmatprep.subr.mxu0 0.0
    %3421 = vmatpush1.xpose.msra.mxu0 0.0
    %3422 = vmatprep.subr.mxu0 0.0
    %3423 = vmatpush1.xpose.msra.mxu0 0.0
    %3424 = vmatprep.subr.mxu0 0.0
    %3425 = vmatpush1.xpose.msra.mxu0 0.0
    %3426 = vmatprep.subr.mxu0 0.0
    %3427 = vmatpush1.xpose.msra.mxu0 0.0
    %3428 = vmatprep.subr.mxu0 0.0
    %3429 = vmatpush1.xpose.msra.mxu0 0.0
    %3430 = vmatprep.subr.mxu0 0.0
    %3431 = vmatpush1.xpose.msra.mxu0 0.0
    %3432 = vmatprep.subr.mxu0 0.0
    %3433 = vmatpush1.xpose.msra.mxu0 0.0
    %3434 = vmatprep.subr.mxu0 0.0
    %3435 = vmatpush1.xpose.msra.mxu0 0.0
    %3436 = vmatprep.subr.mxu0 0.0
    %3437 = vmatpush1.xpose.msra.mxu0 0.0
    %3438 = vmatprep.subr.mxu0 0.0
    %3439 = vmatpush1.xpose.msra.mxu0 0.0
    %3440 = vmatprep.subr.mxu0 0.0
    %3441 = vmatpush1.xpose.msra.mxu0 0.0
    %3442 = vmatprep.subr.mxu0 0.0
    %3443 = vmatpush1.xpose.msra.mxu0 0.0
    %3444 = vmatprep.subr.mxu0 0.0
    %3445 = vmatpush1.xpose.msra.mxu0 0.0
    %3446 = vmatprep.subr.mxu0 0.0
    %3447 = vmatpush1.xpose.msra.mxu0 0.0
    %3448 = vmatprep.subr.mxu0 0.0
    %3449 = vmatpush1.xpose.msra.mxu0 0.0
    %3450 = vmatprep.subr.mxu0 0.0
    %3451 = vmatpush1.xpose.msra.mxu0 0.0
    %3452 = vmatprep.mubr.f32.mxu0 0.0
    %3453 = vmatmul.mubr.f32.gmra.mrb[0].mxu0 %v3384
    %v3454 = vpop.f32.mrb[0].mxu0
    %v3455 = vadd.f32 0.0, %v3454
    %v3456 = vpop.f32.mrb[0].mxu0
    %3457 = vdwg.mxu0
    %v3458 = vsel %vm463, %v3377, -inf
    %3459 = vmax.xlane.f32.xlu0 %v3458
    %v3460 = vpop.xlane.xlu0 %3459
    %v3461 = vsel %vm463, %v3455, -inf
    %3462 = vmax.xlane.f32.xlu0 %v3461
    %v3463 = vpop.xlane.xlu0 %3462
    %v3464 = vsub.f32 %v3377, %v3460
    %v3465 = vsub.f32 %v3455, %v3463
    %v3466 = vmul.f32 %v3464, 1.442695
    %v3467 = vpow.pop %v3466
    %v3468 = vmul.f32 %v3465, 1.442695
    %v3469 = vpow.pop %v3468
    %v3470 = vsel %vm463, %v3467, 0.0
    %3471 = vadd.xlane.f32.xlu0 %v3470
    %v3472 = vpop.xlane.xlu0 %3471
    %v3473 = vsel %vm463, %v3469, 0.0
    %3474 = vadd.xlane.f32.xlu0 %v3473
    %v3475 = vpop.xlane.xlu0 %3474
    %v3476 = vrcp.pop %v3472
    %v3477 = vrcp.pop %v3475
    %v3478 = vmul.f32 %v3467, %v3476
    %v3479 = vmul.f32 %v3469, %v3477
    %3480 = vrot.lane.b32.xlu0 %v2522, 64
    %v3481 = vpop.permute.xlu0 %3480
    %v3484 = vsel %vm463, %v3478, 0
    %3486 = vmatprep.subr.mxu0 0.0
    %3487 = vmatpush1.msra.mxu0 %v3481
    %3488 = vmatprep.subr.mxu0 0.0
    %3489 = vmatpush1.msra.mxu0 0.0
    %3490 = vmatprep.subr.mxu0 0.0
    %3491 = vmatpush1.msra.mxu0 0.0
    %3492 = vmatprep.subr.mxu0 0.0
    %3493 = vmatpush1.msra.mxu0 0.0
    %3494 = vmatprep.subr.mxu0 0.0
    %3495 = vmatpush1.msra.mxu0 0.0
    %3496 = vmatprep.subr.mxu0 0.0
    %3497 = vmatpush1.msra.mxu0 0.0
    %3498 = vmatprep.subr.mxu0 0.0
    %3499 = vmatpush1.msra.mxu0 0.0
    %3500 = vmatprep.subr.mxu0 0.0
    %3501 = vmatpush1.msra.mxu0 0.0
    %3502 = vmatprep.subr.mxu0 0.0
    %3503 = vmatpush1.msra.mxu0 0.0
    %3504 = vmatprep.subr.mxu0 0.0
    %3505 = vmatpush1.msra.mxu0 0.0
    %3506 = vmatprep.subr.mxu0 0.0
    %3507 = vmatpush1.msra.mxu0 0.0
    %3508 = vmatprep.subr.mxu0 0.0
    %3509 = vmatpush1.msra.mxu0 0.0
    %3510 = vmatprep.subr.mxu0 0.0
    %3511 = vmatpush1.msra.mxu0 0.0
    %3512 = vmatprep.subr.mxu0 0.0
    %3513 = vmatpush1.msra.mxu0 0.0
    %3514 = vmatprep.subr.mxu0 0.0
    %3515 = vmatpush1.msra.mxu0 0.0
    %3516 = vmatprep.subr.mxu0 0.0
    %3517 = vmatpush1.msra.mxu0 0.0
    %3518 = vmatprep.subr.mxu0 0.0
    %3519 = vmatpush1.msra.mxu0 0.0
    %3520 = vmatprep.subr.mxu0 0.0
    %3521 = vmatpush1.msra.mxu0 0.0
    %3522 = vmatprep.subr.mxu0 0.0
    %3523 = vmatpush1.msra.mxu0 0.0
    %3524 = vmatprep.subr.mxu0 0.0
    %3525 = vmatpush1.msra.mxu0 0.0
    %3526 = vmatprep.subr.mxu0 0.0
    %3527 = vmatpush1.msra.mxu0 0.0
    %3528 = vmatprep.subr.mxu0 0.0
    %3529 = vmatpush1.msra.mxu0 0.0
    %3530 = vmatprep.subr.mxu0 0.0
    %3531 = vmatpush1.msra.mxu0 0.0
    %3532 = vmatprep.subr.mxu0 0.0
    %3533 = vmatpush1.msra.mxu0 0.0
    %3534 = vmatprep.subr.mxu0 0.0
    %3535 = vmatpush1.msra.mxu0 0.0
    %3536 = vmatprep.subr.mxu0 0.0
    %3537 = vmatpush1.msra.mxu0 0.0
    %3538 = vmatprep.subr.mxu0 0.0
    %3539 = vmatpush1.msra.mxu0 0.0
    %3540 = vmatprep.subr.mxu0 0.0
    %3541 = vmatpush1.msra.mxu0 0.0
    %3542 = vmatprep.subr.mxu0 0.0
    %3543 = vmatpush1.msra.mxu0 0.0
    %3544 = vmatprep.subr.mxu0 0.0
    %3545 = vmatpush1.msra.mxu0 0.0
    %3546 = vmatprep.subr.mxu0 0.0
    %3547 = vmatpush1.msra.mxu0 0.0
    %3548 = vmatprep.subr.mxu0 0.0
    %3549 = vmatpush1.msra.mxu0 0.0
    %3550 = vmatprep.mubr.f32.mxu0 0.0
    %3551 = vmatmul.mubr.f32.gmra.mrb[0].mxu0 %v3484
    %v3552 = vpop.f32.mrb[0].mxu0
    %v3553 = vadd.f32 0.0, %v3552
    %v3554 = vpop.f32.mrb[0].mxu0
    %3555 = vdwg.mxu0
    %3556 = vrot.lane.b32.xlu0 %v2525, 64
    %v3557 = vpop.permute.xlu0 %3556
    %v3560 = vsel %vm463, %v3479, 0
    %3562 = vmatprep.subr.mxu0 0.0
    %3563 = vmatpush1.msra.mxu0 %v3557
    %3564 = vmatprep.subr.mxu0 0.0
    %3565 = vmatpush1.msra.mxu0 0.0
    %3566 = vmatprep.subr.mxu0 0.0
    %3567 = vmatpush1.msra.mxu0 0.0
    %3568 = vmatprep.subr.mxu0 0.0
    %3569 = vmatpush1.msra.mxu0 0.0
    %3570 = vmatprep.subr.mxu0 0.0
    %3571 = vmatpush1.msra.mxu0 0.0
    %3572 = vmatprep.subr.mxu0 0.0
    %3573 = vmatpush1.msra.mxu0 0.0
    %3574 = vmatprep.subr.mxu0 0.0
    %3575 = vmatpush1.msra.mxu0 0.0
    %3576 = vmatprep.subr.mxu0 0.0
    %3577 = vmatpush1.msra.mxu0 0.0
    %3578 = vmatprep.subr.mxu0 0.0
    %3579 = vmatpush1.msra.mxu0 0.0
    %3580 = vmatprep.subr.mxu0 0.0
    %3581 = vmatpush1.msra.mxu0 0.0
    %3582 = vmatprep.subr.mxu0 0.0
    %3583 = vmatpush1.msra.mxu0 0.0
    %3584 = vmatprep.subr.mxu0 0.0
    %3585 = vmatpush1.msra.mxu0 0.0
    %3586 = vmatprep.subr.mxu0 0.0
    %3587 = vmatpush1.msra.mxu0 0.0
    %3588 = vmatprep.subr.mxu0 0.0
    %3589 = vmatpush1.msra.mxu0 0.0
    %3590 = vmatprep.subr.mxu0 0.0
    %3591 = vmatpush1.msra.mxu0 0.0
    %3592 = vmatprep.subr.mxu0 0.0
    %3593 = vmatpush1.msra.mxu0 0.0
    %3594 = vmatprep.subr.mxu0 0.0
    %3595 = vmatpush1.msra.mxu0 0.0
    %3596 = vmatprep.subr.mxu0 0.0
    %3597 = vmatpush1.msra.mxu0 0.0
    %3598 = vmatprep.subr.mxu0 0.0
    %3599 = vmatpush1.msra.mxu0 0.0
    %3600 = vmatprep.subr.mxu0 0.0
    %3601 = vmatpush1.msra.mxu0 0.0
    %3602 = vmatprep.subr.mxu0 0.0
    %3603 = vmatpush1.msra.mxu0 0.0
    %3604 = vmatprep.subr.mxu0 0.0
    %3605 = vmatpush1.msra.mxu0 0.0
    %3606 = vmatprep.subr.mxu0 0.0
    %3607 = vmatpush1.msra.mxu0 0.0
    %3608 = vmatprep.subr.mxu0 0.0
    %3609 = vmatpush1.msra.mxu0 0.0
    %3610 = vmatprep.subr.mxu0 0.0
    %3611 = vmatpush1.msra.mxu0 0.0
    %3612 = vmatprep.subr.mxu0 0.0
    %3613 = vmatpush1.msra.mxu0 0.0
    %3614 = vmatprep.subr.mxu0 0.0
    %3615 = vmatpush1.msra.mxu0 0.0
    %3616 = vmatprep.subr.mxu0 0.0
    %3617 = vmatpush1.msra.mxu0 0.0
    %3618 = vmatprep.subr.mxu0 0.0
    %3619 = vmatpush1.msra.mxu0 0.0
    %3620 = vmatprep.subr.mxu0 0.0
    %3621 = vmatpush1.msra.mxu0 0.0
    %3622 = vmatprep.subr.mxu0 0.0
    %3623 = vmatpush1.msra.mxu0 0.0
    %3624 = vmatprep.subr.mxu0 0.0
    %3625 = vmatpush1.msra.mxu0 0.0
    %3626 = vmatprep.mubr.f32.mxu0 0.0
    %3627 = vmatmul.mubr.f32.gmra.mrb[0].mxu0 %v3560
    %v3628 = vpop.f32.mrb[0].mxu0
    %v3629 = vadd.f32 0.0, %v3628
    %v3630 = vpop.f32.mrb[0].mxu0
    %3631 = vdwg.mxu0
    %v3632 = vpack.c.bf16 %v3629, %v3553
    %v3633 = vld [vmem:[#allocation2 + $0x1c4] sm:$0xf]
    %v3634 = vld [vmem:[#allocation2 + $0x1f8] sm:$0xf]
    %v3635 = vld [vmem:[#allocation2 + $0x22c] sm:$0xf]
    %v3636 = vld [vmem:[#allocation2 + $0x260] sm:$0xf]
    %v3641 = vunpack.c.l.b16 %v3633
    %v3642 = vunpack.c.l.b16 %v3634
    %v3643 = vunpack.c.l.b16 %v3635
    %v3644 = vunpack.c.l.b16 %v3636
    %v3645 = vpack.c.b16 %v3642, %v3641
    %v3646 = vpack.c.b16 %v3644, %v3643
    %v3650 = vsel %vm310, %v3632, 0
    %3652 = vmatprep.subr.bf16.mxu0 0
    %3653 = vmatpush1.bf16.msra.mxu0 %v3645
    %3654 = vmatprep.subr.bf16.mxu0 0
    %3655 = vmatpush1.bf16.msra.mxu0 %v3646
    %3656 = vmatprep.subr.bf16.mxu0 0
    %3657 = vmatpush1.bf16.msra.mxu0 0
    %3658 = vmatprep.subr.bf16.mxu0 0
    %3659 = vmatpush1.bf16.msra.mxu0 0
    %3660 = vmatprep.subr.bf16.mxu0 0
    %3661 = vmatpush1.bf16.msra.mxu0 0
    %3662 = vmatprep.subr.bf16.mxu0 0
    %3663 = vmatpush1.bf16.msra.mxu0 0
    %3664 = vmatprep.subr.bf16.mxu0 0
    %3665 = vmatpush1.bf16.msra.mxu0 0
    %3666 = vmatprep.subr.bf16.mxu0 0
    %3667 = vmatpush1.bf16.msra.mxu0 0
    %3668 = vmatprep.subr.bf16.mxu0 0
    %3669 = vmatpush1.bf16.msra.mxu0 0
    %3670 = vmatprep.subr.bf16.mxu0 0
    %3671 = vmatpush1.bf16.msra.mxu0 0
    %3672 = vmatprep.subr.bf16.mxu0 0
    %3673 = vmatpush1.bf16.msra.mxu0 0
    %3674 = vmatprep.subr.bf16.mxu0 0
    %3675 = vmatpush1.bf16.msra.mxu0 0
    %3676 = vmatprep.subr.bf16.mxu0 0
    %3677 = vmatpush1.bf16.msra.mxu0 0
    %3678 = vmatprep.subr.bf16.mxu0 0
    %3679 = vmatpush1.bf16.msra.mxu0 0
    %3680 = vmatprep.subr.bf16.mxu0 0
    %3681 = vmatpush1.bf16.msra.mxu0 0
    %3682 = vmatprep.subr.bf16.mxu0 0
    %3683 = vmatpush1.bf16.msra.mxu0 0
    %3684 = vmatprep.mubr.bf16.mxu0 0
    %3685 = vmatmul.mubr.bf16.gmra.mrb[0].mxu0 %v3650
    %v3686 = vpop.f32.mrb[0].mxu0
    %v3687 = vadd.f32 0.0, %v3686
    %v3688 = vpop.f32.mrb[0].mxu0
    %v3689 = vpop.f32.mrb[0].mxu0
    %v3690 = vadd.f32 0.0, %v3689
    %v3691 = vpop.f32.mrb[0].mxu0
    %3692 = vdwg.mxu0
    %v3693 = vadd.f32 %v3296, %v3687
    %v3694 = vadd.f32 %v3299, %v3690
    %3695 = vrot.lane.b32.xlu0 %v2479, 32
    %v3696 = vpop.permute.xlu0 %3695
    %3697 = vrot.lane.b32.xlu0 %v2481, 32
    %v3698 = vpop.permute.xlu0 %3697
    %v3699 = vsel %vm310, %v3696, 0
    %v3701 = vsel %vm310, %v3698, 0
    %3703 = vmatprep.subr.mxu0 0.0
    %3704 = vmatpush1.xpose.msra.mxu0 %v3701
    %3705 = vmatprep.subr.mxu0 0.0
    %3706 = vmatpush1.xpose.msra.mxu0 0.0
    %3707 = vmatprep.subr.mxu0 0.0
    %3708 = vmatpush1.xpose.msra.mxu0 0.0
    %3709 = vmatprep.subr.mxu0 0.0
    %3710 = vmatpush1.xpose.msra.mxu0 0.0
    %3711 = vmatprep.subr.mxu0 0.0
    %3712 = vmatpush1.xpose.msra.mxu0 0.0
    %3713 = vmatprep.subr.mxu0 0.0
    %3714 = vmatpush1.xpose.msra.mxu0 0.0
    %3715 = vmatprep.subr.mxu0 0.0
    %3716 = vmatpush1.xpose.msra.mxu0 0.0
    %3717 = vmatprep.subr.mxu0 0.0
    %3718 = vmatpush1.xpose.msra.mxu0 0.0
    %3719 = vmatprep.subr.mxu0 0.0
    %3720 = vmatpush1.xpose.msra.mxu0 0.0
    %3721 = vmatprep.subr.mxu0 0.0
    %3722 = vmatpush1.xpose.msra.mxu0 0.0
    %3723 = vmatprep.subr.mxu0 0.0
    %3724 = vmatpush1.xpose.msra.mxu0 0.0
    %3725 = vmatprep.subr.mxu0 0.0
    %3726 = vmatpush1.xpose.msra.mxu0 0.0
    %3727 = vmatprep.subr.mxu0 0.0
    %3728 = vmatpush1.xpose.msra.mxu0 0.0
    %3729 = vmatprep.subr.mxu0 0.0
    %3730 = vmatpush1.xpose.msra.mxu0 0.0
    %3731 = vmatprep.subr.mxu0 0.0
    %3732 = vmatpush1.xpose.msra.mxu0 0.0
    %3733 = vmatprep.subr.mxu0 0.0
    %3734 = vmatpush1.xpose.msra.mxu0 0.0
    %3735 = vmatprep.subr.mxu0 0.0
    %3736 = vmatpush1.xpose.msra.mxu0 0.0
    %3737 = vmatprep.subr.mxu0 0.0
    %3738 = vmatpush1.xpose.msra.mxu0 0.0
    %3739 = vmatprep.subr.mxu0 0.0
    %3740 = vmatpush1.xpose.msra.mxu0 0.0
    %3741 = vmatprep.subr.mxu0 0.0
    %3742 = vmatpush1.xpose.msra.mxu0 0.0
    %3743 = vmatprep.subr.mxu0 0.0
    %3744 = vmatpush1.xpose.msra.mxu0 0.0
    %3745 = vmatprep.subr.mxu0 0.0
    %3746 = vmatpush1.xpose.msra.mxu0 0.0
    %3747 = vmatprep.subr.mxu0 0.0
    %3748 = vmatpush1.xpose.msra.mxu0 0.0
    %3749 = vmatprep.subr.mxu0 0.0
    %3750 = vmatpush1.xpose.msra.mxu0 0.0
    %3751 = vmatprep.subr.mxu0 0.0
    %3752 = vmatpush1.xpose.msra.mxu0 0.0
    %3753 = vmatprep.subr.mxu0 0.0
    %3754 = vmatpush1.xpose.msra.mxu0 0.0
    %3755 = vmatprep.subr.mxu0 0.0
    %3756 = vmatpush1.xpose.msra.mxu0 0.0
    %3757 = vmatprep.subr.mxu0 0.0
    %3758 = vmatpush1.xpose.msra.mxu0 0.0
    %3759 = vmatprep.subr.mxu0 0.0
    %3760 = vmatpush1.xpose.msra.mxu0 0.0
    %3761 = vmatprep.subr.mxu0 0.0
    %3762 = vmatpush1.xpose.msra.mxu0 0.0
    %3763 = vmatprep.subr.mxu0 0.0
    %3764 = vmatpush1.xpose.msra.mxu0 0.0
    %3765 = vmatprep.subr.mxu0 0.0
    %3766 = vmatpush1.xpose.msra.mxu0 0.0
    %3767 = vmatprep.mubr.f32.mxu0 0.0
    %3768 = vmatmul.mubr.f32.gmra.mrb[0].mxu0 %v3699
    %v3769 = vpop.f32.mrb[0].mxu0
    %v3770 = vadd.f32 0.0, %v3769
    %v3771 = vpop.f32.mrb[0].mxu0
    %3772 = vdwg.mxu0
    %3773 = vrot.lane.b32.xlu0 %v2483, 32
    %v3774 = vpop.permute.xlu0 %3773
    %3775 = vrot.lane.b32.xlu0 %v2485, 32
    %v3776 = vpop.permute.xlu0 %3775
    %v3777 = vsel %vm310, %v3774, 0
    %v3779 = vsel %vm310, %v3776, 0
    %3781 = vmatprep.subr.mxu0 0.0
    %3782 = vmatpush1.xpose.msra.mxu0 %v3779
    %3783 = vmatprep.subr.mxu0 0.0
    %3784 = vmatpush1.xpose.msra.mxu0 0.0
    %3785 = vmatprep.subr.mxu0 0.0
    %3786 = vmatpush1.xpose.msra.mxu0 0.0
    %3787 = vmatprep.subr.mxu0 0.0
    %3788 = vmatpush1.xpose.msra.mxu0 0.0
    %3789 = vmatprep.subr.mxu0 0.0
    %3790 = vmatpush1.xpose.msra.mxu0 0.0
    %3791 = vmatprep.subr.mxu0 0.0
    %3792 = vmatpush1.xpose.msra.mxu0 0.0
    %3793 = vmatprep.subr.mxu0 0.0
    %3794 = vmatpush1.xpose.msra.mxu0 0.0
    %3795 = vmatprep.subr.mxu0 0.0
    %3796 = vmatpush1.xpose.msra.mxu0 0.0
    %3797 = vmatprep.subr.mxu0 0.0
    %3798 = vmatpush1.xpose.msra.mxu0 0.0
    %3799 = vmatprep.subr.mxu0 0.0
    %3800 = vmatpush1.xpose.msra.mxu0 0.0
    %3801 = vmatprep.subr.mxu0 0.0
    %3802 = vmatpush1.xpose.msra.mxu0 0.0
    %3803 = vmatprep.subr.mxu0 0.0
    %3804 = vmatpush1.xpose.msra.mxu0 0.0
    %3805 = vmatprep.subr.mxu0 0.0
    %3806 = vmatpush1.xpose.msra.mxu0 0.0
    %3807 = vmatprep.subr.mxu0 0.0
    %3808 = vmatpush1.xpose.msra.mxu0 0.0
    %3809 = vmatprep.subr.mxu0 0.0
    %3810 = vmatpush1.xpose.msra.mxu0 0.0
    %3811 = vmatprep.subr.mxu0 0.0
    %3812 = vmatpush1.xpose.msra.mxu0 0.0
    %3813 = vmatprep.subr.mxu0 0.0
    %3814 = vmatpush1.xpose.msra.mxu0 0.0
    %3815 = vmatprep.subr.mxu0 0.0
    %3816 = vmatpush1.xpose.msra.mxu0 0.0
    %3817 = vmatprep.subr.mxu0 0.0
    %3818 = vmatpush1.xpose.msra.mxu0 0.0
    %3819 = vmatprep.subr.mxu0 0.0
    %3820 = vmatpush1.xpose.msra.mxu0 0.0
    %3821 = vmatprep.subr.mxu0 0.0
    %3822 = vmatpush1.xpose.msra.mxu0 0.0
    %3823 = vmatprep.subr.mxu0 0.0
    %3824 = vmatpush1.xpose.msra.mxu0 0.0
    %3825 = vmatprep.subr.mxu0 0.0
    %3826 = vmatpush1.xpose.msra.mxu0 0.0
    %3827 = vmatprep.subr.mxu0 0.0
    %3828 = vmatpush1.xpose.msra.mxu0 0.0
    %3829 = vmatprep.subr.mxu0 0.0
    %3830 = vmatpush1.xpose.msra.mxu0 0.0
    %3831 = vmatprep.subr.mxu0 0.0
    %3832 = vmatpush1.xpose.msra.mxu0 0.0
    %3833 = vmatprep.subr.mxu0 0.0
    %3834 = vmatpush1.xpose.msra.mxu0 0.0
    %3835 = vmatprep.subr.mxu0 0.0
    %3836 = vmatpush1.xpose.msra.mxu0 0.0
    %3837 = vmatprep.subr.mxu0 0.0
    %3838 = vmatpush1.xpose.msra.mxu0 0.0
    %3839 = vmatprep.subr.mxu0 0.0
    %3840 = vmatpush1.xpose.msra.mxu0 0.0
    %3841 = vmatprep.subr.mxu0 0.0
    %3842 = vmatpush1.xpose.msra.mxu0 0.0
    %3843 = vmatprep.subr.mxu0 0.0
    %3844 = vmatpush1.xpose.msra.mxu0 0.0
    %3845 = vmatprep.mubr.f32.mxu0 0.0
    %3846 = vmatmul.mubr.f32.gmra.mrb[0].mxu0 %v3777
    %v3847 = vpop.f32.mrb[0].mxu0
    %v3848 = vadd.f32 0.0, %v3847
    %v3849 = vpop.f32.mrb[0].mxu0
    %3850 = vdwg.mxu0
    %v3851 = vsel %vm463, %v3770, -inf
    %3852 = vmax.xlane.f32.xlu0 %v3851
    %v3853 = vpop.xlane.xlu0 %3852
    %v3854 = vsel %vm463, %v3848, -inf
    %3855 = vmax.xlane.f32.xlu0 %v3854
    %v3856 = vpop.xlane.xlu0 %3855
    %v3857 = vsub.f32 %v3770, %v3853
    %v3858 = vsub.f32 %v3848, %v3856
    %v3859 = vmul.f32 %v3857, 1.442695
    %v3860 = vpow.pop %v3859
    %v3861 = vmul.f32 %v3858, 1.442695
    %v3862 = vpow.pop %v3861
    %v3863 = vsel %vm463, %v3860, 0.0
    %3864 = vadd.xlane.f32.xlu0 %v3863
    %v3865 = vpop.xlane.xlu0 %3864
    %v3866 = vsel %vm463, %v3862, 0.0
    %3867 = vadd.xlane.f32.xlu0 %v3866
    %v3868 = vpop.xlane.xlu0 %3867
    %v3869 = vrcp.pop %v3865
    %v3870 = vrcp.pop %v3868
    %v3871 = vmul.f32 %v3860, %v3869
    %v3872 = vmul.f32 %v3862, %v3870
    %3873 = vrot.lane.b32.xlu0 %v2522, 32
    %v3874 = vpop.permute.xlu0 %3873
    %v3877 = vsel %vm463, %v3871, 0
    %3879 = vmatprep.subr.mxu0 0.0
    %3880 = vmatpush1.msra.mxu0 %v3874
    %3881 = vmatprep.subr.mxu0 0.0
    %3882 = vmatpush1.msra.mxu0 0.0
    %3883 = vmatprep.subr.mxu0 0.0
    %3884 = vmatpush1.msra.mxu0 0.0
    %3885 = vmatprep.subr.mxu0 0.0
    %3886 = vmatpush1.msra.mxu0 0.0
    %3887 = vmatprep.subr.mxu0 0.0
    %3888 = vmatpush1.msra.mxu0 0.0
    %3889 = vmatprep.subr.mxu0 0.0
    %3890 = vmatpush1.msra.mxu0 0.0
    %3891 = vmatprep.subr.mxu0 0.0
    %3892 = vmatpush1.msra.mxu0 0.0
    %3893 = vmatprep.subr.mxu0 0.0
    %3894 = vmatpush1.msra.mxu0 0.0
    %3895 = vmatprep.subr.mxu0 0.0
    %3896 = vmatpush1.msra.mxu0 0.0
    %3897 = vmatprep.subr.mxu0 0.0
    %3898 = vmatpush1.msra.mxu0 0.0
    %3899 = vmatprep.subr.mxu0 0.0
    %3900 = vmatpush1.msra.mxu0 0.0
    %3901 = vmatprep.subr.mxu0 0.0
    %3902 = vmatpush1.msra.mxu0 0.0
    %3903 = vmatprep.subr.mxu0 0.0
    %3904 = vmatpush1.msra.mxu0 0.0
    %3905 = vmatprep.subr.mxu0 0.0
    %3906 = vmatpush1.msra.mxu0 0.0
    %3907 = vmatprep.subr.mxu0 0.0
    %3908 = vmatpush1.msra.mxu0 0.0
    %3909 = vmatprep.subr.mxu0 0.0
    %3910 = vmatpush1.msra.mxu0 0.0
    %3911 = vmatprep.subr.mxu0 0.0
    %3912 = vmatpush1.msra.mxu0 0.0
    %3913 = vmatprep.subr.mxu0 0.0
    %3914 = vmatpush1.msra.mxu0 0.0
    %3915 = vmatprep.subr.mxu0 0.0
    %3916 = vmatpush1.msra.mxu0 0.0
    %3917 = vmatprep.subr.mxu0 0.0
    %3918 = vmatpush1.msra.mxu0 0.0
    %3919 = vmatprep.subr.mxu0 0.0
    %3920 = vmatpush1.msra.mxu0 0.0
    %3921 = vmatprep.subr.mxu0 0.0
    %3922 = vmatpush1.msra.mxu0 0.0
    %3923 = vmatprep.subr.mxu0 0.0
    %3924 = vmatpush1.msra.mxu0 0.0
    %3925 = vmatprep.subr.mxu0 0.0
    %3926 = vmatpush1.msra.mxu0 0.0
    %3927 = vmatprep.subr.mxu0 0.0
    %3928 = vmatpush1.msra.mxu0 0.0
    %3929 = vmatprep.subr.mxu0 0.0
    %3930 = vmatpush1.msra.mxu0 0.0
    %3931 = vmatprep.subr.mxu0 0.0
    %3932 = vmatpush1.msra.mxu0 0.0
    %3933 = vmatprep.subr.mxu0 0.0
    %3934 = vmatpush1.msra.mxu0 0.0
    %3935 = vmatprep.subr.mxu0 0.0
    %3936 = vmatpush1.msra.mxu0 0.0
    %3937 = vmatprep.subr.mxu0 0.0
    %3938 = vmatpush1.msra.mxu0 0.0
    %3939 = vmatprep.subr.mxu0 0.0
    %3940 = vmatpush1.msra.mxu0 0.0
    %3941 = vmatprep.subr.mxu0 0.0
    %3942 = vmatpush1.msra.mxu0 0.0
    %3943 = vmatprep.mubr.f32.mxu0 0.0
    %3944 = vmatmul.mubr.f32.gmra.mrb[0].mxu0 %v3877
    %v3945 = vpop.f32.mrb[0].mxu0
    %v3946 = vadd.f32 0.0, %v3945
    %v3947 = vpop.f32.mrb[0].mxu0
    %3948 = vdwg.mxu0
    %3949 = vrot.lane.b32.xlu0 %v2525, 32
    %v3950 = vpop.permute.xlu0 %3949
    %v3953 = vsel %vm463, %v3872, 0
    %3955 = vmatprep.subr.mxu0 0.0
    %3956 = vmatpush1.msra.mxu0 %v3950
    %3957 = vmatprep.subr.mxu0 0.0
    %3958 = vmatpush1.msra.mxu0 0.0
    %3959 = vmatprep.subr.mxu0 0.0
    %3960 = vmatpush1.msra.mxu0 0.0
    %3961 = vmatprep.subr.mxu0 0.0
    %3962 = vmatpush1.msra.mxu0 0.0
    %3963 = vmatprep.subr.mxu0 0.0
    %3964 = vmatpush1.msra.mxu0 0.0
    %3965 = vmatprep.subr.mxu0 0.0
    %3966 = vmatpush1.msra.mxu0 0.0
    %3967 = vmatprep.subr.mxu0 0.0
    %3968 = vmatpush1.msra.mxu0 0.0
    %3969 = vmatprep.subr.mxu0 0.0
    %3970 = vmatpush1.msra.mxu0 0.0
    %3971 = vmatprep.subr.mxu0 0.0
    %3972 = vmatpush1.msra.mxu0 0.0
    %3973 = vmatprep.subr.mxu0 0.0
    %3974 = vmatpush1.msra.mxu0 0.0
    %3975 = vmatprep.subr.mxu0 0.0
    %3976 = vmatpush1.msra.mxu0 0.0
    %3977 = vmatprep.subr.mxu0 0.0
    %3978 = vmatpush1.msra.mxu0 0.0
    %3979 = vmatprep.subr.mxu0 0.0
    %3980 = vmatpush1.msra.mxu0 0.0
    %3981 = vmatprep.subr.mxu0 0.0
    %3982 = vmatpush1.msra.mxu0 0.0
    %3983 = vmatprep.subr.mxu0 0.0
    %3984 = vmatpush1.msra.mxu0 0.0
    %3985 = vmatprep.subr.mxu0 0.0
    %3986 = vmatpush1.msra.mxu0 0.0
    %3987 = vmatprep.subr.mxu0 0.0
    %3988 = vmatpush1.msra.mxu0 0.0
    %3989 = vmatprep.subr.mxu0 0.0
    %3990 = vmatpush1.msra.mxu0 0.0
    %3991 = vmatprep.subr.mxu0 0.0
    %3992 = vmatpush1.msra.mxu0 0.0
    %3993 = vmatprep.subr.mxu0 0.0
    %3994 = vmatpush1.msra.mxu0 0.0
    %3995 = vmatprep.subr.mxu0 0.0
    %3996 = vmatpush1.msra.mxu0 0.0
    %3997 = vmatprep.subr.mxu0 0.0
    %3998 = vmatpush1.msra.mxu0 0.0
    %3999 = vmatprep.subr.mxu0 0.0
    %4000 = vmatpush1.msra.mxu0 0.0
    %4001 = vmatprep.subr.mxu0 0.0
    %4002 = vmatpush1.msra.mxu0 0.0
    %4003 = vmatprep.subr.mxu0 0.0
    %4004 = vmatpush1.msra.mxu0 0.0
    %4005 = vmatprep.subr.mxu0 0.0
    %4006 = vmatpush1.msra.mxu0 0.0
    %4007 = vmatprep.subr.mxu0 0.0
    %4008 = vmatpush1.msra.mxu0 0.0
    %4009 = vmatprep.subr.mxu0 0.0
    %4010 = vmatpush1.msra.mxu0 0.0
    %4011 = vmatprep.subr.mxu0 0.0
    %4012 = vmatpush1.msra.mxu0 0.0
    %4013 = vmatprep.subr.mxu0 0.0
    %4014 = vmatpush1.msra.mxu0 0.0
    %4015 = vmatprep.subr.mxu0 0.0
    %4016 = vmatpush1.msra.mxu0 0.0
    %4017 = vmatprep.subr.mxu0 0.0
    %4018 = vmatpush1.msra.mxu0 0.0
    %4019 = vmatprep.mubr.f32.mxu0 0.0
    %4020 = vmatmul.mubr.f32.gmra.mrb[0].mxu0 %v3953
    %v4021 = vpop.f32.mrb[0].mxu0
    %v4022 = vadd.f32 0.0, %v4021
    %v4023 = vpop.f32.mrb[0].mxu0
    %4024 = vdwg.mxu0
    %v4025 = vpack.c.bf16 %v4022, %v3946
    %v4026 = vld [vmem:[#allocation2 + $0x294] sm:$0xf]
    %v4027 = vld [vmem:[#allocation2 + $0x2c8] sm:$0xf]
    %v4028 = vld [vmem:[#allocation2 + $0x2fc] sm:$0xf]
    %v4029 = vld [vmem:[#allocation2 + $0x330] sm:$0xf]
    %v4034 = vunpack.c.l.b16 %v4026
    %v4035 = vunpack.c.l.b16 %v4027
    %v4036 = vunpack.c.l.b16 %v4028
    %v4037 = vunpack.c.l.b16 %v4029
    %v4038 = vpack.c.b16 %v4035, %v4034
    %v4039 = vpack.c.b16 %v4037, %v4036
    %v4043 = vsel %vm310, %v4025, 0
    %4045 = vmatprep.subr.bf16.mxu0 0
    %4046 = vmatpush1.bf16.msra.mxu0 %v4038
    %4047 = vmatprep.subr.bf16.mxu0 0
    %4048 = vmatpush1.bf16.msra.mxu0 %v4039
    %4049 = vmatprep.subr.bf16.mxu0 0
    %4050 = vmatpush1.bf16.msra.mxu0 0
    %4051 = vmatprep.subr.bf16.mxu0 0
    %4052 = vmatpush1.bf16.msra.mxu0 0
    %4053 = vmatprep.subr.bf16.mxu0 0
    %4054 = vmatpush1.bf16.msra.mxu0 0
    %4055 = vmatprep.subr.bf16.mxu0 0
    %4056 = vmatpush1.bf16.msra.mxu0 0
    %4057 = vmatprep.subr.bf16.mxu0 0
    %4058 = vmatpush1.bf16.msra.mxu0 0
    %4059 = vmatprep.subr.bf16.mxu0 0
    %4060 = vmatpush1.bf16.msra.mxu0 0
    %4061 = vmatprep.subr.bf16.mxu0 0
    %4062 = vmatpush1.bf16.msra.mxu0 0
    %4063 = vmatprep.subr.bf16.mxu0 0
    %4064 = vmatpush1.bf16.msra.mxu0 0
    %4065 = vmatprep.subr.bf16.mxu0 0
    %4066 = vmatpush1.bf16.msra.mxu0 0
    %4067 = vmatprep.subr.bf16.mxu0 0
    %4068 = vmatpush1.bf16.msra.mxu0 0
    %4069 = vmatprep.subr.bf16.mxu0 0
    %4070 = vmatpush1.bf16.msra.mxu0 0
    %4071 = vmatprep.subr.bf16.mxu0 0
    %4072 = vmatpush1.bf16.msra.mxu0 0
    %4073 = vmatprep.subr.bf16.mxu0 0
    %4074 = vmatpush1.bf16.msra.mxu0 0
    %4075 = vmatprep.subr.bf16.mxu0 0
    %4076 = vmatpush1.bf16.msra.mxu0 0
    %4077 = vmatprep.mubr.bf16.mxu0 0
    %4078 = vmatmul.mubr.bf16.gmra.mrb[0].mxu0 %v4043
    %v4079 = vpop.f32.mrb[0].mxu0
    %v4080 = vadd.f32 0.0, %v4079
    %v4081 = vpop.f32.mrb[0].mxu0
    %v4082 = vpop.f32.mrb[0].mxu0
    %v4083 = vadd.f32 0.0, %v4082
    %v4084 = vpop.f32.mrb[0].mxu0
    %4085 = vdwg.mxu0
    %v4086 = vadd.f32 %v3693, %v4080
    %v4087 = vadd.f32 %v3694, %v4083
    %v4088 = vld [vmem:[#allocation4 + $0x19] ss:$0 sm:$0xff]
    %v4089 = vadd.f32 %v4086, %v4088
    %v4090 = vadd.f32 %v4087, %v4088
    %v4091 = vadd.f32 %v2263, %v4089
    %v4092 = vadd.f32 %v2264, %v4090
    %v4093 = vld [vmem:[#allocation4 + $0x1a] ss:$0 sm:$0xff]
    %v4094 = vld [vmem:[#allocation4 + $0x1b] ss:$0 sm:$0xff]
    %4095 = vadd.xlane.f32.xlu0 %v4091
    %v4096 = vpop.xlane.xlu0 %4095
    %4097 = vadd.xlane.f32.xlu0 %v4092
    %v4098 = vpop.xlane.xlu0 %4097
    %v4099 = vmul.f32 %v4096, %v1883
    %v4100 = vmul.f32 %v4098, %v1883
    %v4101 = vsub.f32 %v4091, %v4099
    %v4102 = vsub.f32 %v4092, %v4100
    %v4103 = vmul.f32 %v4101, %v4101
    %v4104 = vmul.f32 %v4102, %v4102
    %4105 = vadd.xlane.f32.xlu0 %v4103
    %v4106 = vpop.xlane.xlu0 %4105
    %4107 = vadd.xlane.f32.xlu0 %v4104
    %v4108 = vpop.xlane.xlu0 %4107
    %v4109 = vmul.f32 %v4106, %v1883
    %v4110 = vmul.f32 %v4108, %v1883
    %v4111 = vadd.f32 %v4109, 1e-05
    %v4112 = vadd.f32 %v4110, 1e-05
    %v4113 = vrsqrt.pop %v4111
    %v4114 = vrsqrt.pop %v4112
    %v4115 = vmul.f32 %v4101, %v4113
    %v4116 = vmul.f32 %v4102, %v4114
    %v4117 = vmul.f32 %v4115, %v4093
    %v4118 = vmul.f32 %v4116, %v4093
    %v4119 = vadd.f32 %v4117, %v4094
    %v4120 = vadd.f32 %v4118, %v4094
    %v4121 = vpack.c.bf16 %v4120, %v4119
    %v4122 = vld [vmem:[#allocation2 + $0x28] sm:$0xff]
    %v4123 = vld [vmem:[#allocation2 + $0x5c] sm:$0xff]
    %v4124 = vld [vmem:[#allocation2 + $0x90] sm:$0xff]
    %v4125 = vld [vmem:[#allocation2 + $0xc4] sm:$0xff]
    %v4126 = vld [vmem:[#allocation2 + $0xf8] sm:$0xff]
    %v4127 = vld [vmem:[#allocation2 + $0x12c] sm:$0xff]
    %v4128 = vld [vmem:[#allocation2 + $0x160] sm:$0xff]
    %v4129 = vld [vmem:[#allocation2 + $0x194] sm:$0xff]
    %v4130 = vld [vmem:[#allocation2 + $0x1c8] sm:$0xff]
    %v4131 = vld [vmem:[#allocation2 + $0x1fc] sm:$0xff]
    %v4132 = vld [vmem:[#allocation2 + $0x230] sm:$0xff]
    %v4133 = vld [vmem:[#allocation2 + $0x264] sm:$0xff]
    %v4134 = vld [vmem:[#allocation2 + $0x298] sm:$0xff]
    %v4135 = vld [vmem:[#allocation2 + $0x2cc] sm:$0xff]
    %v4136 = vld [vmem:[#allocation2 + $0x300] sm:$0xff]
    %v4137 = vld [vmem:[#allocation2 + $0x334] sm:$0xff]
    %s4138 = scalar_lea.vmem [#allocation4], 28
    %v4139 = vld [vmem:[%s4138] ss:$8 sm:$0x3]
    %v4141 = vlaneseq
    %v4142 = vshrl.u32 %v4141, 7
    %v4143 = vsub.s32 0, %v4142
    %v4144 = vrot.slane %v4139, %v4143
    %v4145 = vlaneseq
    %v4146 = vshrl.u32 %v4145, 7
    %v4147 = vsub.s32 1, %v4146
    %v4148 = vrot.slane %v4139, %v4147
    %v4167 = vunpack.c.l.b16 %v4122
    %v4168 = vunpack.c.h.b16 %v4122
    %v4169 = vunpack.c.l.b16 %v4123
    %v4170 = vunpack.c.h.b16 %v4123
    %v4171 = vunpack.c.l.b16 %v4124
    %v4172 = vunpack.c.h.b16 %v4124
    %v4173 = vunpack.c.l.b16 %v4125
    %v4174 = vunpack.c.h.b16 %v4125
    %v4175 = vunpack.c.l.b16 %v4126
    %v4176 = vunpack.c.h.b16 %v4126
    %v4177 = vunpack.c.l.b16 %v4127
    %v4178 = vunpack.c.h.b16 %v4127
    %v4179 = vunpack.c.l.b16 %v4128
    %v4180 = vunpack.c.h.b16 %v4128
    %v4181 = vunpack.c.l.b16 %v4129
    %v4182 = vunpack.c.h.b16 %v4129
    %v4183 = vunpack.c.l.b16 %v4130
    %v4184 = vunpack.c.h.b16 %v4130
    %v4185 = vunpack.c.l.b16 %v4131
    %v4186 = vunpack.c.h.b16 %v4131
    %v4187 = vunpack.c.l.b16 %v4132
    %v4188 = vunpack.c.h.b16 %v4132
    %v4189 = vunpack.c.l.b16 %v4133
    %v4190 = vunpack.c.h.b16 %v4133
    %v4191 = vunpack.c.l.b16 %v4134
    %v4192 = vunpack.c.h.b16 %v4134
    %v4193 = vunpack.c.l.b16 %v4135
    %v4194 = vunpack.c.h.b16 %v4135
    %v4195 = vunpack.c.l.b16 %v4136
    %v4196 = vunpack.c.h.b16 %v4136
    %v4197 = vunpack.c.l.b16 %v4137
    %v4198 = vunpack.c.h.b16 %v4137
    %v4199 = vpack.c.b16 %v4169, %v4167
    %v4200 = vpack.c.b16 %v4170, %v4168
    %v4201 = vpack.c.b16 %v4173, %v4171
    %v4202 = vpack.c.b16 %v4174, %v4172
    %v4203 = vpack.c.b16 %v4177, %v4175
    %v4204 = vpack.c.b16 %v4178, %v4176
    %v4205 = vpack.c.b16 %v4181, %v4179
    %v4206 = vpack.c.b16 %v4182, %v4180
    %v4207 = vpack.c.b16 %v4185, %v4183
    %v4208 = vpack.c.b16 %v4186, %v4184
    %v4209 = vpack.c.b16 %v4189, %v4187
    %v4210 = vpack.c.b16 %v4190, %v4188
    %v4211 = vpack.c.b16 %v4193, %v4191
    %v4212 = vpack.c.b16 %v4194, %v4192
    %v4213 = vpack.c.b16 %v4197, %v4195
    %v4214 = vpack.c.b16 %v4198, %v4196
    %4231 = vmatprep.subr.bf16.mxu0 %v4200
    %4232 = vmatpush1.bf16.msra.mxu0 %v4199
    %4233 = vmatprep.subr.bf16.mxu0 %v4202
    %4234 = vmatpush1.bf16.msra.mxu0 %v4201
    %4235 = vmatprep.subr.bf16.mxu0 %v4204
    %4236 = vmatpush1.bf16.msra.mxu0 %v4203
    %4237 = vmatprep.subr.bf16.mxu0 %v4206
    %4238 = vmatpush1.bf16.msra.mxu0 %v4205
    %4239 = vmatprep.subr.bf16.mxu0 %v4208
    %4240 = vmatpush1.bf16.msra.mxu0 %v4207
    %4241 = vmatprep.subr.bf16.mxu0 %v4210
    %4242 = vmatpush1.bf16.msra.mxu0 %v4209
    %4243 = vmatprep.subr.bf16.mxu0 %v4212
    %4244 = vmatpush1.bf16.msra.mxu0 %v4211
    %4245 = vmatprep.subr.bf16.mxu0 %v4214
    %4246 = vmatpush1.bf16.msra.mxu0 %v4213
    %4247 = vmatprep.subr.bf16.mxu0 0
    %4248 = vmatpush1.bf16.msra.mxu0 0
    %4249 = vmatprep.subr.bf16.mxu0 0
    %4250 = vmatpush1.bf16.msra.mxu0 0
    %4251 = vmatprep.subr.bf16.mxu0 0
    %4252 = vmatpush1.bf16.msra.mxu0 0
    %4253 = vmatprep.subr.bf16.mxu0 0
    %4254 = vmatpush1.bf16.msra.mxu0 0
    %4255 = vmatprep.subr.bf16.mxu0 0
    %4256 = vmatpush1.bf16.msra.mxu0 0
    %4257 = vmatprep.subr.bf16.mxu0 0
    %4258 = vmatpush1.bf16.msra.mxu0 0
    %4259 = vmatprep.subr.bf16.mxu0 0
    %4260 = vmatpush1.bf16.msra.mxu0 0
    %4261 = vmatprep.subr.bf16.mxu0 0
    %4262 = vmatpush1.bf16.msra.mxu0 0
    %4263 = vmatprep.mubr.bf16.mxu0 0
    %4264 = vmatmul.mubr.bf16.gmra.mrb[0].mxu0 %v4121
    %v4265 = vpop.f32.mrb[0].mxu0
    %v4266 = vadd.f32 %v4144, %v4265
    %v4267 = vpop.f32.mrb[0].mxu0
    %v4268 = vadd.f32 %v4148, %v4267
    %v4269 = vpop.f32.mrb[0].mxu0
    %v4270 = vadd.f32 %v4144, %v4269
    %v4271 = vpop.f32.mrb[0].mxu0
    %v4272 = vadd.f32 %v4148, %v4271
    %4273 = vdwg.mxu0
    %v4274 = vmax.f32 %v4266, 0.0
    %v4275 = vmax.f32 %v4268, 0.0
    %v4276 = vmax.f32 %v4270, 0.0
    %v4277 = vmax.f32 %v4272, 0.0
    %v4278 = vpack.c.bf16 %v4276, %v4274
    %v4279 = vpack.c.bf16 %v4277, %v4275
    %v4280 = vld [vmem:[%s2 + $0x80] sm:$0xf]
    %v4281 = vld [vmem:[%s2 + $0x84] sm:$0xf]
    %v4282 = vld [vmem:[%s2 + $0x88] sm:$0xf]
    %v4283 = vld [vmem:[%s2 + $0x8c] sm:$0xf]
    %v4284 = vld [vmem:[%s2 + $0x90] sm:$0xf]
    %v4285 = vld [vmem:[%s2 + $0x94] sm:$0xf]
    %v4286 = vld [vmem:[%s2 + $0x98] sm:$0xf]
    %v4287 = vld [vmem:[%s2 + $0x9c] sm:$0xf]
    %v4288 = vld [vmem:[%s2 + $0xa0] sm:$0xf]
    %v4289 = vld [vmem:[%s2 + $0xa4] sm:$0xf]
    %v4290 = vld [vmem:[%s2 + $0xa8] sm:$0xf]
    %v4291 = vld [vmem:[%s2 + $0xac] sm:$0xf]
    %v4292 = vld [vmem:[%s2 + $0xb0] sm:$0xf]
    %v4293 = vld [vmem:[%s2 + $0xb4] sm:$0xf]
    %v4294 = vld [vmem:[%s2 + $0xb8] sm:$0xf]
    %v4295 = vld [vmem:[%s2 + $0xbc] sm:$0xf]
    %v4296 = vld [vmem:[%s2 + $0xc0] sm:$0xf]
    %v4297 = vld [vmem:[%s2 + $0xc4] sm:$0xf]
    %v4298 = vld [vmem:[%s2 + $0xc8] sm:$0xf]
    %v4299 = vld [vmem:[%s2 + $0xcc] sm:$0xf]
    %v4300 = vld [vmem:[%s2 + $0xd0] sm:$0xf]
    %v4301 = vld [vmem:[%s2 + $0xd4] sm:$0xf]
    %v4302 = vld [vmem:[%s2 + $0xd8] sm:$0xf]
    %v4303 = vld [vmem:[%s2 + $0xdc] sm:$0xf]
    %v4304 = vld [vmem:[%s2 + $0xe0] sm:$0xf]
    %v4305 = vld [vmem:[%s2 + $0xe4] sm:$0xf]
    %v4306 = vld [vmem:[%s2 + $0xe8] sm:$0xf]
    %v4307 = vld [vmem:[%s2 + $0xec] sm:$0xf]
    %v4308 = vld [vmem:[%s2 + $0xf0] sm:$0xf]
    %v4309 = vld [vmem:[%s2 + $0xf4] sm:$0xf]
    %v4310 = vld [vmem:[%s2 + $0xf8] sm:$0xf]
    %v4311 = vld [vmem:[%s2 + $0xfc] sm:$0xf]
    %v4312 = vld [vmem:[#allocation4 + $0x1d] ss:$0 sm:$0xff]
    %v4345 = vunpack.c.l.b16 %v4280
    %v4346 = vunpack.c.l.b16 %v4281
    %v4347 = vunpack.c.l.b16 %v4282
    %v4348 = vunpack.c.l.b16 %v4283
    %v4349 = vunpack.c.l.b16 %v4284
    %v4350 = vunpack.c.l.b16 %v4285
    %v4351 = vunpack.c.l.b16 %v4286
    %v4352 = vunpack.c.l.b16 %v4287
    %v4353 = vunpack.c.l.b16 %v4288
    %v4354 = vunpack.c.l.b16 %v4289
    %v4355 = vunpack.c.l.b16 %v4290
    %v4356 = vunpack.c.l.b16 %v4291
    %v4357 = vunpack.c.l.b16 %v4292
    %v4358 = vunpack.c.l.b16 %v4293
    %v4359 = vunpack.c.l.b16 %v4294
    %v4360 = vunpack.c.l.b16 %v4295
    %v4361 = vunpack.c.l.b16 %v4296
    %v4362 = vunpack.c.l.b16 %v4297
    %v4363 = vunpack.c.l.b16 %v4298
    %v4364 = vunpack.c.l.b16 %v4299
    %v4365 = vunpack.c.l.b16 %v4300
    %v4366 = vunpack.c.l.b16 %v4301
    %v4367 = vunpack.c.l.b16 %v4302
    %v4368 = vunpack.c.l.b16 %v4303
    %v4369 = vunpack.c.l.b16 %v4304
    %v4370 = vunpack.c.l.b16 %v4305
    %v4371 = vunpack.c.l.b16 %v4306
    %v4372 = vunpack.c.l.b16 %v4307
    %v4373 = vunpack.c.l.b16 %v4308
    %v4374 = vunpack.c.l.b16 %v4309
    %v4375 = vunpack.c.l.b16 %v4310
    %v4376 = vunpack.c.l.b16 %v4311
    %v4377 = vpack.c.b16 %v4346, %v4345
    %v4378 = vpack.c.b16 %v4348, %v4347
    %v4379 = vpack.c.b16 %v4350, %v4349
    %v4380 = vpack.c.b16 %v4352, %v4351
    %v4381 = vpack.c.b16 %v4354, %v4353
    %v4382 = vpack.c.b16 %v4356, %v4355
    %v4383 = vpack.c.b16 %v4358, %v4357
    %v4384 = vpack.c.b16 %v4360, %v4359
    %v4385 = vpack.c.b16 %v4362, %v4361
    %v4386 = vpack.c.b16 %v4364, %v4363
    %v4387 = vpack.c.b16 %v4366, %v4365
    %v4388 = vpack.c.b16 %v4368, %v4367
    %v4389 = vpack.c.b16 %v4370, %v4369
    %v4390 = vpack.c.b16 %v4372, %v4371
    %v4391 = vpack.c.b16 %v4374, %v4373
    %v4392 = vpack.c.b16 %v4376, %v4375
    %4409 = vmatprep.subr.bf16.mxu0 0
    %4410 = vmatpush1.bf16.msra.mxu0 %v4377
    %4411 = vmatprep.subr.bf16.mxu0 0
    %4412 = vmatpush1.bf16.msra.mxu0 %v4378
    %4413 = vmatprep.subr.bf16.mxu0 0
    %4414 = vmatpush1.bf16.msra.mxu0 %v4379
    %4415 = vmatprep.subr.bf16.mxu0 0
    %4416 = vmatpush1.bf16.msra.mxu0 %v4380
    %4417 = vmatprep.subr.bf16.mxu0 0
    %4418 = vmatpush1.bf16.msra.mxu0 %v4381
    %4419 = vmatprep.subr.bf16.mxu0 0
    %4420 = vmatpush1.bf16.msra.mxu0 %v4382
    %4421 = vmatprep.subr.bf16.mxu0 0
    %4422 = vmatpush1.bf16.msra.mxu0 %v4383
    %4423 = vmatprep.subr.bf16.mxu0 0
    %4424 = vmatpush1.bf16.msra.mxu0 %v4384
    %4425 = vmatprep.subr.bf16.mxu0 0
    %4426 = vmatpush1.bf16.msra.mxu0 %v4385
    %4427 = vmatprep.subr.bf16.mxu0 0
    %4428 = vmatpush1.bf16.msra.mxu0 %v4386
    %4429 = vmatprep.subr.bf16.mxu0 0
    %4430 = vmatpush1.bf16.msra.mxu0 %v4387
    %4431 = vmatprep.subr.bf16.mxu0 0
    %4432 = vmatpush1.bf16.msra.mxu0 %v4388
    %4433 = vmatprep.subr.bf16.mxu0 0
    %4434 = vmatpush1.bf16.msra.mxu0 %v4389
    %4435 = vmatprep.subr.bf16.mxu0 0
    %4436 = vmatpush1.bf16.msra.mxu0 %v4390
    %4437 = vmatprep.subr.bf16.mxu0 0
    %4438 = vmatpush1.bf16.msra.mxu0 %v4391
    %4439 = vmatprep.subr.bf16.mxu0 0
    %4440 = vmatpush1.bf16.msra.mxu0 %v4392
    %4441 = vmatprep.mubr.bf16.mxu0 %v4279
    %4442 = vmatmul.mubr.bf16.gmra.mrb[0].mxu0 %v4278
    %v4443 = vpop.f32.mrb[0].mxu0
    %v4444 = vadd.f32 %v4312, %v4443
    %v4445 = vpop.f32.mrb[0].mxu0
    %v4446 = vpop.f32.mrb[0].mxu0
    %v4447 = vadd.f32 %v4312, %v4446
    %v4448 = vpop.f32.mrb[0].mxu0
    %4449 = vdwg.mxu0
    %v4450 = vadd.f32 %v4119, %v4444
    %v4451 = vadd.f32 %v4120, %v4447
    %v4452 = vld [vmem:[#allocation4 + $0x1e] ss:$0 sm:$0xff]
    %v4453 = vld [vmem:[#allocation4 + $0x1f] ss:$0 sm:$0xff]
    %4454 = vadd.xlane.f32.xlu0 %v4450
    %v4455 = vpop.xlane.xlu0 %4454
    %4456 = vadd.xlane.f32.xlu0 %v4451
    %v4457 = vpop.xlane.xlu0 %4456
    %v4458 = vmul.f32 %v4455, %v1883
    %v4459 = vmul.f32 %v4457, %v1883
    %v4460 = vsub.f32 %v4450, %v4458
    %v4461 = vsub.f32 %v4451, %v4459
    %v4462 = vmul.f32 %v4460, %v4460
    %v4463 = vmul.f32 %v4461, %v4461
    %4464 = vadd.xlane.f32.xlu0 %v4462
    %v4465 = vpop.xlane.xlu0 %4464
    %4466 = vadd.xlane.f32.xlu0 %v4463
    %v4467 = vpop.xlane.xlu0 %4466
    %v4468 = vmul.f32 %v4465, %v1883
    %v4469 = vmul.f32 %v4467, %v1883
    %v4470 = vadd.f32 %v4468, 1e-05
    %v4471 = vadd.f32 %v4469, 1e-05
    %v4472 = vrsqrt.pop %v4470
    %v4473 = vrsqrt.pop %v4471
    %v4474 = vmul.f32 %v4460, %v4472
    %v4475 = vmul.f32 %v4461, %v4473
    %v4476 = vmul.f32 %v4474, %v4452
    %v4477 = vmul.f32 %v4475, %v4452
    %v4478 = vadd.f32 %v4476, %v4453
    %v4479 = vadd.f32 %v4477, %v4453
    %v4480 = vpack.c.bf16 %v4479, %v4478
    %v4481 = vld [vmem:[#allocation2 + $0x30] sm:$0xf]
    %v4482 = vld [vmem:[#allocation2 + $0x64] sm:$0xf]
    %v4483 = vld [vmem:[#allocation2 + $0x98] sm:$0xf]
    %v4484 = vld [vmem:[#allocation2 + $0xcc] sm:$0xf]
    %v4485 = vld [vmem:[#allocation2 + $0x100] sm:$0xf]
    %v4486 = vld [vmem:[#allocation2 + $0x134] sm:$0xf]
    %v4487 = vld [vmem:[#allocation2 + $0x168] sm:$0xf]
    %v4488 = vld [vmem:[#allocation2 + $0x19c] sm:$0xf]
    %v4489 = vld [vmem:[#allocation2 + $0x1d0] sm:$0xf]
    %v4490 = vld [vmem:[#allocation2 + $0x204] sm:$0xf]
    %v4491 = vld [vmem:[#allocation2 + $0x238] sm:$0xf]
    %v4492 = vld [vmem:[#allocation2 + $0x26c] sm:$0xf]
    %v4493 = vld [vmem:[#allocation2 + $0x2a0] sm:$0xf]
    %v4494 = vld [vmem:[#allocation2 + $0x2d4] sm:$0xf]
    %v4495 = vld [vmem:[#allocation2 + $0x308] sm:$0xf]
    %v4496 = vld [vmem:[#allocation2 + $0x33c] sm:$0xf]
    %v4497 = vld [vmem:[#allocation4 + $0x30] ss:$0 sm:$0xff]
    %v4514 = vunpack.c.l.b16 %v4481
    %v4515 = vunpack.c.l.b16 %v4482
    %v4516 = vunpack.c.l.b16 %v4483
    %v4517 = vunpack.c.l.b16 %v4484
    %v4518 = vunpack.c.l.b16 %v4485
    %v4519 = vunpack.c.l.b16 %v4486
    %v4520 = vunpack.c.l.b16 %v4487
    %v4521 = vunpack.c.l.b16 %v4488
    %v4522 = vunpack.c.l.b16 %v4489
    %v4523 = vunpack.c.l.b16 %v4490
    %v4524 = vunpack.c.l.b16 %v4491
    %v4525 = vunpack.c.l.b16 %v4492
    %v4526 = vunpack.c.l.b16 %v4493
    %v4527 = vunpack.c.l.b16 %v4494
    %v4528 = vunpack.c.l.b16 %v4495
    %v4529 = vunpack.c.l.b16 %v4496
    %v4530 = vpack.c.b16 %v4515, %v4514
    %v4531 = vpack.c.b16 %v4517, %v4516
    %v4532 = vpack.c.b16 %v4519, %v4518
    %v4533 = vpack.c.b16 %v4521, %v4520
    %v4534 = vpack.c.b16 %v4523, %v4522
    %v4535 = vpack.c.b16 %v4525, %v4524
    %v4536 = vpack.c.b16 %v4527, %v4526
    %v4537 = vpack.c.b16 %v4529, %v4528
    %4546 = vmatprep.subr.bf16.mxu0 0
    %4547 = vmatpush1.bf16.msra.mxu0 %v4530
    %4548 = vmatprep.subr.bf16.mxu0 0
    %4549 = vmatpush1.bf16.msra.mxu0 %v4531
    %4550 = vmatprep.subr.bf16.mxu0 0
    %4551 = vmatpush1.bf16.msra.mxu0 %v4532
    %4552 = vmatprep.subr.bf16.mxu0 0
    %4553 = vmatpush1.bf16.msra.mxu0 %v4533
    %4554 = vmatprep.subr.bf16.mxu0 0
    %4555 = vmatpush1.bf16.msra.mxu0 %v4534
    %4556 = vmatprep.subr.bf16.mxu0 0
    %4557 = vmatpush1.bf16.msra.mxu0 %v4535
    %4558 = vmatprep.subr.bf16.mxu0 0
    %4559 = vmatpush1.bf16.msra.mxu0 %v4536
    %4560 = vmatprep.subr.bf16.mxu0 0
    %4561 = vmatpush1.bf16.msra.mxu0 %v4537
    %4562 = vmatprep.subr.bf16.mxu0 0
    %4563 = vmatpush1.bf16.msra.mxu0 0
    %4564 = vmatprep.subr.bf16.mxu0 0
    %4565 = vmatpush1.bf16.msra.mxu0 0
    %4566 = vmatprep.subr.bf16.mxu0 0
    %4567 = vmatpush1.bf16.msra.mxu0 0
    %4568 = vmatprep.subr.bf16.mxu0 0
    %4569 = vmatpush1.bf16.msra.mxu0 0
    %4570 = vmatprep.subr.bf16.mxu0 0
    %4571 = vmatpush1.bf16.msra.mxu0 0
    %4572 = vmatprep.subr.bf16.mxu0 0
    %4573 = vmatpush1.bf16.msra.mxu0 0
    %4574 = vmatprep.subr.bf16.mxu0 0
    %4575 = vmatpush1.bf16.msra.mxu0 0
    %4576 = vmatprep.subr.bf16.mxu0 0
    %4577 = vmatpush1.bf16.msra.mxu0 0
    %4578 = vmatprep.mubr.bf16.mxu0 0
    %4579 = vmatmul.mubr.bf16.gmra.mrb[0].mxu0 %v4480
    %v4580 = vpop.f32.mrb[0].mxu0
    %v4581 = vadd.f32 %v4497, %v4580
    %v4582 = vpop.f32.mrb[0].mxu0
    %v4583 = vpop.f32.mrb[0].mxu0
    %v4584 = vadd.f32 %v4497, %v4583
    %v4585 = vpop.f32.mrb[0].mxu0
    %4586 = vdwg.mxu0
    %4587 = vst [vmem:[%s4] sm:$0xff] %v4581
    %4588 = vst [vmem:[%s4 + $0x8] sm:$0xff] %v4584
    // Predicated region
    $region26: #{forward.1} parent=1 // pred_check
      _
    $region27: #{forward.1} parent=1 // pred_check_branch
      %4590 = sbr.rel (0) target = $region29
    $region28: #{forward.1} parent=1 // pred_region
      _
    $region29: #{forward.1} parent=1 // pred_fallthru
      _
    // Predicated region
    $region30: #{forward.1} parent=1 // pred_check
      _
    $region31: #{forward.1} parent=1 // pred_check_branch
      %4592 = sbr.rel (0) target = $region33
    $region32: #{forward.1} parent=1 // pred_region
      _
    $region33: #{forward.1} parent=1 // pred_fallthru
      _
    %4593 = vsyncpa [#allocation3], 1
    %4594 = vsyncpa [#allocation5], 1

</llo_original>
